<compile_context>
chip_gen: v6e
topology: v6e:2x2x1
jax: 0.10.0
libtpu: 0.0.40
codegen_flags: <defaults>
</compile_context>

<pallas_src>
import functools
import math

import jax
import jax.numpy as jnp
from jax import lax
from jax.experimental import pallas as pl
from jax.experimental.pallas import tpu as pltpu


# ----------------------------------------------------------------------------
# Generation-aware VMEM budget / tile scaling
# ----------------------------------------------------------------------------
def _vmem_info():
    try:
        cap = int(pltpu.get_tpu_info().vmem_capacity_bytes)
    except Exception:  # pragma: no cover - conservative fallback (v7x per-TC)
        cap = 64 * 1024 * 1024
    limit = min(int(cap * 3 // 4), 100 * 1024 * 1024)   # ~48 MiB v7x, ~96 MiB v5e/v6e
    limit = max(limit, 32 * 1024 * 1024)
    return cap, limit


_VMEM_CAP, _VMEM_LIMIT_BYTES = _vmem_info()
_BIG_VMEM = _VMEM_CAP >= (96 << 20)          # v5e / v6e (128 MiB/TC); v7x is 64 MiB


def _compiler_params(semantics):
    return pltpu.CompilerParams(dimension_semantics=semantics,
                                vmem_limit_bytes=_VMEM_LIMIT_BYTES)


def _pick_tile(dim, preferred, granularity):
    """Largest tile <= preferred that divides `dim` and is a multiple of
    `granularity`; falls back to the full dim (always a legal block)."""
    if dim <= preferred:
        return dim
    t = (preferred // granularity) * granularity
    while t >= granularity:
        if dim % t == 0:
            return t
        t -= granularity
    return dim


def _layer_norm(x, w, eps=1e-5):
    """F.layer_norm over last dim (f32 stats, no bias) then elementwise w."""
    xf = x.astype(jnp.float32)
    mu = jnp.mean(xf, axis=-1, keepdims=True)
    var = jnp.mean(jnp.square(xf - mu), axis=-1, keepdims=True)
    return (xf - mu) * lax.rsqrt(var + eps) * w   # w: (1, D) f32, broadcasts


# ----------------------------------------------------------------------------
# Kernels
# ----------------------------------------------------------------------------
def qkv_rope_kernel(x_ref, n1w_ref, cos_ref, sinlo_ref, sinhi_ref,
                    wq_ref, wk_ref, wv_ref,
                    q_ref, k_ref, v_ref, xn_sc, *, half):
    """LN1 + Q/K/V projection (output tiled over hidden) + rotary on q, k.

    NOTE: the xn_sc cache relies on the hidden-tile grid axis (axis 2) being
    innermost and sequential ("arbitrary"). Do not reorder / parallelise it.
    """
    @pl.when(pl.program_id(2) == 0)
    def _():
        xn_sc[...] = _layer_norm(x_ref[0], n1w_ref[...]).astype(jnp.bfloat16)

    xn = xn_sc[...]                                   # (ts, D) bf16
    cos = cos_ref[...]                                # (ts, tn) f32
    sin_lo = sinlo_ref[...]                           # -sin on first halves, 0 else
    sin_hi = sinhi_ref[...]                           # +sin on second halves, 0 else

    def proj(w_ref):
        return jnp.dot(xn, w_ref[...], preferred_element_type=jnp.float32)

    def rope(t):
        # Per-head rotate-half realised on the full tile:
        #   out = t*cos + roll(t, -half)*sin_lo + roll(t, +half)*sin_hi
        # (tn is a multiple of head_dim, so the needed sources never cross a
        #  head/tile boundary; the wrapped lanes land where sin_* is zero).
        tn = t.shape[-1]
        r_neg = jnp.concatenate([t[:, half:], t[:, :half]], axis=1)          # t[p+half]
        r_pos = jnp.concatenate([t[:, tn - half:], t[:, :tn - half]], axis=1)  # t[p-half]
        return t * cos + r_neg * sin_lo + r_pos * sin_hi

    q_ref[0] = rope(proj(wq_ref)).astype(jnp.bfloat16)
    k_ref[0] = rope(proj(wk_ref)).astype(jnp.bfloat16)
    v_ref[0] = proj(wv_ref).astype(jnp.bfloat16)


def flash_attn_kernel(q_ref, k_ref, v_ref, o_ref, m_sc, l_sc, acc_sc,
                      *, sm_scale, block_q, block_kv):
    """Per-(batch, head) causal flash attention; online softmax over KV tiles.

    Grid is (B, H, nq, nkv); the kv axis must stay innermost/"arbitrary"
    because the (m, l, acc) scratch is carried across it.
    """
    qi = pl.program_id(2)
    ki = pl.program_id(3)

    @pl.when(ki == 0)
    def _():
        m_sc[...] = jnp.full(m_sc.shape, -jnp.inf, m_sc.dtype)
        l_sc[...] = jnp.zeros(l_sc.shape, l_sc.dtype)
        acc_sc[...] = jnp.zeros(acc_sc.shape, acc_sc.dtype)

    def scores():
        return lax.dot_general(
            q_ref[0, 0], k_ref[0, 0], (((1,), (1,)), ((), ())),
            preferred_element_type=jnp.float32) * sm_scale

    def online_update(s):
        m_prev = m_sc[...]
        m_new = jnp.maximum(m_prev, jnp.max(s, axis=-1, keepdims=True))
        alpha = jnp.exp(m_prev - m_new)
        p = jnp.exp(s - m_new)
        l_sc[...] = alpha * l_sc[...] + jnp.sum(p, axis=-1, keepdims=True)
        acc_sc[...] = alpha * acc_sc[...] + jnp.dot(
            p.astype(jnp.bfloat16), v_ref[0, 0],
            preferred_element_type=jnp.float32)
        m_sc[...] = m_new

    @pl.when(ki < qi)                 # full lower-triangular tile: no mask work
    def _():
        online_update(scores())

    @pl.when(ki == qi)                # diagonal tile only: build causal mask
    def _():
        s = scores()
        row = lax.broadcasted_iota(jnp.int32, (block_q, block_kv), 0)
        col = lax.broadcasted_iota(jnp.int32, (block_q, block_kv), 1)
        online_update(jnp.where(col <= row, s, -1e30))

    @pl.when(ki == pl.num_programs(3) - 1)
    def _():
        inv = pl.reciprocal(l_sc[...], approx=True)   # EUP slot
        o_ref[0, 0] = (acc_sc[...] * inv).astype(o_ref.dtype)


def matmul_residual_kernel(a_ref, res_ref, w_ref, o_ref, acc_sc):
    """o = residual + a @ W   (K-tiled, f32 accumulator, no bias)."""
    k = pl.program_id(3)

    @pl.when(k == 0)
    def _():
        acc_sc[...] = jnp.zeros(acc_sc.shape, acc_sc.dtype)

    acc_sc[...] += jnp.dot(a_ref[0], w_ref[...],
                           preferred_element_type=jnp.float32)

    @pl.when(k == pl.num_programs(3) - 1)
    def _():
        o_ref[0] = (acc_sc[...] + res_ref[0].astype(jnp.float32)).astype(o_ref.dtype)


def matmul_bias_residual_kernel(a_ref, res_ref, w_ref, b_ref, o_ref, acc_sc):
    """o = residual + a @ W + b   (K-tiled, f32 accumulator)."""
    k = pl.program_id(3)

    @pl.when(k == 0)
    def _():
        acc_sc[...] = jnp.zeros(acc_sc.shape, acc_sc.dtype)

    acc_sc[...] += jnp.dot(a_ref[0], w_ref[...],
                           preferred_element_type=jnp.float32)

    @pl.when(k == pl.num_programs(3) - 1)
    def _():
        out = acc_sc[...] + b_ref[...] + res_ref[0].astype(jnp.float32)
        o_ref[0] = out.astype(o_ref.dtype)


def ln_matmul_gelu_kernel(x_ref, nw_ref, w_ref, b_ref, h_ref, xn_sc):
    """h = GELU_tanh(LN(x) @ W[:, tile] + b[tile]); LN cached across tiles.

    Relies on the output-tile grid axis (axis 2) being innermost/"arbitrary".
    """
    @pl.when(pl.program_id(2) == 0)
    def _():
        xn_sc[...] = _layer_norm(x_ref[0], nw_ref[...]).astype(jnp.bfloat16)

    acc = jnp.dot(xn_sc[...], w_ref[...], preferred_element_type=jnp.float32)
    acc = jax.nn.gelu(acc + b_ref[...], approximate=True)
    h_ref[0] = acc.astype(h_ref.dtype)


def final_logits_kernel(x_ref, nw_ref, w_ref, b_ref, logits_ref, lse_ref,
                        xn_sc, m_sc, l_sc, *, mask_index, neg_infinity,
                        block_v):
    """Final LN + vocab-tiled linear, mask_index clamp, online LSE over V.

    Relies on the vocab grid axis (axis 2) being innermost/"arbitrary".
    """
    vi = pl.program_id(2)

    @pl.when(vi == 0)
    def _():
        xn_sc[...] = _layer_norm(x_ref[0], nw_ref[...]).astype(jnp.bfloat16)
        m_sc[...] = jnp.full(m_sc.shape, -jnp.inf, m_sc.dtype)
        l_sc[...] = jnp.zeros(l_sc.shape, l_sc.dtype)

    logits = jnp.dot(xn_sc[...], w_ref[...],
                     preferred_element_type=jnp.float32) + b_ref[...]
    col = vi * block_v + lax.broadcasted_iota(jnp.int32, logits.shape, 1)
    logits = jnp.where(col == mask_index, neg_infinity, logits)
    logits_ref[0] = logits

    m_prev = m_sc[...]
    m_new = jnp.maximum(m_prev, jnp.max(logits, axis=-1, keepdims=True))
    l_sc[...] = l_sc[...] * jnp.exp(m_prev - m_new) + jnp.sum(
        jnp.exp(logits - m_new), axis=-1, keepdims=True)
    m_sc[...] = m_new

    @pl.when(vi == pl.num_programs(2) - 1)
    def _():
        lse_ref[0] = m_sc[...] + jnp.log(l_sc[...])


def log_softmax_sub_kernel(logits_ref, lse_ref, o_ref):
    o_ref[0] = logits_ref[0] - lse_ref[0]


# ----------------------------------------------------------------------------
# pallas_call wrappers
# ----------------------------------------------------------------------------
def qkv_rope(x, n1w, cos_t, sin_lo, sin_hi, wq, wk, wv, *, head_dim, ts, tn):
    B, S, D = x.shape
    grid = (B, S // ts, D // tn)
    out_sds = jax.ShapeDtypeStruct((B, S, D), jnp.bfloat16)
    out_spec = pl.BlockSpec((1, ts, tn), lambda b, s, n: (b, s, n))
    tab_spec = pl.BlockSpec((ts, tn), lambda b, s, n: (s, n))
    w_spec = pl.BlockSpec((D, tn), lambda b, s, n: (0, n))
    kernel = functools.partial(qkv_rope_kernel, half=head_dim // 2)
    return pl.pallas_call(
        kernel,
        out_shape=(out_sds, out_sds, out_sds),
        grid=grid,
        in_specs=[
            pl.BlockSpec((1, ts, D), lambda b, s, n: (b, s, 0)),
            pl.BlockSpec((1, D), lambda b, s, n: (0, 0)),
            tab_spec, tab_spec, tab_spec,
            w_spec, w_spec, w_spec,
        ],
        out_specs=(out_spec, out_spec, out_spec),
        scratch_shapes=[pltpu.VMEM((ts, D), jnp.bfloat16)],
        compiler_params=_compiler_params(("parallel", "parallel", "arbitrary")),
    )(x, n1w, cos_t, sin_lo, sin_hi, wq, wk, wv)


def flash_attention(q, k, v, *, tq):
    """q, k, v: (B, H, S, hd) bf16 -> (B, H, S, hd) bf16, causal."""
    B, H, S, hd = q.shape
    tkv = tq
    grid = (B, H, S // tq, S // tkv)
    kernel = functools.partial(flash_attn_kernel,
                               sm_scale=1.0 / math.sqrt(hd),
                               block_q=tq, block_kv=tkv)
    q_spec = pl.BlockSpec((1, 1, tq, hd), lambda b, h, qi, ki: (b, h, qi, 0))
    # Clamp the kv block index: for causally-skipped (ki > qi) steps the block
    # index does not change, so Pallas skips the (otherwise wasted) K/V DMA.
    kv_spec = pl.BlockSpec((1, 1, tkv, hd),
                           lambda b, h, qi, ki: (b, h, jnp.minimum(ki, qi), 0))
    out_spec = pl.BlockSpec((1, 1, tq, hd), lambda b, h, qi, ki: (b, h, qi, 0))
    return pl.pallas_call(
        kernel,
        out_shape=jax.ShapeDtypeStruct((B, H, S, hd), jnp.bfloat16),
        grid=grid,
        in_specs=[q_spec, kv_spec, kv_spec],
        out_specs=out_spec,
        scratch_shapes=[
            pltpu.VMEM((tq, 1), jnp.float32),
            pltpu.VMEM((tq, 1), jnp.float32),
            pltpu.VMEM((tq, hd), jnp.float32),
        ],
        # Leading (B, H) axes are "parallel": megacore (v7x) shards uniform
        # work over batch/heads instead of the load-imbalanced triangular qi.
        compiler_params=_compiler_params(
            ("parallel", "parallel", "parallel", "arbitrary")),
    )(q, k, v)


def matmul_add_residual(a, res, w, b=None, *, ts, tn, tk_pref):
    """out = res + a @ w (+ b). K-tiled weight streaming, f32 accumulator."""
    B, S, K = a.shape
    N = w.shape[-1]
    tk = _pick_tile(K, tk_pref, 128)
    grid = (B, S // ts, N // tn, K // tk)
    in_specs = [
        pl.BlockSpec((1, ts, tk), lambda bb, s, n, k: (bb, s, k)),
        pl.BlockSpec((1, ts, tn), lambda bb, s, n, k: (bb, s, n)),
        pl.BlockSpec((tk, tn), lambda bb, s, n, k: (k, n)),
    ]
    args = [a, res, w]
    kernel = matmul_residual_kernel
    if b is not None:
        in_specs.append(pl.BlockSpec((1, tn), lambda bb, s, n, k: (0, n)))
        args.append(b)
        kernel = matmul_bias_residual_kernel
    return pl.pallas_call(
        kernel,
        out_shape=jax.ShapeDtypeStruct((B, S, N), jnp.bfloat16),
        grid=grid,
        in_specs=in_specs,
        out_specs=pl.BlockSpec((1, ts, tn), lambda bb, s, n, k: (bb, s, n)),
        scratch_shapes=[pltpu.VMEM((ts, tn), jnp.float32)],
        compiler_params=_compiler_params(
            ("parallel", "parallel", "parallel", "arbitrary")),
    )(*args)


def ln_matmul_gelu(x, nw, w, b, *, ts, tn):
    B, S, D = x.shape
    N = w.shape[-1]
    grid = (B, S // ts, N // tn)
    return pl.pallas_call(
        ln_matmul_gelu_kernel,
        out_shape=jax.ShapeDtypeStruct((B, S, N), jnp.bfloat16),
        grid=grid,
        in_specs=[
            pl.BlockSpec((1, ts, D), lambda b_, s, n: (b_, s, 0)),
            pl.BlockSpec((1, D), lambda b_, s, n: (0, 0)),
            pl.BlockSpec((D, tn), lambda b_, s, n: (0, n)),
            pl.BlockSpec((1, tn), lambda b_, s, n: (0, n)),
        ],
        out_specs=pl.BlockSpec((1, ts, tn), lambda b_, s, n: (b_, s, n)),
        scratch_shapes=[pltpu.VMEM((ts, D), jnp.bfloat16)],
        compiler_params=_compiler_params(("parallel", "parallel", "arbitrary")),
    )(x, nw, w, b)


def final_logits(x, nw, w, b, *, mask_index, neg_infinity, ts, tv):
    B, S, D = x.shape
    V = w.shape[-1]
    grid = (B, S // ts, V // tv)
    kernel = functools.partial(final_logits_kernel, mask_index=mask_index,
                               neg_infinity=neg_infinity, block_v=tv)
    return pl.pallas_call(
        kernel,
        out_shape=(jax.ShapeDtypeStruct((B, S, V), jnp.float32),
                   jax.ShapeDtypeStruct((B, S, 1), jnp.float32)),
        grid=grid,
        in_specs=[
            pl.BlockSpec((1, ts, D), lambda b_, s, v: (b_, s, 0)),
            pl.BlockSpec((1, D), lambda b_, s, v: (0, 0)),
            pl.BlockSpec((D, tv), lambda b_, s, v: (0, v)),
            pl.BlockSpec((1, tv), lambda b_, s, v: (0, v)),
        ],
        out_specs=(pl.BlockSpec((1, ts, tv), lambda b_, s, v: (b_, s, v)),
                   pl.BlockSpec((1, ts, 1), lambda b_, s, v: (b_, s, 0))),
        scratch_shapes=[pltpu.VMEM((ts, D), jnp.bfloat16),
                        pltpu.VMEM((ts, 1), jnp.float32),
                        pltpu.VMEM((ts, 1), jnp.float32)],
        compiler_params=_compiler_params(("parallel", "parallel", "arbitrary")),
    )(x, nw, w, b)


def log_softmax_sub(logits, lse, *, ts, tv):
    B, S, V = logits.shape
    grid = (B, S // ts, V // tv)
    return pl.pallas_call(
        log_softmax_sub_kernel,
        out_shape=jax.ShapeDtypeStruct((B, S, V), jnp.float32),
        grid=grid,
        in_specs=[
            pl.BlockSpec((1, ts, tv), lambda b, s, v: (b, s, v)),
            pl.BlockSpec((1, ts, 1), lambda b, s, v: (b, s, 0)),
        ],
        out_specs=pl.BlockSpec((1, ts, tv), lambda b, s, v: (b, s, v)),
        input_output_aliases={0: 0},   # subtract lse in place: no extra (B,S,V) f32
        compiler_params=_compiler_params(("parallel", "parallel", "parallel")),
    )(logits, lse)


# ----------------------------------------------------------------------------
# Model assembly (glue in plain JAX)
# ----------------------------------------------------------------------------
def ddit_block(x, rope_tables, p, *, n_heads, head_dim, ts, tq, tn_d, tn_m,
               tk_pref):
    B, S, D = x.shape
    cos_t, sin_lo, sin_hi = rope_tables

    q, k, v = qkv_rope(x, p['n1w'], cos_t, sin_lo, sin_hi,
                       p['wq'], p['wk'], p['wv'],
                       head_dim=head_dim, ts=ts, tn=tn_d)

    def to_heads(t):
        return t.reshape(B, S, n_heads, head_dim).transpose(0, 2, 1, 3)

    attn = flash_attention(to_heads(q), to_heads(k), to_heads(v), tq=tq)
    attn = attn.transpose(0, 2, 1, 3).reshape(B, S, D)

    # attn_out has no bias in the reference -> skip the zero-bias stream/add.
    x = matmul_add_residual(attn, x, p['wout'], None,
                            ts=ts, tn=tn_d, tk_pref=tk_pref)
    h = ln_matmul_gelu(x, p['n2w'], p['w1'], p['b1'], ts=ts, tn=tn_m)
    x = matmul_add_residual(h, x, p['w2'], p['b2'],
                            ts=ts, tn=tn_d, tk_pref=tk_pref)
    return x


def make_rotary_tables(seq_len, head_dim, n_heads, base=10000.0):
    """Full-width (S, D) RoPE tables: cos, masked -sin (first halves),
    masked +sin (second halves)."""
    inv_freq = 1.0 / (base ** (jnp.arange(0, head_dim, 2, dtype=jnp.float32)
                               / head_dim))
    t = jnp.arange(seq_len, dtype=jnp.float32)
    freqs = t[:, None] * inv_freq[None, :]               # (S, hd/2)
    cos = jnp.cos(freqs)
    sin = jnp.sin(freqs)
    zeros = jnp.zeros_like(sin)
    cos_hd = jnp.concatenate([cos, cos], axis=-1)        # (S, hd)
    sin_lo_hd = jnp.concatenate([-sin, zeros], axis=-1)  # (S, hd)
    sin_hi_hd = jnp.concatenate([zeros, sin], axis=-1)   # (S, hd)
    tile = lambda a: jnp.tile(a, (1, n_heads))           # (S, D)
    return tile(cos_hd), tile(sin_lo_hd), tile(sin_hi_hd)


def init_params(key, *, vocab_size, hidden, n_heads, n_blocks, mlp_ratio):
    D = hidden
    Dm = mlp_ratio * hidden
    scale = 0.02
    keys = jax.random.split(key, 8 * n_blocks + 8)
    ki = iter(list(keys))

    def randn(shape):
        return scale * jax.random.normal(next(ki), shape, jnp.float32)

    embedding = randn((vocab_size, D))

    blocks = []
    for _ in range(n_blocks):
        wqkv = randn((D, 3 * D))
        blocks.append({
            'n1w': jnp.ones((1, D), jnp.float32),
            'wq': wqkv[:, 0 * D:1 * D].astype(jnp.bfloat16),
            'wk': wqkv[:, 1 * D:2 * D].astype(jnp.bfloat16),
            'wv': wqkv[:, 2 * D:3 * D].astype(jnp.bfloat16),
            'wout': randn((D, D)).astype(jnp.bfloat16),      # no bias (reference)
            'n2w': jnp.ones((1, D), jnp.float32),
            'w1': randn((D, Dm)).astype(jnp.bfloat16),
            'b1': randn((1, Dm)),
            'w2': randn((Dm, D)).astype(jnp.bfloat16),
            'b2': randn((1, D)),
        })

    # NOTE: reference __init__ zero-inits the final linear; random here so the
    # kernel output is non-trivial (shapes identical).
    final = {
        'nw': jnp.ones((1, D), jnp.float32),
        'w': randn((D, vocab_size)).astype(jnp.bfloat16),
        'b': randn((1, vocab_size)),
    }
    return {'embedding': embedding, 'blocks': blocks, 'final': final}


def ar_forward(params, xt, sigma, *, n_heads, mask_index, neg_infinity=-1000.0):
    """AR.forward: xt (B,S) int32, sigma (B,) -> (B,S,V) log-probs."""
    del sigma  # unused by the reference forward (c=None everywhere)
    B, S = xt.shape
    D = params['embedding'].shape[-1]
    Dm = params['blocks'][0]['w1'].shape[-1]
    V = params['final']['w'].shape[-1]
    hd = D // n_heads

    # Embedding lookup in plain JAX (XLA gather); activations carried as bf16.
    x = params['embedding'][xt].astype(jnp.bfloat16)      # (B, S, D)
    rope_tables = make_rotary_tables(S, hd, n_heads)      # (S, D) f32 each

    # Tile sizes: largest legal tiles <= the (generation-aware) preferred
    # values; they fall back to the full extents at small shapes.
    ts = _pick_tile(S, 512 if _BIG_VMEM else 256, 8)      # sequence row tile
    tq = _pick_tile(S, 256, 8)                            # attention q/kv tile
    tn_d = _pick_tile(D, 512, math.lcm(128, hd))          # hidden output tile
    tn_m = _pick_tile(Dm, 512, 128)                       # MLP hidden tile
    tv = _pick_tile(V, 2048 if _BIG_VMEM else 1024, 128)  # vocab tile
    tk_pref = 2048 if _BIG_VMEM else 1024                 # matmul K tile

    for blk in params['blocks']:
        x = ddit_block(x, rope_tables, blk, n_heads=n_heads, head_dim=hd,
                       ts=ts, tq=tq, tn_d=tn_d, tn_m=tn_m, tk_pref=tk_pref)

    logits, lse = final_logits(x, params['final']['nw'], params['final']['w'],
                               params['final']['b'], mask_index=mask_index,
                               neg_infinity=neg_infinity, ts=ts, tv=tv)
    return log_softmax_sub(logits, lse, ts=ts, tv=tv)


# ----------------------------------------------------------------------------
if __name__ == "__main__":
    # small config consistent with the module
    B, S = 2, 16
    hidden, n_heads, n_blocks, mlp_ratio = 32, 4, 2, 4
    vocab_size = 64
    mask_index = 0

    key = jax.random.PRNGKey(0)
    kp, kx, ks = jax.random.split(key, 3)
    params = init_params(kp, vocab_size=vocab_size, hidden=hidden,
                         n_heads=n_heads, n_blocks=n_blocks,
                         mlp_ratio=mlp_ratio)
    xt = jax.random.randint(kx, (B, S), 0, vocab_size, dtype=jnp.int32)
    sigma = jax.random.uniform(ks, (B,), jnp.float32)

    fwd = jax.jit(functools.partial(ar_forward, n_heads=n_heads,
                                    mask_index=mask_index))
    out = jax.block_until_ready(fwd(params, xt, sigma))

    assert out.shape == (B, S, vocab_size)
    assert out.dtype == jnp.float32
    # log-softmax rows must sum to 1 in prob space
    assert bool(jnp.all(jnp.abs(jnp.exp(out).sum(-1) - 1.0) < 1e-4))
    print("KERNEL_OK")
</pallas_src>

<mosaic_0001>
module attributes {stable_mosaic.version = 11 : i64} {
  func.func @qkv_rope_kernel(%arg0: i32, %arg1: i32, %arg2: i32, %arg3: memref<1x16x32xbf16, #tpu.memory_space<vmem>>, %arg4: memref<1x32xf32, #tpu.memory_space<vmem>>, %arg5: memref<16x32xf32, #tpu.memory_space<vmem>>, %arg6: memref<16x32xf32, #tpu.memory_space<vmem>>, %arg7: memref<16x32xf32, #tpu.memory_space<vmem>>, %arg8: memref<32x32xbf16, #tpu.memory_space<vmem>>, %arg9: memref<32x32xbf16, #tpu.memory_space<vmem>>, %arg10: memref<32x32xbf16, #tpu.memory_space<vmem>>, %arg11: memref<1x16x32xbf16, #tpu.memory_space<vmem>>, %arg12: memref<1x16x32xbf16, #tpu.memory_space<vmem>>, %arg13: memref<1x16x32xbf16, #tpu.memory_space<vmem>>, %arg14: memref<16x32xbf16, #tpu.memory_space<vmem>>) attributes {dimension_semantics = [#tpu.dimension_semantics<parallel>, #tpu.dimension_semantics<parallel>, #tpu.dimension_semantics<arbitrary>], iteration_bounds = array<i64: 2, 1, 1>, scalar_prefetch = 0 : i64, scratch_operands = 1 : i64, tpu.core_type = #tpu.core_type<tc>, window_params = [{transform_indices = @transform_0, window_bounds = array<i64: 1, 16, 32>}, {pipeline_mode = #tpu.pipeline_mode<synchronous>, transform_indices = @transform_1, window_bounds = array<i64: 1, 32>}, {transform_indices = @transform_2, window_bounds = array<i64: 16, 32>}, {transform_indices = @transform_3, window_bounds = array<i64: 16, 32>}, {transform_indices = @transform_4, window_bounds = array<i64: 16, 32>}, {transform_indices = @transform_5, window_bounds = array<i64: 32, 32>}, {transform_indices = @transform_6, window_bounds = array<i64: 32, 32>}, {transform_indices = @transform_7, window_bounds = array<i64: 32, 32>}, {transform_indices = @transform_8, window_bounds = array<i64: 1, 16, 32>}, {transform_indices = @transform_9, window_bounds = array<i64: 1, 16, 32>}, {transform_indices = @transform_10, window_bounds = array<i64: 1, 16, 32>}]} {
    %c0_i32 = arith.constant 0 : i32
    %0 = arith.cmpi eq, %arg2, %c0_i32 : i32
    %1 = arith.extui %0 : i1 to i32
    %c0_i32_0 = arith.constant 0 : i32
    %2 = arith.cmpi ne, %1, %c0_i32_0 : i32
    scf.if %2 {
      %c0_25 = arith.constant 0 : index
      %c0_26 = arith.constant 0 : index
      %c0_27 = arith.constant 0 : index
      %47 = vector.load %arg3[%c0_25, %c0_26, %c0_27] : memref<1x16x32xbf16, #tpu.memory_space<vmem>>, vector<1x16x32xbf16>
      %48 = vector.shape_cast %47 : vector<1x16x32xbf16> to vector<16x32xbf16>
      %c0_28 = arith.constant 0 : index
      %c0_29 = arith.constant 0 : index
      %49 = vector.load %arg4[%c0_28, %c0_29] : memref<1x32xf32, #tpu.memory_space<vmem>>, vector<1x32xf32>
      %50 = arith.extf %48 : vector<16x32xbf16> to vector<16x32xf32>
      %cst_30 = arith.constant dense<0.000000e+00> : vector<16xf32>
      %51 = vector.multi_reduction <add>, %50, %cst_30 [1] : vector<16x32xf32> to vector<16xf32>
      %52 = vector.shape_cast %51 : vector<16xf32> to vector<16x1xf32>
      %cst_31 = arith.constant 3.200000e+01 : f32
      %53 = vector.broadcast %cst_31 : f32 to vector<16x1xf32>
      %54 = arith.divf %52, %53 : vector<16x1xf32>
      %55 = vector.broadcast %54 : vector<16x1xf32> to vector<16x32xf32>
      %56 = arith.subf %50, %55 : vector<16x32xf32>
      %57 = arith.mulf %56, %56 : vector<16x32xf32>
      %cst_32 = arith.constant dense<0.000000e+00> : vector<16xf32>
      %58 = vector.multi_reduction <add>, %57, %cst_32 [1] : vector<16x32xf32> to vector<16xf32>
      %59 = vector.shape_cast %58 : vector<16xf32> to vector<16x1xf32>
      %cst_33 = arith.constant 3.200000e+01 : f32
      %60 = vector.broadcast %cst_33 : f32 to vector<16x1xf32>
      %61 = arith.divf %59, %60 : vector<16x1xf32>
      %62 = vector.broadcast %54 : vector<16x1xf32> to vector<16x32xf32>
      %63 = arith.subf %50, %62 : vector<16x32xf32>
      %cst_34 = arith.constant 9.99999974E-6 : f32
      %64 = vector.broadcast %cst_34 : f32 to vector<16x1xf32>
      %65 = arith.addf %61, %64 : vector<16x1xf32>
      %66 = math.rsqrt %65 : vector<16x1xf32>
      %67 = vector.broadcast %66 : vector<16x1xf32> to vector<16x32xf32>
      %68 = arith.mulf %63, %67 : vector<16x32xf32>
      %69 = vector.broadcast %49 : vector<1x32xf32> to vector<16x32xf32>
      %70 = arith.mulf %68, %69 : vector<16x32xf32>
      %71 = arith.truncf %70 : vector<16x32xf32> to vector<16x32xbf16>
      %c0_35 = arith.constant 0 : index
      %c0_36 = arith.constant 0 : index
      %72 = vector.load %arg14[%c0_35, %c0_36] : memref<16x32xbf16, #tpu.memory_space<vmem>>, vector<16x32xbf16>
      tpu.vector_store %arg14[%c0_35, %c0_36], %71 {strides = array<i32>} : memref<16x32xbf16, #tpu.memory_space<vmem>>, vector<16x32xbf16>,
    } else {
    }
    %c0 = arith.constant 0 : index
    %c0_1 = arith.constant 0 : index
    %3 = vector.load %arg14[%c0, %c0_1] : memref<16x32xbf16, #tpu.memory_space<vmem>>, vector<16x32xbf16>
    %c0_2 = arith.constant 0 : index
    %c0_3 = arith.constant 0 : index
    %4 = vector.load %arg5[%c0_2, %c0_3] : memref<16x32xf32, #tpu.memory_space<vmem>>, vector<16x32xf32>
    %c0_4 = arith.constant 0 : index
    %c0_5 = arith.constant 0 : index
    %5 = vector.load %arg6[%c0_4, %c0_5] : memref<16x32xf32, #tpu.memory_space<vmem>>, vector<16x32xf32>
    %c0_6 = arith.constant 0 : index
    %c0_7 = arith.constant 0 : index
    %6 = vector.load %arg7[%c0_6, %c0_7] : memref<16x32xf32, #tpu.memory_space<vmem>>, vector<16x32xf32>
    %c0_8 = arith.constant 0 : index
    %c0_9 = arith.constant 0 : index
    %7 = vector.load %arg8[%c0_8, %c0_9] : memref<32x32xbf16, #tpu.memory_space<vmem>>, vector<32x32xbf16>
    %cst = arith.constant dense<0.000000e+00> : vector<16x32xf32>
    %8 = tpu.matmul %3, %7, %cst {dimension_numbers = #tpu.dot_dimension_numbers<[1], [0], [0], [1], [0, 0, 1, 1], [], []>} : vector<16x32xbf16>, vector<32x32xbf16>, vector<16x32xf32> -> vector<16x32xf32>
    %9 = vector.extract_strided_slice %8 {offsets = [0, 4], sizes = [16, 28], strides = [1, 1]} : vector<16x32xf32> to vector<16x28xf32>
    %10 = vector.extract_strided_slice %8 {offsets = [0, 0], sizes = [16, 4], strides = [1, 1]} : vector<16x32xf32> to vector<16x4xf32>
    %11 = tpu.concatenate %9, %10 in 1 : vector<16x28xf32>, vector<16x4xf32> -> vector<16x32xf32>
    %12 = vector.extract_strided_slice %8 {offsets = [0, 28], sizes = [16, 4], strides = [1, 1]} : vector<16x32xf32> to vector<16x4xf32>
    %13 = vector.extract_strided_slice %8 {offsets = [0, 0], sizes = [16, 28], strides = [1, 1]} : vector<16x32xf32> to vector<16x28xf32>
    %14 = tpu.concatenate %12, %13 in 1 : vector<16x4xf32>, vector<16x28xf32> -> vector<16x32xf32>
    %15 = arith.mulf %8, %4 : vector<16x32xf32>
    %16 = arith.mulf %11, %5 : vector<16x32xf32>
    %17 = arith.addf %15, %16 : vector<16x32xf32>
    %18 = arith.mulf %14, %6 : vector<16x32xf32>
    %19 = arith.addf %17, %18 : vector<16x32xf32>
    %20 = arith.truncf %19 : vector<16x32xf32> to vector<16x32xbf16>
    %c0_10 = arith.constant 0 : index
    %c0_11 = arith.constant 0 : index
    %c0_12 = arith.constant 0 : index
    %21 = vector.load %arg11[%c0_10, %c0_11, %c0_12] : memref<1x16x32xbf16, #tpu.memory_space<vmem>>, vector<1x16x32xbf16>
    %22 = vector.shape_cast %21 : vector<1x16x32xbf16> to vector<16x32xbf16>
    %23 = vector.shape_cast %20 : vector<16x32xbf16> to vector<1x16x32xbf16>
    tpu.vector_store %arg11[%c0_10, %c0_11, %c0_12], %23 {strides = array<i32>} : memref<1x16x32xbf16, #tpu.memory_space<vmem>>, vector<1x16x32xbf16>,
    %c0_13 = arith.constant 0 : index
    %c0_14 = arith.constant 0 : index
    %24 = vector.load %arg9[%c0_13, %c0_14] : memref<32x32xbf16, #tpu.memory_space<vmem>>, vector<32x32xbf16>
    %cst_15 = arith.constant dense<0.000000e+00> : vector<16x32xf32>
    %25 = tpu.matmul %3, %24, %cst_15 {dimension_numbers = #tpu.dot_dimension_numbers<[1], [0], [0], [1], [0, 0, 1, 1], [], []>} : vector<16x32xbf16>, vector<32x32xbf16>, vector<16x32xf32> -> vector<16x32xf32>
    %26 = vector.extract_strided_slice %25 {offsets = [0, 4], sizes = [16, 28], strides = [1, 1]} : vector<16x32xf32> to vector<16x28xf32>
    %27 = vector.extract_strided_slice %25 {offsets = [0, 0], sizes = [16, 4], strides = [1, 1]} : vector<16x32xf32> to vector<16x4xf32>
    %28 = tpu.concatenate %26, %27 in 1 : vector<16x28xf32>, vector<16x4xf32> -> vector<16x32xf32>
    %29 = vector.extract_strided_slice %25 {offsets = [0, 28], sizes = [16, 4], strides = [1, 1]} : vector<16x32xf32> to vector<16x4xf32>
    %30 = vector.extract_strided_slice %25 {offsets = [0, 0], sizes = [16, 28], strides = [1, 1]} : vector<16x32xf32> to vector<16x28xf32>
    %31 = tpu.concatenate %29, %30 in 1 : vector<16x4xf32>, vector<16x28xf32> -> vector<16x32xf32>
    %32 = arith.mulf %25, %4 : vector<16x32xf32>
    %33 = arith.mulf %28, %5 : vector<16x32xf32>
    %34 = arith.addf %32, %33 : vector<16x32xf32>
    %35 = arith.mulf %31, %6 : vector<16x32xf32>
    %36 = arith.addf %34, %35 : vector<16x32xf32>
    %37 = arith.truncf %36 : vector<16x32xf32> to vector<16x32xbf16>
    %c0_16 = arith.constant 0 : index
    %c0_17 = arith.constant 0 : index
    %c0_18 = arith.constant 0 : index
    %38 = vector.load %arg12[%c0_16, %c0_17, %c0_18] : memref<1x16x32xbf16, #tpu.memory_space<vmem>>, vector<1x16x32xbf16>
    %39 = vector.shape_cast %38 : vector<1x16x32xbf16> to vector<16x32xbf16>
    %40 = vector.shape_cast %37 : vector<16x32xbf16> to vector<1x16x32xbf16>
    tpu.vector_store %arg12[%c0_16, %c0_17, %c0_18], %40 {strides = array<i32>} : memref<1x16x32xbf16, #tpu.memory_space<vmem>>, vector<1x16x32xbf16>,
    %c0_19 = arith.constant 0 : index
    %c0_20 = arith.constant 0 : index
    %41 = vector.load %arg10[%c0_19, %c0_20] : memref<32x32xbf16, #tpu.memory_space<vmem>>, vector<32x32xbf16>
    %cst_21 = arith.constant dense<0.000000e+00> : vector<16x32xf32>
    %42 = tpu.matmul %3, %41, %cst_21 {dimension_numbers = #tpu.dot_dimension_numbers<[1], [0], [0], [1], [0, 0, 1, 1], [], []>} : vector<16x32xbf16>, vector<32x32xbf16>, vector<16x32xf32> -> vector<16x32xf32>
    %43 = arith.truncf %42 : vector<16x32xf32> to vector<16x32xbf16>
    %c0_22 = arith.constant 0 : index
    %c0_23 = arith.constant 0 : index
    %c0_24 = arith.constant 0 : index
    %44 = vector.load %arg13[%c0_22, %c0_23, %c0_24] : memref<1x16x32xbf16, #tpu.memory_space<vmem>>, vector<1x16x32xbf16>
    %45 = vector.shape_cast %44 : vector<1x16x32xbf16> to vector<16x32xbf16>
    %46 = vector.shape_cast %43 : vector<16x32xbf16> to vector<1x16x32xbf16>
    tpu.vector_store %arg13[%c0_22, %c0_23, %c0_24], %46 {strides = array<i32>} : memref<1x16x32xbf16, #tpu.memory_space<vmem>>, vector<1x16x32xbf16>,
    return
  }
  func.func @transform_0(%arg0: i32, %arg1: i32, %arg2: i32) -> (i32, i32, i32) {
    %c0_i32 = arith.constant 0 : i32
    %c0_i32_0 = arith.constant 0 : i32
    return %arg0, %arg1, %c0_i32 : i32, i32, i32
  }
  func.func @transform_1(%arg0: i32, %arg1: i32, %arg2: i32) -> (i32, i32) {
    %c0_i32 = arith.constant 0 : i32
    %c0_i32_0 = arith.constant 0 : i32
    %c0_i32_1 = arith.constant 0 : i32
    return %c0_i32, %c0_i32_0 : i32, i32
  }
  func.func @transform_2(%arg0: i32, %arg1: i32, %arg2: i32) -> (i32, i32) {
    %c0_i32 = arith.constant 0 : i32
    return %arg1, %arg2 : i32, i32
  }
  func.func @transform_3(%arg0: i32, %arg1: i32, %arg2: i32) -> (i32, i32) {
    %c0_i32 = arith.constant 0 : i32
    return %arg1, %arg2 : i32, i32
  }
  func.func @transform_4(%arg0: i32, %arg1: i32, %arg2: i32) -> (i32, i32) {
    %c0_i32 = arith.constant 0 : i32
    return %arg1, %arg2 : i32, i32
  }
  func.func @transform_5(%arg0: i32, %arg1: i32, %arg2: i32) -> (i32, i32) {
    %c0_i32 = arith.constant 0 : i32
    %c0_i32_0 = arith.constant 0 : i32
    return %c0_i32, %arg2 : i32, i32
  }
  func.func @transform_6(%arg0: i32, %arg1: i32, %arg2: i32) -> (i32, i32) {
    %c0_i32 = arith.constant 0 : i32
    %c0_i32_0 = arith.constant 0 : i32
    return %c0_i32, %arg2 : i32, i32
  }
  func.func @transform_7(%arg0: i32, %arg1: i32, %arg2: i32) -> (i32, i32) {
    %c0_i32 = arith.constant 0 : i32
    %c0_i32_0 = arith.constant 0 : i32
    return %c0_i32, %arg2 : i32, i32
  }
  func.func @transform_8(%arg0: i32, %arg1: i32, %arg2: i32) -> (i32, i32, i32) {
    %c0_i32 = arith.constant 0 : i32
    return %arg0, %arg1, %arg2 : i32, i32, i32
  }
  func.func @transform_9(%arg0: i32, %arg1: i32, %arg2: i32) -> (i32, i32, i32) {
    %c0_i32 = arith.constant 0 : i32
    return %arg0, %arg1, %arg2 : i32, i32, i32
  }
  func.func @transform_10(%arg0: i32, %arg1: i32, %arg2: i32) -> (i32, i32, i32) {
    %c0_i32 = arith.constant 0 : i32
    return %arg0, %arg1, %arg2 : i32, i32, i32
  }
}

module attributes {stable_mosaic.version = 11 : i64} {
  func.func @flash_attn_kernel(%arg0: i32, %arg1: i32, %arg2: i32, %arg3: i32, %arg4: memref<1x1x16x8xbf16, #tpu.memory_space<vmem>>, %arg5: memref<1x1x16x8xbf16, #tpu.memory_space<vmem>>, %arg6: memref<1x1x16x8xbf16, #tpu.memory_space<vmem>>, %arg7: memref<1x1x16x8xbf16, #tpu.memory_space<vmem>>, %arg8: memref<16x1xf32, #tpu.memory_space<vmem>>, %arg9: memref<16x1xf32, #tpu.memory_space<vmem>>, %arg10: memref<16x8xf32, #tpu.memory_space<vmem>>) attributes {dimension_semantics = [#tpu.dimension_semantics<parallel>, #tpu.dimension_semantics<parallel>, #tpu.dimension_semantics<parallel>, #tpu.dimension_semantics<arbitrary>], iteration_bounds = array<i64: 2, 4, 1, 1>, scalar_prefetch = 0 : i64, scratch_operands = 3 : i64, tpu.core_type = #tpu.core_type<tc>, window_params = [{transform_indices = @transform_0, window_bounds = array<i64: 1, 1, 16, 8>}, {transform_indices = @transform_1, window_bounds = array<i64: 1, 1, 16, 8>}, {transform_indices = @transform_2, window_bounds = array<i64: 1, 1, 16, 8>}, {transform_indices = @transform_3, window_bounds = array<i64: 1, 1, 16, 8>}]} {
    %c0_i32 = arith.constant 0 : i32
    %0 = arith.cmpi eq, %arg3, %c0_i32 : i32
    %1 = arith.extui %0 : i1 to i32
    %c0_i32_0 = arith.constant 0 : i32
    %2 = arith.cmpi ne, %1, %c0_i32_0 : i32
    scf.if %2 {
      %cst = arith.constant 0xFF800000 : f32
      %12 = vector.broadcast %cst : f32 to vector<16x1xf32>
      %c0 = arith.constant 0 : index
      %c0_5 = arith.constant 0 : index
      %13 = vector.load %arg8[%c0, %c0_5] : memref<16x1xf32, #tpu.memory_space<vmem>>, vector<16x1xf32>
      tpu.vector_store %arg8[%c0, %c0_5], %12 {strides = array<i32>} : memref<16x1xf32, #tpu.memory_space<vmem>>, vector<16x1xf32>,
      %cst_6 = arith.constant 0.000000e+00 : f32
      %14 = vector.broadcast %cst_6 : f32 to vector<16x1xf32>
      %c0_7 = arith.constant 0 : index
      %c0_8 = arith.constant 0 : index
      %15 = vector.load %arg9[%c0_7, %c0_8] : memref<16x1xf32, #tpu.memory_space<vmem>>, vector<16x1xf32>
      tpu.vector_store %arg9[%c0_7, %c0_8], %14 {strides = array<i32>} : memref<16x1xf32, #tpu.memory_space<vmem>>, vector<16x1xf32>,
      %cst_9 = arith.constant 0.000000e+00 : f32
      %16 = vector.broadcast %cst_9 : f32 to vector<16x8xf32>
      %c0_10 = arith.constant 0 : index
      %c0_11 = arith.constant 0 : index
      %17 = vector.load %arg10[%c0_10, %c0_11] : memref<16x8xf32, #tpu.memory_space<vmem>>, vector<16x8xf32>
      tpu.vector_store %arg10[%c0_10, %c0_11], %16 {strides = array<i32>} : memref<16x8xf32, #tpu.memory_space<vmem>>, vector<16x8xf32>,
    } else {
    }
    %3 = arith.cmpi slt, %arg3, %arg2 : i32
    %4 = arith.extui %3 : i1 to i32
    %c0_i32_1 = arith.constant 0 : i32
    %5 = arith.cmpi ne, %4, %c0_i32_1 : i32
    scf.if %5 {
      %c0 = arith.constant 0 : index
      %c0_5 = arith.constant 0 : index
      %c0_6 = arith.constant 0 : index
      %c0_7 = arith.constant 0 : index
      %12 = vector.load %arg4[%c0, %c0_5, %c0_6, %c0_7] : memref<1x1x16x8xbf16, #tpu.memory_space<vmem>>, vector<1x1x16x8xbf16>
      %13 = vector.shape_cast %12 : vector<1x1x16x8xbf16> to vector<16x8xbf16>
      %c0_8 = arith.constant 0 : index
      %c0_9 = arith.constant 0 : index
      %c0_10 = arith.constant 0 : index
      %c0_11 = arith.constant 0 : index
      %14 = vector.load %arg5[%c0_8, %c0_9, %c0_10, %c0_11] : memref<1x1x16x8xbf16, #tpu.memory_space<vmem>>, vector<1x1x16x8xbf16>
      %15 = vector.shape_cast %14 : vector<1x1x16x8xbf16> to vector<16x8xbf16>
      %cst = arith.constant dense<0.000000e+00> : vector<16x16xf32>
      %16 = tpu.matmul %13, %15, %cst {dimension_numbers = #tpu.dot_dimension_numbers<[1], [1], [0], [0], [0, 0, 1, 0], [], []>} : vector<16x8xbf16>, vector<16x8xbf16>, vector<16x16xf32> -> vector<16x16xf32>
      %cst_12 = arith.constant 0.353553385 : f32
      %17 = vector.broadcast %cst_12 : f32 to vector<16x16xf32>
      %18 = arith.mulf %16, %17 : vector<16x16xf32>
      %c0_13 = arith.constant 0 : index
      %c0_14 = arith.constant 0 : index
      %19 = vector.load %arg8[%c0_13, %c0_14] : memref<16x1xf32, #tpu.memory_space<vmem>>, vector<16x1xf32>
      %cst_15 = arith.constant dense<0xFF800000> : vector<16xf32>
      %20 = vector.multi_reduction <maximumf>, %18, %cst_15 [1] : vector<16x16xf32> to vector<16xf32>
      %21 = vector.shape_cast %20 : vector<16xf32> to vector<16x1xf32>
      %22 = arith.maximumf %19, %21 : vector<16x1xf32>
      %23 = arith.subf %19, %22 : vector<16x1xf32>
      %24 = math.exp %23 : vector<16x1xf32>
      %25 = vector.broadcast %22 : vector<16x1xf32> to vector<16x16xf32>
      %26 = arith.subf %18, %25 : vector<16x16xf32>
      %27 = math.exp %26 : vector<16x16xf32>
      %c0_16 = arith.constant 0 : index
      %c0_17 = arith.constant 0 : index
      %28 = vector.load %arg9[%c0_16, %c0_17] : memref<16x1xf32, #tpu.memory_space<vmem>>, vector<16x1xf32>
      %29 = arith.mulf %24, %28 : vector<16x1xf32>
      %cst_18 = arith.constant dense<0.000000e+00> : vector<16xf32>
      %30 = vector.multi_reduction <add>, %27, %cst_18 [1] : vector<16x16xf32> to vector<16xf32>
      %31 = vector.shape_cast %30 : vector<16xf32> to vector<16x1xf32>
      %32 = arith.addf %29, %31 : vector<16x1xf32>
      %c0_19 = arith.constant 0 : index
      %c0_20 = arith.constant 0 : index
      %33 = vector.load %arg9[%c0_19, %c0_20] : memref<16x1xf32, #tpu.memory_space<vmem>>, vector<16x1xf32>
      tpu.vector_store %arg9[%c0_19, %c0_20], %32 {strides = array<i32>} : memref<16x1xf32, #tpu.memory_space<vmem>>, vector<16x1xf32>,
      %c0_21 = arith.constant 0 : index
      %c0_22 = arith.constant 0 : index
      %34 = vector.load %arg10[%c0_21, %c0_22] : memref<16x8xf32, #tpu.memory_space<vmem>>, vector<16x8xf32>
      %35 = vector.broadcast %24 : vector<16x1xf32> to vector<16x8xf32>
      %36 = arith.mulf %35, %34 : vector<16x8xf32>
      %37 = arith.truncf %27 : vector<16x16xf32> to vector<16x16xbf16>
      %c0_23 = arith.constant 0 : index
      %c0_24 = arith.constant 0 : index
      %c0_25 = arith.constant 0 : index
      %c0_26 = arith.constant 0 : index
      %38 = vector.load %arg6[%c0_23, %c0_24, %c0_25, %c0_26] : memref<1x1x16x8xbf16, #tpu.memory_space<vmem>>, vector<1x1x16x8xbf16>
      %39 = vector.shape_cast %38 : vector<1x1x16x8xbf16> to vector<16x8xbf16>
      %cst_27 = arith.constant dense<0.000000e+00> : vector<16x8xf32>
      %40 = tpu.matmul %37, %39, %cst_27 {dimension_numbers = #tpu.dot_dimension_numbers<[1], [0], [0], [1], [0, 0, 1, 1], [], []>} : vector<16x16xbf16>, vector<16x8xbf16>, vector<16x8xf32> -> vector<16x8xf32>
      %41 = arith.addf %36, %40 : vector<16x8xf32>
      %c0_28 = arith.constant 0 : index
      %c0_29 = arith.constant 0 : index
      %42 = vector.load %arg10[%c0_28, %c0_29] : memref<16x8xf32, #tpu.memory_space<vmem>>, vector<16x8xf32>
      tpu.vector_store %arg10[%c0_28, %c0_29], %41 {strides = array<i32>} : memref<16x8xf32, #tpu.memory_space<vmem>>, vector<16x8xf32>,
      %c0_30 = arith.constant 0 : index
      %c0_31 = arith.constant 0 : index
      %43 = vector.load %arg8[%c0_30, %c0_31] : memref<16x1xf32, #tpu.memory_space<vmem>>, vector<16x1xf32>
      tpu.vector_store %arg8[%c0_30, %c0_31], %22 {strides = array<i32>} : memref<16x1xf32, #tpu.memory_space<vmem>>, vector<16x1xf32>,
    } else {
    }
    %6 = arith.cmpi eq, %arg3, %arg2 : i32
    %7 = arith.extui %6 : i1 to i32
    %c0_i32_2 = arith.constant 0 : i32
    %8 = arith.cmpi ne, %7, %c0_i32_2 : i32
    scf.if %8 {
      %c0 = arith.constant 0 : index
      %c0_5 = arith.constant 0 : index
      %c0_6 = arith.constant 0 : index
      %c0_7 = arith.constant 0 : index
      %12 = vector.load %arg4[%c0, %c0_5, %c0_6, %c0_7] : memref<1x1x16x8xbf16, #tpu.memory_space<vmem>>, vector<1x1x16x8xbf16>
      %13 = vector.shape_cast %12 : vector<1x1x16x8xbf16> to vector<16x8xbf16>
      %c0_8 = arith.constant 0 : index
      %c0_9 = arith.constant 0 : index
      %c0_10 = arith.constant 0 : index
      %c0_11 = arith.constant 0 : index
      %14 = vector.load %arg5[%c0_8, %c0_9, %c0_10, %c0_11] : memref<1x1x16x8xbf16, #tpu.memory_space<vmem>>, vector<1x1x16x8xbf16>
      %15 = vector.shape_cast %14 : vector<1x1x16x8xbf16> to vector<16x8xbf16>
      %cst = arith.constant dense<0.000000e+00> : vector<16x16xf32>
      %16 = tpu.matmul %13, %15, %cst {dimension_numbers = #tpu.dot_dimension_numbers<[1], [1], [0], [0], [0, 0, 1, 0], [], []>} : vector<16x8xbf16>, vector<16x8xbf16>, vector<16x16xf32> -> vector<16x16xf32>
      %cst_12 = arith.constant 0.353553385 : f32
      %17 = vector.broadcast %cst_12 : f32 to vector<16x16xf32>
      %18 = arith.mulf %16, %17 : vector<16x16xf32>
      %19 = tpu.iota {dimensions = array<i32: 0>} : vector<16x16xi32>
      %20 = tpu.iota {dimensions = array<i32: 1>} : vector<16x16xi32>
      %21 = arith.cmpi sle, %20, %19 : vector<16x16xi32>
      %cst_13 = arith.constant -1.000000e+30 : f32
      %22 = vector.broadcast %cst_13 : f32 to vector<16x16xf32>
      %23 = arith.select %21, %18, %22 : vector<16x16xi1>, vector<16x16xf32>
      %c0_14 = arith.constant 0 : index
      %c0_15 = arith.constant 0 : index
      %24 = vector.load %arg8[%c0_14, %c0_15] : memref<16x1xf32, #tpu.memory_space<vmem>>, vector<16x1xf32>
      %cst_16 = arith.constant dense<0xFF800000> : vector<16xf32>
      %25 = vector.multi_reduction <maximumf>, %23, %cst_16 [1] : vector<16x16xf32> to vector<16xf32>
      %26 = vector.shape_cast %25 : vector<16xf32> to vector<16x1xf32>
      %27 = arith.maximumf %24, %26 : vector<16x1xf32>
      %28 = arith.subf %24, %27 : vector<16x1xf32>
      %29 = math.exp %28 : vector<16x1xf32>
      %30 = vector.broadcast %27 : vector<16x1xf32> to vector<16x16xf32>
      %31 = arith.subf %23, %30 : vector<16x16xf32>
      %32 = math.exp %31 : vector<16x16xf32>
      %c0_17 = arith.constant 0 : index
      %c0_18 = arith.constant 0 : index
      %33 = vector.load %arg9[%c0_17, %c0_18] : memref<16x1xf32, #tpu.memory_space<vmem>>, vector<16x1xf32>
      %34 = arith.mulf %29, %33 : vector<16x1xf32>
      %cst_19 = arith.constant dense<0.000000e+00> : vector<16xf32>
      %35 = vector.multi_reduction <add>, %32, %cst_19 [1] : vector<16x16xf32> to vector<16xf32>
      %36 = vector.shape_cast %35 : vector<16xf32> to vector<16x1xf32>
      %37 = arith.addf %34, %36 : vector<16x1xf32>
      %c0_20 = arith.constant 0 : index
      %c0_21 = arith.constant 0 : index
      %38 = vector.load %arg9[%c0_20, %c0_21] : memref<16x1xf32, #tpu.memory_space<vmem>>, vector<16x1xf32>
      tpu.vector_store %arg9[%c0_20, %c0_21], %37 {strides = array<i32>} : memref<16x1xf32, #tpu.memory_space<vmem>>, vector<16x1xf32>,
      %c0_22 = arith.constant 0 : index
      %c0_23 = arith.constant 0 : index
      %39 = vector.load %arg10[%c0_22, %c0_23] : memref<16x8xf32, #tpu.memory_space<vmem>>, vector<16x8xf32>
      %40 = vector.broadcast %29 : vector<16x1xf32> to vector<16x8xf32>
      %41 = arith.mulf %40, %39 : vector<16x8xf32>
      %42 = arith.truncf %32 : vector<16x16xf32> to vector<16x16xbf16>
      %c0_24 = arith.constant 0 : index
      %c0_25 = arith.constant 0 : index
      %c0_26 = arith.constant 0 : index
      %c0_27 = arith.constant 0 : index
      %43 = vector.load %arg6[%c0_24, %c0_25, %c0_26, %c0_27] : memref<1x1x16x8xbf16, #tpu.memory_space<vmem>>, vector<1x1x16x8xbf16>
      %44 = vector.shape_cast %43 : vector<1x1x16x8xbf16> to vector<16x8xbf16>
      %cst_28 = arith.constant dense<0.000000e+00> : vector<16x8xf32>
      %45 = tpu.matmul %42, %44, %cst_28 {dimension_numbers = #tpu.dot_dimension_numbers<[1], [0], [0], [1], [0, 0, 1, 1], [], []>} : vector<16x16xbf16>, vector<16x8xbf16>, vector<16x8xf32> -> vector<16x8xf32>
      %46 = arith.addf %41, %45 : vector<16x8xf32>
      %c0_29 = arith.constant 0 : index
      %c0_30 = arith.constant 0 : index
      %47 = vector.load %arg10[%c0_29, %c0_30] : memref<16x8xf32, #tpu.memory_space<vmem>>, vector<16x8xf32>
      tpu.vector_store %arg10[%c0_29, %c0_30], %46 {strides = array<i32>} : memref<16x8xf32, #tpu.memory_space<vmem>>, vector<16x8xf32>,
      %c0_31 = arith.constant 0 : index
      %c0_32 = arith.constant 0 : index
      %48 = vector.load %arg8[%c0_31, %c0_32] : memref<16x1xf32, #tpu.memory_space<vmem>>, vector<16x1xf32>
      tpu.vector_store %arg8[%c0_31, %c0_32], %27 {strides = array<i32>} : memref<16x1xf32, #tpu.memory_space<vmem>>, vector<16x1xf32>,
    } else {
    }
    %c0_i32_3 = arith.constant 0 : i32
    %9 = arith.cmpi eq, %arg3, %c0_i32_3 : i32
    %10 = arith.extui %9 : i1 to i32
    %c0_i32_4 = arith.constant 0 : i32
    %11 = arith.cmpi ne, %10, %c0_i32_4 : i32
    scf.if %11 {
      %c0 = arith.constant 0 : index
      %c0_5 = arith.constant 0 : index
      %12 = vector.load %arg9[%c0, %c0_5] : memref<16x1xf32, #tpu.memory_space<vmem>>, vector<16x1xf32>
      %13 = tpu.reciprocal %12 {approx = true} : vector<16x1xf32> -> vector<16x1xf32>
      %c0_6 = arith.constant 0 : index
      %c0_7 = arith.constant 0 : index
      %14 = vector.load %arg10[%c0_6, %c0_7] : memref<16x8xf32, #tpu.memory_space<vmem>>, vector<16x8xf32>
      %15 = vector.broadcast %13 : vector<16x1xf32> to vector<16x8xf32>
      %16 = arith.mulf %14, %15 : vector<16x8xf32>
      %17 = arith.truncf %16 : vector<16x8xf32> to vector<16x8xbf16>
      %c0_8 = arith.constant 0 : index
      %c0_9 = arith.constant 0 : index
      %c0_10 = arith.constant 0 : index
      %c0_11 = arith.constant 0 : index
      %18 = vector.load %arg7[%c0_8, %c0_9, %c0_10, %c0_11] : memref<1x1x16x8xbf16, #tpu.memory_space<vmem>>, vector<1x1x16x8xbf16>
      %19 = vector.shape_cast %18 : vector<1x1x16x8xbf16> to vector<16x8xbf16>
      %20 = vector.shape_cast %17 : vector<16x8xbf16> to vector<1x1x16x8xbf16>
      tpu.vector_store %arg7[%c0_8, %c0_9, %c0_10, %c0_11], %20 {strides = array<i32>} : memref<1x1x16x8xbf16, #tpu.memory_space<vmem>>, vector<1x1x16x8xbf16>,
    } else {
    }
    return
  }
  func.func @transform_0(%arg0: i32, %arg1: i32, %arg2: i32, %arg3: i32) -> (i32, i32, i32, i32) {
    %c0_i32 = arith.constant 0 : i32
    %c0_i32_0 = arith.constant 0 : i32
    return %arg0, %arg1, %arg2, %c0_i32 : i32, i32, i32, i32
  }
  func.func @transform_1(%arg0: i32, %arg1: i32, %arg2: i32, %arg3: i32) -> (i32, i32, i32, i32) {
    %0 = arith.minsi %arg3, %arg2 : i32
    %c0_i32 = arith.constant 0 : i32
    %c0_i32_0 = arith.constant 0 : i32
    return %arg0, %arg1, %0, %c0_i32 : i32, i32, i32, i32
  }
  func.func @transform_2(%arg0: i32, %arg1: i32, %arg2: i32, %arg3: i32) -> (i32, i32, i32, i32) {
    %0 = arith.minsi %arg3, %arg2 : i32
    %c0_i32 = arith.constant 0 : i32
    %c0_i32_0 = arith.constant 0 : i32
    return %arg0, %arg1, %0, %c0_i32 : i32, i32, i32, i32
  }
  func.func @transform_3(%arg0: i32, %arg1: i32, %arg2: i32, %arg3: i32) -> (i32, i32, i32, i32) {
    %c0_i32 = arith.constant 0 : i32
    %c0_i32_0 = arith.constant 0 : i32
    return %arg0, %arg1, %arg2, %c0_i32 : i32, i32, i32, i32
  }
}

module attributes {stable_mosaic.version = 11 : i64} {
  func.func @matmul_residual_kernel(%arg0: i32, %arg1: i32, %arg2: i32, %arg3: i32, %arg4: memref<1x16x32xbf16, #tpu.memory_space<vmem>>, %arg5: memref<1x16x32xbf16, #tpu.memory_space<vmem>>, %arg6: memref<32x32xbf16, #tpu.memory_space<vmem>>, %arg7: memref<1x16x32xbf16, #tpu.memory_space<vmem>>, %arg8: memref<16x32xf32, #tpu.memory_space<vmem>>) attributes {dimension_semantics = [#tpu.dimension_semantics<parallel>, #tpu.dimension_semantics<parallel>, #tpu.dimension_semantics<parallel>, #tpu.dimension_semantics<arbitrary>], iteration_bounds = array<i64: 2, 1, 1, 1>, scalar_prefetch = 0 : i64, scratch_operands = 1 : i64, tpu.core_type = #tpu.core_type<tc>, window_params = [{transform_indices = @transform_0, window_bounds = array<i64: 1, 16, 32>}, {transform_indices = @transform_1, window_bounds = array<i64: 1, 16, 32>}, {transform_indices = @transform_2, window_bounds = array<i64: 32, 32>}, {transform_indices = @transform_3, window_bounds = array<i64: 1, 16, 32>}]} {
    %c0_i32 = arith.constant 0 : i32
    %0 = arith.cmpi eq, %arg3, %c0_i32 : i32
    %1 = arith.extui %0 : i1 to i32
    %c0_i32_0 = arith.constant 0 : i32
    %2 = arith.cmpi ne, %1, %c0_i32_0 : i32
    scf.if %2 {
      %cst_11 = arith.constant 0.000000e+00 : f32
      %13 = vector.broadcast %cst_11 : f32 to vector<16x32xf32>
      %c0_12 = arith.constant 0 : index
      %c0_13 = arith.constant 0 : index
      %14 = vector.load %arg8[%c0_12, %c0_13] : memref<16x32xf32, #tpu.memory_space<vmem>>, vector<16x32xf32>
      tpu.vector_store %arg8[%c0_12, %c0_13], %13 {strides = array<i32>} : memref<16x32xf32, #tpu.memory_space<vmem>>, vector<16x32xf32>,
    } else {
    }
    %c0 = arith.constant 0 : index
    %c0_1 = arith.constant 0 : index
    %3 = vector.load %arg8[%c0, %c0_1] : memref<16x32xf32, #tpu.memory_space<vmem>>, vector<16x32xf32>
    %c0_2 = arith.constant 0 : index
    %c0_3 = arith.constant 0 : index
    %c0_4 = arith.constant 0 : index
    %4 = vector.load %arg4[%c0_2, %c0_3, %c0_4] : memref<1x16x32xbf16, #tpu.memory_space<vmem>>, vector<1x16x32xbf16>
    %5 = vector.shape_cast %4 : vector<1x16x32xbf16> to vector<16x32xbf16>
    %c0_5 = arith.constant 0 : index
    %c0_6 = arith.constant 0 : index
    %6 = vector.load %arg6[%c0_5, %c0_6] : memref<32x32xbf16, #tpu.memory_space<vmem>>, vector<32x32xbf16>
    %cst = arith.constant dense<0.000000e+00> : vector<16x32xf32>
    %7 = tpu.matmul %5, %6, %cst {dimension_numbers = #tpu.dot_dimension_numbers<[1], [0], [0], [1], [0, 0, 1, 1], [], []>} : vector<16x32xbf16>, vector<32x32xbf16>, vector<16x32xf32> -> vector<16x32xf32>
    %8 = arith.addf %3, %7 : vector<16x32xf32>
    %c0_7 = arith.constant 0 : index
    %c0_8 = arith.constant 0 : index
    %9 = vector.load %arg8[%c0_7, %c0_8] : memref<16x32xf32, #tpu.memory_space<vmem>>, vector<16x32xf32>
    tpu.vector_store %arg8[%c0_7, %c0_8], %8 {strides = array<i32>} : memref<16x32xf32, #tpu.memory_space<vmem>>, vector<16x32xf32>,
    %c0_i32_9 = arith.constant 0 : i32
    %10 = arith.cmpi eq, %arg3, %c0_i32_9 : i32
    %11 = arith.extui %10 : i1 to i32
    %c0_i32_10 = arith.constant 0 : i32
    %12 = arith.cmpi ne, %11, %c0_i32_10 : i32
    scf.if %12 {
      %c0_11 = arith.constant 0 : index
      %c0_12 = arith.constant 0 : index
      %13 = vector.load %arg8[%c0_11, %c0_12] : memref<16x32xf32, #tpu.memory_space<vmem>>, vector<16x32xf32>
      %c0_13 = arith.constant 0 : index
      %c0_14 = arith.constant 0 : index
      %c0_15 = arith.constant 0 : index
      %14 = vector.load %arg5[%c0_13, %c0_14, %c0_15] : memref<1x16x32xbf16, #tpu.memory_space<vmem>>, vector<1x16x32xbf16>
      %15 = vector.shape_cast %14 : vector<1x16x32xbf16> to vector<16x32xbf16>
      %16 = arith.extf %15 : vector<16x32xbf16> to vector<16x32xf32>
      %17 = arith.addf %13, %16 : vector<16x32xf32>
      %18 = arith.truncf %17 : vector<16x32xf32> to vector<16x32xbf16>
      %c0_16 = arith.constant 0 : index
      %c0_17 = arith.constant 0 : index
      %c0_18 = arith.constant 0 : index
      %19 = vector.load %arg7[%c0_16, %c0_17, %c0_18] : memref<1x16x32xbf16, #tpu.memory_space<vmem>>, vector<1x16x32xbf16>
      %20 = vector.shape_cast %19 : vector<1x16x32xbf16> to vector<16x32xbf16>
      %21 = vector.shape_cast %18 : vector<16x32xbf16> to vector<1x16x32xbf16>
      tpu.vector_store %arg7[%c0_16, %c0_17, %c0_18], %21 {strides = array<i32>} : memref<1x16x32xbf16, #tpu.memory_space<vmem>>, vector<1x16x32xbf16>,
    } else {
    }
    return
  }
  func.func @transform_0(%arg0: i32, %arg1: i32, %arg2: i32, %arg3: i32) -> (i32, i32, i32) {
    %c0_i32 = arith.constant 0 : i32
    return %arg0, %arg1, %arg3 : i32, i32, i32
  }
  func.func @transform_1(%arg0: i32, %arg1: i32, %arg2: i32, %arg3: i32) -> (i32, i32, i32) {
    %c0_i32 = arith.constant 0 : i32
    return %arg0, %arg1, %arg2 : i32, i32, i32
  }
  func.func @transform_2(%arg0: i32, %arg1: i32, %arg2: i32, %arg3: i32) -> (i32, i32) {
    %c0_i32 = arith.constant 0 : i32
    return %arg3, %arg2 : i32, i32
  }
  func.func @transform_3(%arg0: i32, %arg1: i32, %arg2: i32, %arg3: i32) -> (i32, i32, i32) {
    %c0_i32 = arith.constant 0 : i32
    return %arg0, %arg1, %arg2 : i32, i32, i32
  }
}

module attributes {stable_mosaic.version = 11 : i64} {
  func.func @ln_matmul_gelu_kernel(%arg0: i32, %arg1: i32, %arg2: i32, %arg3: memref<1x16x32xbf16, #tpu.memory_space<vmem>>, %arg4: memref<1x32xf32, #tpu.memory_space<vmem>>, %arg5: memref<32x128xbf16, #tpu.memory_space<vmem>>, %arg6: memref<1x128xf32, #tpu.memory_space<vmem>>, %arg7: memref<1x16x128xbf16, #tpu.memory_space<vmem>>, %arg8: memref<16x32xbf16, #tpu.memory_space<vmem>>) attributes {dimension_semantics = [#tpu.dimension_semantics<parallel>, #tpu.dimension_semantics<parallel>, #tpu.dimension_semantics<arbitrary>], iteration_bounds = array<i64: 2, 1, 1>, scalar_prefetch = 0 : i64, scratch_operands = 1 : i64, tpu.core_type = #tpu.core_type<tc>, window_params = [{transform_indices = @transform_0, window_bounds = array<i64: 1, 16, 32>}, {pipeline_mode = #tpu.pipeline_mode<synchronous>, transform_indices = @transform_1, window_bounds = array<i64: 1, 32>}, {transform_indices = @transform_2, window_bounds = array<i64: 32, 128>}, {transform_indices = @transform_3, window_bounds = array<i64: 1, 128>}, {transform_indices = @transform_4, window_bounds = array<i64: 1, 16, 128>}]} {
    %c0_i32 = arith.constant 0 : i32
    %0 = arith.cmpi eq, %arg2, %c0_i32 : i32
    %1 = arith.extui %0 : i1 to i32
    %c0_i32_0 = arith.constant 0 : i32
    %2 = arith.cmpi ne, %1, %c0_i32_0 : i32
    scf.if %2 {
      %c0_13 = arith.constant 0 : index
      %c0_14 = arith.constant 0 : index
      %c0_15 = arith.constant 0 : index
      %26 = vector.load %arg3[%c0_13, %c0_14, %c0_15] : memref<1x16x32xbf16, #tpu.memory_space<vmem>>, vector<1x16x32xbf16>
      %27 = vector.shape_cast %26 : vector<1x16x32xbf16> to vector<16x32xbf16>
      %c0_16 = arith.constant 0 : index
      %c0_17 = arith.constant 0 : index
      %28 = vector.load %arg4[%c0_16, %c0_17] : memref<1x32xf32, #tpu.memory_space<vmem>>, vector<1x32xf32>
      %29 = arith.extf %27 : vector<16x32xbf16> to vector<16x32xf32>
      %cst_18 = arith.constant dense<0.000000e+00> : vector<16xf32>
      %30 = vector.multi_reduction <add>, %29, %cst_18 [1] : vector<16x32xf32> to vector<16xf32>
      %31 = vector.shape_cast %30 : vector<16xf32> to vector<16x1xf32>
      %cst_19 = arith.constant 3.200000e+01 : f32
      %32 = vector.broadcast %cst_19 : f32 to vector<16x1xf32>
      %33 = arith.divf %31, %32 : vector<16x1xf32>
      %34 = vector.broadcast %33 : vector<16x1xf32> to vector<16x32xf32>
      %35 = arith.subf %29, %34 : vector<16x32xf32>
      %36 = arith.mulf %35, %35 : vector<16x32xf32>
      %cst_20 = arith.constant dense<0.000000e+00> : vector<16xf32>
      %37 = vector.multi_reduction <add>, %36, %cst_20 [1] : vector<16x32xf32> to vector<16xf32>
      %38 = vector.shape_cast %37 : vector<16xf32> to vector<16x1xf32>
      %cst_21 = arith.constant 3.200000e+01 : f32
      %39 = vector.broadcast %cst_21 : f32 to vector<16x1xf32>
      %40 = arith.divf %38, %39 : vector<16x1xf32>
      %41 = vector.broadcast %33 : vector<16x1xf32> to vector<16x32xf32>
      %42 = arith.subf %29, %41 : vector<16x32xf32>
      %cst_22 = arith.constant 9.99999974E-6 : f32
      %43 = vector.broadcast %cst_22 : f32 to vector<16x1xf32>
      %44 = arith.addf %40, %43 : vector<16x1xf32>
      %45 = math.rsqrt %44 : vector<16x1xf32>
      %46 = vector.broadcast %45 : vector<16x1xf32> to vector<16x32xf32>
      %47 = arith.mulf %42, %46 : vector<16x32xf32>
      %48 = vector.broadcast %28 : vector<1x32xf32> to vector<16x32xf32>
      %49 = arith.mulf %47, %48 : vector<16x32xf32>
      %50 = arith.truncf %49 : vector<16x32xf32> to vector<16x32xbf16>
      %c0_23 = arith.constant 0 : index
      %c0_24 = arith.constant 0 : index
      %51 = vector.load %arg8[%c0_23, %c0_24] : memref<16x32xbf16, #tpu.memory_space<vmem>>, vector<16x32xbf16>
      tpu.vector_store %arg8[%c0_23, %c0_24], %50 {strides = array<i32>} : memref<16x32xbf16, #tpu.memory_space<vmem>>, vector<16x32xbf16>,
    } else {
    }
    %c0 = arith.constant 0 : index
    %c0_1 = arith.constant 0 : index
    %3 = vector.load %arg8[%c0, %c0_1] : memref<16x32xbf16, #tpu.memory_space<vmem>>, vector<16x32xbf16>
    %c0_2 = arith.constant 0 : index
    %c0_3 = arith.constant 0 : index
    %4 = vector.load %arg5[%c0_2, %c0_3] : memref<32x128xbf16, #tpu.memory_space<vmem>>, vector<32x128xbf16>
    %cst = arith.constant dense<0.000000e+00> : vector<16x128xf32>
    %5 = tpu.matmul %3, %4, %cst {dimension_numbers = #tpu.dot_dimension_numbers<[1], [0], [0], [1], [0, 0, 1, 1], [], []>} : vector<16x32xbf16>, vector<32x128xbf16>, vector<16x128xf32> -> vector<16x128xf32>
    %c0_4 = arith.constant 0 : index
    %c0_5 = arith.constant 0 : index
    %6 = vector.load %arg6[%c0_4, %c0_5] : memref<1x128xf32, #tpu.memory_space<vmem>>, vector<1x128xf32>
    %7 = vector.broadcast %6 : vector<1x128xf32> to vector<16x128xf32>
    %8 = arith.addf %5, %7 : vector<16x128xf32>
    %9 = arith.mulf %8, %8 : vector<16x128xf32>
    %10 = arith.mulf %8, %9 : vector<16x128xf32>
    %cst_6 = arith.constant 4.471500e-02 : f32
    %11 = vector.broadcast %cst_6 : f32 to vector<16x128xf32>
    %12 = arith.mulf %11, %10 : vector<16x128xf32>
    %13 = arith.addf %8, %12 : vector<16x128xf32>
    %cst_7 = arith.constant 0.797884583 : f32
    %14 = vector.broadcast %cst_7 : f32 to vector<16x128xf32>
    %15 = arith.mulf %14, %13 : vector<16x128xf32>
    %16 = math.tanh %15 : vector<16x128xf32>
    %cst_8 = arith.constant 1.000000e+00 : f32
    %17 = vector.broadcast %cst_8 : f32 to vector<16x128xf32>
    %18 = arith.addf %17, %16 : vector<16x128xf32>
    %cst_9 = arith.constant 5.000000e-01 : f32
    %19 = vector.broadcast %cst_9 : f32 to vector<16x128xf32>
    %20 = arith.mulf %19, %18 : vector<16x128xf32>
    %21 = arith.mulf %8, %20 : vector<16x128xf32>
    %22 = arith.truncf %21 : vector<16x128xf32> to vector<16x128xbf16>
    %c0_10 = arith.constant 0 : index
    %c0_11 = arith.constant 0 : index
    %c0_12 = arith.constant 0 : index
    %23 = vector.load %arg7[%c0_10, %c0_11, %c0_12] : memref<1x16x128xbf16, #tpu.memory_space<vmem>>, vector<1x16x128xbf16>
    %24 = vector.shape_cast %23 : vector<1x16x128xbf16> to vector<16x128xbf16>
    %25 = vector.shape_cast %22 : vector<16x128xbf16> to vector<1x16x128xbf16>
    tpu.vector_store %arg7[%c0_10, %c0_11, %c0_12], %25 {strides = array<i32>} : memref<1x16x128xbf16, #tpu.memory_space<vmem>>, vector<1x16x128xbf16>,
    return
  }
  func.func @transform_0(%arg0: i32, %arg1: i32, %arg2: i32) -> (i32, i32, i32) {
    %c0_i32 = arith.constant 0 : i32
    %c0_i32_0 = arith.constant 0 : i32
    return %arg0, %arg1, %c0_i32 : i32, i32, i32
  }
  func.func @transform_1(%arg0: i32, %arg1: i32, %arg2: i32) -> (i32, i32) {
    %c0_i32 = arith.constant 0 : i32
    %c0_i32_0 = arith.constant 0 : i32
    %c0_i32_1 = arith.constant 0 : i32
    return %c0_i32, %c0_i32_0 : i32, i32
  }
  func.func @transform_2(%arg0: i32, %arg1: i32, %arg2: i32) -> (i32, i32) {
    %c0_i32 = arith.constant 0 : i32
    %c0_i32_0 = arith.constant 0 : i32
    return %c0_i32, %arg2 : i32, i32
  }
  func.func @transform_3(%arg0: i32, %arg1: i32, %arg2: i32) -> (i32, i32) {
    %c0_i32 = arith.constant 0 : i32
    %c0_i32_0 = arith.constant 0 : i32
    return %c0_i32, %arg2 : i32, i32
  }
  func.func @transform_4(%arg0: i32, %arg1: i32, %arg2: i32) -> (i32, i32, i32) {
    %c0_i32 = arith.constant 0 : i32
    return %arg0, %arg1, %arg2 : i32, i32, i32
  }
}

module attributes {stable_mosaic.version = 11 : i64} {
  func.func @matmul_bias_residual_kernel(%arg0: i32, %arg1: i32, %arg2: i32, %arg3: i32, %arg4: memref<1x16x128xbf16, #tpu.memory_space<vmem>>, %arg5: memref<1x16x32xbf16, #tpu.memory_space<vmem>>, %arg6: memref<128x32xbf16, #tpu.memory_space<vmem>>, %arg7: memref<1x32xf32, #tpu.memory_space<vmem>>, %arg8: memref<1x16x32xbf16, #tpu.memory_space<vmem>>, %arg9: memref<16x32xf32, #tpu.memory_space<vmem>>) attributes {dimension_semantics = [#tpu.dimension_semantics<parallel>, #tpu.dimension_semantics<parallel>, #tpu.dimension_semantics<parallel>, #tpu.dimension_semantics<arbitrary>], iteration_bounds = array<i64: 2, 1, 1, 1>, scalar_prefetch = 0 : i64, scratch_operands = 1 : i64, tpu.core_type = #tpu.core_type<tc>, window_params = [{transform_indices = @transform_0, window_bounds = array<i64: 1, 16, 128>}, {transform_indices = @transform_1, window_bounds = array<i64: 1, 16, 32>}, {transform_indices = @transform_2, window_bounds = array<i64: 128, 32>}, {transform_indices = @transform_3, window_bounds = array<i64: 1, 32>}, {transform_indices = @transform_4, window_bounds = array<i64: 1, 16, 32>}]} {
    %c0_i32 = arith.constant 0 : i32
    %0 = arith.cmpi eq, %arg3, %c0_i32 : i32
    %1 = arith.extui %0 : i1 to i32
    %c0_i32_0 = arith.constant 0 : i32
    %2 = arith.cmpi ne, %1, %c0_i32_0 : i32
    scf.if %2 {
      %cst_11 = arith.constant 0.000000e+00 : f32
      %13 = vector.broadcast %cst_11 : f32 to vector<16x32xf32>
      %c0_12 = arith.constant 0 : index
      %c0_13 = arith.constant 0 : index
      %14 = vector.load %arg9[%c0_12, %c0_13] : memref<16x32xf32, #tpu.memory_space<vmem>>, vector<16x32xf32>
      tpu.vector_store %arg9[%c0_12, %c0_13], %13 {strides = array<i32>} : memref<16x32xf32, #tpu.memory_space<vmem>>, vector<16x32xf32>,
    } else {
    }
    %c0 = arith.constant 0 : index
    %c0_1 = arith.constant 0 : index
    %3 = vector.load %arg9[%c0, %c0_1] : memref<16x32xf32, #tpu.memory_space<vmem>>, vector<16x32xf32>
    %c0_2 = arith.constant 0 : index
    %c0_3 = arith.constant 0 : index
    %c0_4 = arith.constant 0 : index
    %4 = vector.load %arg4[%c0_2, %c0_3, %c0_4] : memref<1x16x128xbf16, #tpu.memory_space<vmem>>, vector<1x16x128xbf16>
    %5 = vector.shape_cast %4 : vector<1x16x128xbf16> to vector<16x128xbf16>
    %c0_5 = arith.constant 0 : index
    %c0_6 = arith.constant 0 : index
    %6 = vector.load %arg6[%c0_5, %c0_6] : memref<128x32xbf16, #tpu.memory_space<vmem>>, vector<128x32xbf16>
    %cst = arith.constant dense<0.000000e+00> : vector<16x32xf32>
    %7 = tpu.matmul %5, %6, %cst {dimension_numbers = #tpu.dot_dimension_numbers<[1], [0], [0], [1], [0, 0, 1, 1], [], []>} : vector<16x128xbf16>, vector<128x32xbf16>, vector<16x32xf32> -> vector<16x32xf32>
    %8 = arith.addf %3, %7 : vector<16x32xf32>
    %c0_7 = arith.constant 0 : index
    %c0_8 = arith.constant 0 : index
    %9 = vector.load %arg9[%c0_7, %c0_8] : memref<16x32xf32, #tpu.memory_space<vmem>>, vector<16x32xf32>
    tpu.vector_store %arg9[%c0_7, %c0_8], %8 {strides = array<i32>} : memref<16x32xf32, #tpu.memory_space<vmem>>, vector<16x32xf32>,
    %c0_i32_9 = arith.constant 0 : i32
    %10 = arith.cmpi eq, %arg3, %c0_i32_9 : i32
    %11 = arith.extui %10 : i1 to i32
    %c0_i32_10 = arith.constant 0 : i32
    %12 = arith.cmpi ne, %11, %c0_i32_10 : i32
    scf.if %12 {
      %c0_11 = arith.constant 0 : index
      %c0_12 = arith.constant 0 : index
      %13 = vector.load %arg9[%c0_11, %c0_12] : memref<16x32xf32, #tpu.memory_space<vmem>>, vector<16x32xf32>
      %c0_13 = arith.constant 0 : index
      %c0_14 = arith.constant 0 : index
      %14 = vector.load %arg7[%c0_13, %c0_14] : memref<1x32xf32, #tpu.memory_space<vmem>>, vector<1x32xf32>
      %15 = vector.broadcast %14 : vector<1x32xf32> to vector<16x32xf32>
      %16 = arith.addf %13, %15 : vector<16x32xf32>
      %c0_15 = arith.constant 0 : index
      %c0_16 = arith.constant 0 : index
      %c0_17 = arith.constant 0 : index
      %17 = vector.load %arg5[%c0_15, %c0_16, %c0_17] : memref<1x16x32xbf16, #tpu.memory_space<vmem>>, vector<1x16x32xbf16>
      %18 = vector.shape_cast %17 : vector<1x16x32xbf16> to vector<16x32xbf16>
      %19 = arith.extf %18 : vector<16x32xbf16> to vector<16x32xf32>
      %20 = arith.addf %16, %19 : vector<16x32xf32>
      %21 = arith.truncf %20 : vector<16x32xf32> to vector<16x32xbf16>
      %c0_18 = arith.constant 0 : index
      %c0_19 = arith.constant 0 : index
      %c0_20 = arith.constant 0 : index
      %22 = vector.load %arg8[%c0_18, %c0_19, %c0_20] : memref<1x16x32xbf16, #tpu.memory_space<vmem>>, vector<1x16x32xbf16>
      %23 = vector.shape_cast %22 : vector<1x16x32xbf16> to vector<16x32xbf16>
      %24 = vector.shape_cast %21 : vector<16x32xbf16> to vector<1x16x32xbf16>
      tpu.vector_store %arg8[%c0_18, %c0_19, %c0_20], %24 {strides = array<i32>} : memref<1x16x32xbf16, #tpu.memory_space<vmem>>, vector<1x16x32xbf16>,
    } else {
    }
    return
  }
  func.func @transform_0(%arg0: i32, %arg1: i32, %arg2: i32, %arg3: i32) -> (i32, i32, i32) {
    %c0_i32 = arith.constant 0 : i32
    return %arg0, %arg1, %arg3 : i32, i32, i32
  }
  func.func @transform_1(%arg0: i32, %arg1: i32, %arg2: i32, %arg3: i32) -> (i32, i32, i32) {
    %c0_i32 = arith.constant 0 : i32
    return %arg0, %arg1, %arg2 : i32, i32, i32
  }
  func.func @transform_2(%arg0: i32, %arg1: i32, %arg2: i32, %arg3: i32) -> (i32, i32) {
    %c0_i32 = arith.constant 0 : i32
    return %arg3, %arg2 : i32, i32
  }
  func.func @transform_3(%arg0: i32, %arg1: i32, %arg2: i32, %arg3: i32) -> (i32, i32) {
    %c0_i32 = arith.constant 0 : i32
    %c0_i32_0 = arith.constant 0 : i32
    return %c0_i32, %arg2 : i32, i32
  }
  func.func @transform_4(%arg0: i32, %arg1: i32, %arg2: i32, %arg3: i32) -> (i32, i32, i32) {
    %c0_i32 = arith.constant 0 : i32
    return %arg0, %arg1, %arg2 : i32, i32, i32
  }
}

module attributes {stable_mosaic.version = 11 : i64} {
  func.func @log_softmax_sub_kernel(%arg0: i32, %arg1: i32, %arg2: i32, %arg3: memref<1x16x64xf32, #tpu.memory_space<vmem>>, %arg4: memref<1x16x1xf32, #tpu.memory_space<vmem>>, %arg5: memref<1x16x64xf32, #tpu.memory_space<vmem>>) attributes {dimension_semantics = [#tpu.dimension_semantics<parallel>, #tpu.dimension_semantics<parallel>, #tpu.dimension_semantics<parallel>], iteration_bounds = array<i64: 2, 1, 1>, scalar_prefetch = 0 : i64, scratch_operands = 0 : i64, tpu.core_type = #tpu.core_type<tc>, window_params = [{transform_indices = @transform_0, window_bounds = array<i64: 1, 16, 64>}, {transform_indices = @transform_1, window_bounds = array<i64: 1, 16, 1>}, {transform_indices = @transform_2, window_bounds = array<i64: 1, 16, 64>}]} {
    %c0 = arith.constant 0 : index
    %c0_0 = arith.constant 0 : index
    %c0_1 = arith.constant 0 : index
    %0 = vector.load %arg3[%c0, %c0_0, %c0_1] : memref<1x16x64xf32, #tpu.memory_space<vmem>>, vector<1x16x64xf32>
    %1 = vector.shape_cast %0 : vector<1x16x64xf32> to vector<16x64xf32>
    %c0_2 = arith.constant 0 : index
    %c0_3 = arith.constant 0 : index
    %c0_4 = arith.constant 0 : index
    %2 = vector.load %arg4[%c0_2, %c0_3, %c0_4] : memref<1x16x1xf32, #tpu.memory_space<vmem>>, vector<1x16x1xf32>
    %3 = vector.shape_cast %2 : vector<1x16x1xf32> to vector<16x1xf32>
    %4 = vector.broadcast %3 : vector<16x1xf32> to vector<16x64xf32>
    %5 = arith.subf %1, %4 : vector<16x64xf32>
    %c0_5 = arith.constant 0 : index
    %c0_6 = arith.constant 0 : index
    %c0_7 = arith.constant 0 : index
    %6 = vector.load %arg5[%c0_5, %c0_6, %c0_7] : memref<1x16x64xf32, #tpu.memory_space<vmem>>, vector<1x16x64xf32>
    %7 = vector.shape_cast %6 : vector<1x16x64xf32> to vector<16x64xf32>
    %8 = vector.shape_cast %5 : vector<16x64xf32> to vector<1x16x64xf32>
    tpu.vector_store %arg5[%c0_5, %c0_6, %c0_7], %8 {strides = array<i32>} : memref<1x16x64xf32, #tpu.memory_space<vmem>>, vector<1x16x64xf32>,
    return
  }
  func.func @transform_0(%arg0: i32, %arg1: i32, %arg2: i32) -> (i32, i32, i32) {
    %c0_i32 = arith.constant 0 : i32
    return %arg0, %arg1, %arg2 : i32, i32, i32
  }
  func.func @transform_1(%arg0: i32, %arg1: i32, %arg2: i32) -> (i32, i32, i32) {
    %c0_i32 = arith.constant 0 : i32
    %c0_i32_0 = arith.constant 0 : i32
    return %arg0, %arg1, %c0_i32 : i32, i32, i32
  }
  func.func @transform_2(%arg0: i32, %arg1: i32, %arg2: i32) -> (i32, i32, i32) {
    %c0_i32 = arith.constant 0 : i32
    return %arg0, %arg1, %arg2 : i32, i32, i32
  }
}

module attributes {stable_mosaic.version = 11 : i64} {
  func.func @final_logits_kernel(%arg0: i32, %arg1: i32, %arg2: i32, %arg3: memref<1x16x32xbf16, #tpu.memory_space<vmem>>, %arg4: memref<1x32xf32, #tpu.memory_space<vmem>>, %arg5: memref<32x64xbf16, #tpu.memory_space<vmem>>, %arg6: memref<1x64xf32, #tpu.memory_space<vmem>>, %arg7: memref<1x16x64xf32, #tpu.memory_space<vmem>>, %arg8: memref<1x16x1xf32, #tpu.memory_space<vmem>>, %arg9: memref<16x32xbf16, #tpu.memory_space<vmem>>, %arg10: memref<16x1xf32, #tpu.memory_space<vmem>>, %arg11: memref<16x1xf32, #tpu.memory_space<vmem>>) attributes {dimension_semantics = [#tpu.dimension_semantics<parallel>, #tpu.dimension_semantics<parallel>, #tpu.dimension_semantics<arbitrary>], iteration_bounds = array<i64: 2, 1, 1>, scalar_prefetch = 0 : i64, scratch_operands = 3 : i64, tpu.core_type = #tpu.core_type<tc>, window_params = [{transform_indices = @transform_0, window_bounds = array<i64: 1, 16, 32>}, {pipeline_mode = #tpu.pipeline_mode<synchronous>, transform_indices = @transform_1, window_bounds = array<i64: 1, 32>}, {transform_indices = @transform_2, window_bounds = array<i64: 32, 64>}, {transform_indices = @transform_3, window_bounds = array<i64: 1, 64>}, {transform_indices = @transform_4, window_bounds = array<i64: 1, 16, 64>}, {transform_indices = @transform_5, window_bounds = array<i64: 1, 16, 1>}]} {
    %c0_i32 = arith.constant 0 : i32
    %0 = arith.cmpi eq, %arg2, %c0_i32 : i32
    %1 = arith.extui %0 : i1 to i32
    %c0_i32_0 = arith.constant 0 : i32
    %2 = arith.cmpi ne, %1, %c0_i32_0 : i32
    scf.if %2 {
      %c0_23 = arith.constant 0 : index
      %c0_24 = arith.constant 0 : index
      %c0_25 = arith.constant 0 : index
      %39 = vector.load %arg3[%c0_23, %c0_24, %c0_25] : memref<1x16x32xbf16, #tpu.memory_space<vmem>>, vector<1x16x32xbf16>
      %40 = vector.shape_cast %39 : vector<1x16x32xbf16> to vector<16x32xbf16>
      %c0_26 = arith.constant 0 : index
      %c0_27 = arith.constant 0 : index
      %41 = vector.load %arg4[%c0_26, %c0_27] : memref<1x32xf32, #tpu.memory_space<vmem>>, vector<1x32xf32>
      %42 = arith.extf %40 : vector<16x32xbf16> to vector<16x32xf32>
      %cst_28 = arith.constant dense<0.000000e+00> : vector<16xf32>
      %43 = vector.multi_reduction <add>, %42, %cst_28 [1] : vector<16x32xf32> to vector<16xf32>
      %44 = vector.shape_cast %43 : vector<16xf32> to vector<16x1xf32>
      %cst_29 = arith.constant 3.200000e+01 : f32
      %45 = vector.broadcast %cst_29 : f32 to vector<16x1xf32>
      %46 = arith.divf %44, %45 : vector<16x1xf32>
      %47 = vector.broadcast %46 : vector<16x1xf32> to vector<16x32xf32>
      %48 = arith.subf %42, %47 : vector<16x32xf32>
      %49 = arith.mulf %48, %48 : vector<16x32xf32>
      %cst_30 = arith.constant dense<0.000000e+00> : vector<16xf32>
      %50 = vector.multi_reduction <add>, %49, %cst_30 [1] : vector<16x32xf32> to vector<16xf32>
      %51 = vector.shape_cast %50 : vector<16xf32> to vector<16x1xf32>
      %cst_31 = arith.constant 3.200000e+01 : f32
      %52 = vector.broadcast %cst_31 : f32 to vector<16x1xf32>
      %53 = arith.divf %51, %52 : vector<16x1xf32>
      %54 = vector.broadcast %46 : vector<16x1xf32> to vector<16x32xf32>
      %55 = arith.subf %42, %54 : vector<16x32xf32>
      %cst_32 = arith.constant 9.99999974E-6 : f32
      %56 = vector.broadcast %cst_32 : f32 to vector<16x1xf32>
      %57 = arith.addf %53, %56 : vector<16x1xf32>
      %58 = math.rsqrt %57 : vector<16x1xf32>
      %59 = vector.broadcast %58 : vector<16x1xf32> to vector<16x32xf32>
      %60 = arith.mulf %55, %59 : vector<16x32xf32>
      %61 = vector.broadcast %41 : vector<1x32xf32> to vector<16x32xf32>
      %62 = arith.mulf %60, %61 : vector<16x32xf32>
      %63 = arith.truncf %62 : vector<16x32xf32> to vector<16x32xbf16>
      %c0_33 = arith.constant 0 : index
      %c0_34 = arith.constant 0 : index
      %64 = vector.load %arg9[%c0_33, %c0_34] : memref<16x32xbf16, #tpu.memory_space<vmem>>, vector<16x32xbf16>
      tpu.vector_store %arg9[%c0_33, %c0_34], %63 {strides = array<i32>} : memref<16x32xbf16, #tpu.memory_space<vmem>>, vector<16x32xbf16>,
      %cst_35 = arith.constant 0xFF800000 : f32
      %65 = vector.broadcast %cst_35 : f32 to vector<16x1xf32>
      %c0_36 = arith.constant 0 : index
      %c0_37 = arith.constant 0 : index
      %66 = vector.load %arg10[%c0_36, %c0_37] : memref<16x1xf32, #tpu.memory_space<vmem>>, vector<16x1xf32>
      tpu.vector_store %arg10[%c0_36, %c0_37], %65 {strides = array<i32>} : memref<16x1xf32, #tpu.memory_space<vmem>>, vector<16x1xf32>,
      %cst_38 = arith.constant 0.000000e+00 : f32
      %67 = vector.broadcast %cst_38 : f32 to vector<16x1xf32>
      %c0_39 = arith.constant 0 : index
      %c0_40 = arith.constant 0 : index
      %68 = vector.load %arg11[%c0_39, %c0_40] : memref<16x1xf32, #tpu.memory_space<vmem>>, vector<16x1xf32>
      tpu.vector_store %arg11[%c0_39, %c0_40], %67 {strides = array<i32>} : memref<16x1xf32, #tpu.memory_space<vmem>>, vector<16x1xf32>,
    } else {
    }
    %c0 = arith.constant 0 : index
    %c0_1 = arith.constant 0 : index
    %3 = vector.load %arg9[%c0, %c0_1] : memref<16x32xbf16, #tpu.memory_space<vmem>>, vector<16x32xbf16>
    %c0_2 = arith.constant 0 : index
    %c0_3 = arith.constant 0 : index
    %4 = vector.load %arg5[%c0_2, %c0_3] : memref<32x64xbf16, #tpu.memory_space<vmem>>, vector<32x64xbf16>
    %cst = arith.constant dense<0.000000e+00> : vector<16x64xf32>
    %5 = tpu.matmul %3, %4, %cst {dimension_numbers = #tpu.dot_dimension_numbers<[1], [0], [0], [1], [0, 0, 1, 1], [], []>} : vector<16x32xbf16>, vector<32x64xbf16>, vector<16x64xf32> -> vector<16x64xf32>
    %c0_4 = arith.constant 0 : index
    %c0_5 = arith.constant 0 : index
    %6 = vector.load %arg6[%c0_4, %c0_5] : memref<1x64xf32, #tpu.memory_space<vmem>>, vector<1x64xf32>
    %7 = vector.broadcast %6 : vector<1x64xf32> to vector<16x64xf32>
    %8 = arith.addf %5, %7 : vector<16x64xf32>
    %c64_i32 = arith.constant 64 : i32
    %9 = arith.muli %arg2, %c64_i32 : i32
    %10 = tpu.iota {dimensions = array<i32: 1>} : vector<16x64xi32>
    %11 = vector.broadcast %9 : i32 to vector<16x64xi32>
    %12 = arith.addi %11, %10 : vector<16x64xi32>
    %c0_i32_6 = arith.constant 0 : i32
    %13 = vector.broadcast %c0_i32_6 : i32 to vector<16x64xi32>
    %14 = arith.cmpi eq, %12, %13 : vector<16x64xi32>
    %cst_7 = arith.constant -1.000000e+03 : f32
    %15 = vector.broadcast %cst_7 : f32 to vector<16x64xf32>
    %16 = arith.select %14, %15, %8 : vector<16x64xi1>, vector<16x64xf32>
    %c0_8 = arith.constant 0 : index
    %c0_9 = arith.constant 0 : index
    %c0_10 = arith.constant 0 : index
    %17 = vector.load %arg7[%c0_8, %c0_9, %c0_10] : memref<1x16x64xf32, #tpu.memory_space<vmem>>, vector<1x16x64xf32>
    %18 = vector.shape_cast %17 : vector<1x16x64xf32> to vector<16x64xf32>
    %19 = vector.shape_cast %16 : vector<16x64xf32> to vector<1x16x64xf32>
    tpu.vector_store %arg7[%c0_8, %c0_9, %c0_10], %19 {strides = array<i32>} : memref<1x16x64xf32, #tpu.memory_space<vmem>>, vector<1x16x64xf32>,
    %c0_11 = arith.constant 0 : index
    %c0_12 = arith.constant 0 : index
    %20 = vector.load %arg10[%c0_11, %c0_12] : memref<16x1xf32, #tpu.memory_space<vmem>>, vector<16x1xf32>
    %cst_13 = arith.constant dense<0xFF800000> : vector<16xf32>
    %21 = vector.multi_reduction <maximumf>, %16, %cst_13 [1] : vector<16x64xf32> to vector<16xf32>
    %22 = vector.shape_cast %21 : vector<16xf32> to vector<16x1xf32>
    %23 = arith.maximumf %20, %22 : vector<16x1xf32>
    %c0_14 = arith.constant 0 : index
    %c0_15 = arith.constant 0 : index
    %24 = vector.load %arg11[%c0_14, %c0_15] : memref<16x1xf32, #tpu.memory_space<vmem>>, vector<16x1xf32>
    %25 = arith.subf %20, %23 : vector<16x1xf32>
    %26 = math.exp %25 : vector<16x1xf32>
    %27 = arith.mulf %24, %26 : vector<16x1xf32>
    %28 = vector.broadcast %23 : vector<16x1xf32> to vector<16x64xf32>
    %29 = arith.subf %16, %28 : vector<16x64xf32>
    %30 = math.exp %29 : vector<16x64xf32>
    %cst_16 = arith.constant dense<0.000000e+00> : vector<16xf32>
    %31 = vector.multi_reduction <add>, %30, %cst_16 [1] : vector<16x64xf32> to vector<16xf32>
    %32 = vector.shape_cast %31 : vector<16xf32> to vector<16x1xf32>
    %33 = arith.addf %27, %32 : vector<16x1xf32>
    %c0_17 = arith.constant 0 : index
    %c0_18 = arith.constant 0 : index
    %34 = vector.load %arg11[%c0_17, %c0_18] : memref<16x1xf32, #tpu.memory_space<vmem>>, vector<16x1xf32>
    tpu.vector_store %arg11[%c0_17, %c0_18], %33 {strides = array<i32>} : memref<16x1xf32, #tpu.memory_space<vmem>>, vector<16x1xf32>,
    %c0_19 = arith.constant 0 : index
    %c0_20 = arith.constant 0 : index
    %35 = vector.load %arg10[%c0_19, %c0_20] : memref<16x1xf32, #tpu.memory_space<vmem>>, vector<16x1xf32>
    tpu.vector_store %arg10[%c0_19, %c0_20], %23 {strides = array<i32>} : memref<16x1xf32, #tpu.memory_space<vmem>>, vector<16x1xf32>,
    %c0_i32_21 = arith.constant 0 : i32
    %36 = arith.cmpi eq, %arg2, %c0_i32_21 : i32
    %37 = arith.extui %36 : i1 to i32
    %c0_i32_22 = arith.constant 0 : i32
    %38 = arith.cmpi ne, %37, %c0_i32_22 : i32
    scf.if %38 {
      %c0_23 = arith.constant 0 : index
      %c0_24 = arith.constant 0 : index
      %39 = vector.load %arg10[%c0_23, %c0_24] : memref<16x1xf32, #tpu.memory_space<vmem>>, vector<16x1xf32>
      %c0_25 = arith.constant 0 : index
      %c0_26 = arith.constant 0 : index
      %40 = vector.load %arg11[%c0_25, %c0_26] : memref<16x1xf32, #tpu.memory_space<vmem>>, vector<16x1xf32>
      %41 = math.log %40 : vector<16x1xf32>
      %42 = arith.addf %39, %41 : vector<16x1xf32>
      %c0_27 = arith.constant 0 : index
      %c0_28 = arith.constant 0 : index
      %c0_29 = arith.constant 0 : index
      %43 = vector.load %arg8[%c0_27, %c0_28, %c0_29] : memref<1x16x1xf32, #tpu.memory_space<vmem>>, vector<1x16x1xf32>
      %44 = vector.shape_cast %43 : vector<1x16x1xf32> to vector<16x1xf32>
      %45 = vector.shape_cast %42 : vector<16x1xf32> to vector<1x16x1xf32>
      tpu.vector_store %arg8[%c0_27, %c0_28, %c0_29], %45 {strides = array<i32>} : memref<1x16x1xf32, #tpu.memory_space<vmem>>, vector<1x16x1xf32>,
    } else {
    }
    return
  }
  func.func @transform_0(%arg0: i32, %arg1: i32, %arg2: i32) -> (i32, i32, i32) {
    %c0_i32 = arith.constant 0 : i32
    %c0_i32_0 = arith.constant 0 : i32
    return %arg0, %arg1, %c0_i32 : i32, i32, i32
  }
  func.func @transform_1(%arg0: i32, %arg1: i32, %arg2: i32) -> (i32, i32) {
    %c0_i32 = arith.constant 0 : i32
    %c0_i32_0 = arith.constant 0 : i32
    %c0_i32_1 = arith.constant 0 : i32
    return %c0_i32, %c0_i32_0 : i32, i32
  }
  func.func @transform_2(%arg0: i32, %arg1: i32, %arg2: i32) -> (i32, i32) {
    %c0_i32 = arith.constant 0 : i32
    %c0_i32_0 = arith.constant 0 : i32
    return %c0_i32, %arg2 : i32, i32
  }
  func.func @transform_3(%arg0: i32, %arg1: i32, %arg2: i32) -> (i32, i32) {
    %c0_i32 = arith.constant 0 : i32
    %c0_i32_0 = arith.constant 0 : i32
    return %c0_i32, %arg2 : i32, i32
  }
  func.func @transform_4(%arg0: i32, %arg1: i32, %arg2: i32) -> (i32, i32, i32) {
    %c0_i32 = arith.constant 0 : i32
    return %arg0, %arg1, %arg2 : i32, i32, i32
  }
  func.func @transform_5(%arg0: i32, %arg1: i32, %arg2: i32) -> (i32, i32, i32) {
    %c0_i32 = arith.constant 0 : i32
    %c0_i32_0 = arith.constant 0 : i32
    return %arg0, %arg1, %c0_i32 : i32, i32, i32
  }
}

</mosaic_0001>

<llo_original>
// kernel: ar_forward.15
$region0: #{ar_forward.15}
  #allocation0 [shape = 'u32[]', space=smem, size = 0x4, offset = 0x4, fixed_abs, tag = 'smem constant byte address 0x4 - core index']
  #allocation1 [shape = 'u32[144,128]{1,0:T(1,128)}', space=vmem, size = 0x12000, scoped, tag = 'internal scratch']
  #allocation2 [shape = 'bf16[16,32]{1,0:T(8,128)(2,1)}', space=vmem, size = 0x1000, scoped, tag = 'scratch operand']
  %s0 = inlined_call_operand.vmem [shape: bf16[2,16,32], index: 0, kind: input, shape index: {}]
  %s1 = inlined_call_operand.vmem [shape: f32[1,32], index: 1, kind: input, shape index: {}]
  %s2 = inlined_call_operand.vmem [shape: bf16[32,128], index: 2, kind: input, shape index: {}]
  %s3 = inlined_call_operand.vmem [shape: f32[1,128], index: 3, kind: input, shape index: {}]
  %s4 = inlined_call_operand.vmem [shape: bf16[2,16,128], index: 4, kind: output, shape index: {}]
  %s5 = sld [smem:[#allocation0]]
  $region53: #{ar_forward.15} parent=0
    _
  %s7 = ssub.s32 1, %s5
  %s8 = scalar_select 0, %s7, %s5
  loop: start=0, step=1, limit=4
  $region2: #{ar_forward.15} parent=0 // loop_pre_header
    _
  $region3: #{ar_forward.15} parent=0 // loop_header
    %s10 = sphi 0, %s14
    %p11 = scmp.ge.s32.totalorder %s10, 4
    %s17 = sphi 0, %s36
    %s18 = sphi 0, %s32
    %s19 = sphi 0, %s28
    %s20 = sphi 0, %s17
    %s21 = sphi 0, %s18
    %s22 = sphi 0, %s19
    %s23 = sphi 0, %s20
    %s24 = sphi 0, %s21
    %s25 = sphi 0, %s22
    %s41 = sphi 0, %s43
    %s44 = sphi 0, %s41
    %s45 = sphi 0, %s44
    %s61 = sphi 0, %s45
    %s65 = sphi 0, %s65
    %s67 = sphi 0, %s65
    %s68 = sphi 0, %s67
    %s82 = sphi 0, %s68
    %s88 = sphi 0, %s90
    %s91 = sphi 0, %s88
    %s92 = sphi 0, %s91
    %s108 = sphi 0, %s92
    %s114 = sphi 0, %s116
    %s117 = sphi 0, %s114
    %s118 = sphi 0, %s117
    %s134 = sphi 0, %s118
    %s144 = sphi 0, %s146
    %s147 = sphi 0, %s144
    %s148 = sphi 0, %s147
    %s164 = sphi 0, %s148
  $region4: #{ar_forward.15} parent=0 // loop_header_branch
    %13 = sbr.rel (%p11) target = $region8
  $region5: #{ar_forward.15} parent=0 // loop_body
    %s15 = ssub.s32 %s10, 1
    %s16 = ssub.s32 %s10, 2
    %s26 = sadd.s32 1, %s19
    %p27 = scmp.ge.s32.totalorder %s26, 1
    %s28 = scalar_select %p27, 0, %s26
    %s29 = sadd.s32 1, %s18
    %s30 = scalar_select %p27, %s29, %s18
    %p31 = scmp.ge.s32.totalorder %s30, 1
    %s32 = scalar_select %p31, 0, %s30
    %s33 = sadd.s32 1, %s17
    %s34 = scalar_select %p31, %s33, %s17
    %p35 = scmp.ge.s32.totalorder %s34, 2
    %s36 = scalar_select %p35, 0, %s34
    %s37 = ssub.s32 %s17, %s36
    %s38 = ssub.s32 %s18, %s32
    %s39 = sor.u32 %s37, %s38
    %p40 = scmp.eq.s32.totalorder %s39, 0
    %s42 = sadd.s32 %s41, 1
    %s43 = scalar_select %p40, %s41, %s42
    %p46 = pneg %p40
    %p47 = scmp.eq.s32.totalorder %s10, 1
    %p48 = por %p46, %p47
    %p49 = scmp.ne.s32.totalorder %s41, %s44
    %p50 = scmp.eq.s32.totalorder %s10, 0
    %p51 = por %p49, %p50
    %p52 = scmp.ne.s32.totalorder %s41, %s44
    %p53 = scmp.eq.s32.totalorder %s15, 1
    %p54 = por %p52, %p53
    %p55 = scmp.ne.s32.totalorder %s44, %s45
    %p56 = scmp.eq.s32.totalorder %s15, 0
    %p57 = por %p55, %p56
    %p58 = scmp.ne.s32.totalorder %s44, %s45
    %p59 = scmp.eq.s32.totalorder %s16, 1
    %p60 = por %p58, %p59
    %p62 = scmp.ne.s32.totalorder %s45, %s61
    %p63 = scmp.eq.s32.totalorder %s16, 0
    %p64 = por %p62, %p63
    %s66 = sadd.s32 %s65, 1
    %p69 = scmp.eq.s32.totalorder %s10, 1
    %p70 = scmp.ne.s32.totalorder %s65, %s67
    %p71 = scmp.eq.s32.totalorder %s10, 0
    %p72 = por %p70, %p71
    %p73 = scmp.ne.s32.totalorder %s65, %s67
    %p74 = scmp.eq.s32.totalorder %s15, 1
    %p75 = por %p73, %p74
    %p76 = scmp.ne.s32.totalorder %s67, %s68
    %p77 = scmp.eq.s32.totalorder %s15, 0
    %p78 = por %p76, %p77
    %p79 = scmp.ne.s32.totalorder %s67, %s68
    %p80 = scmp.eq.s32.totalorder %s16, 1
    %p81 = por %p79, %p80
    %p83 = scmp.ne.s32.totalorder %s68, %s82
    %p84 = scmp.eq.s32.totalorder %s16, 0
    %p85 = por %p83, %p84
    %s86 = ssub.s32 %s19, %s28
    %p87 = scmp.eq.s32.totalorder %s86, 0
    %s89 = sadd.s32 %s88, 1
    %s90 = scalar_select %p87, %s88, %s89
    %p93 = pneg %p87
    %p94 = scmp.eq.s32.totalorder %s10, 1
    %p95 = por %p93, %p94
    %p96 = scmp.ne.s32.totalorder %s88, %s91
    %p97 = scmp.eq.s32.totalorder %s10, 0
    %p98 = por %p96, %p97
    %p99 = scmp.ne.s32.totalorder %s88, %s91
    %p100 = scmp.eq.s32.totalorder %s15, 1
    %p101 = por %p99, %p100
    %p102 = scmp.ne.s32.totalorder %s91, %s92
    %p103 = scmp.eq.s32.totalorder %s15, 0
    %p104 = por %p102, %p103
    %p105 = scmp.ne.s32.totalorder %s91, %s92
    %p106 = scmp.eq.s32.totalorder %s16, 1
    %p107 = por %p105, %p106
    %p109 = scmp.ne.s32.totalorder %s92, %s108
    %p110 = scmp.eq.s32.totalorder %s16, 0
    %p111 = por %p109, %p110
    %s112 = ssub.s32 %s19, %s28
    %p113 = scmp.eq.s32.totalorder %s112, 0
    %s115 = sadd.s32 %s114, 1
    %s116 = scalar_select %p113, %s114, %s115
    %p119 = pneg %p113
    %p120 = scmp.eq.s32.totalorder %s10, 1
    %p121 = por %p119, %p120
    %p122 = scmp.ne.s32.totalorder %s114, %s117
    %p123 = scmp.eq.s32.totalorder %s10, 0
    %p124 = por %p122, %p123
    %p125 = scmp.ne.s32.totalorder %s114, %s117
    %p126 = scmp.eq.s32.totalorder %s15, 1
    %p127 = por %p125, %p126
    %p128 = scmp.ne.s32.totalorder %s117, %s118
    %p129 = scmp.eq.s32.totalorder %s15, 0
    %p130 = por %p128, %p129
    %p131 = scmp.ne.s32.totalorder %s117, %s118
    %p132 = scmp.eq.s32.totalorder %s16, 1
    %p133 = por %p131, %p132
    %p135 = scmp.ne.s32.totalorder %s118, %s134
    %p136 = scmp.eq.s32.totalorder %s16, 0
    %p137 = por %p135, %p136
    %s138 = ssub.s32 %s17, %s36
    %s139 = ssub.s32 %s18, %s32
    %s140 = sor.u32 %s138, %s139
    %s141 = ssub.s32 %s19, %s28
    %s142 = sor.u32 %s140, %s141
    %p143 = scmp.eq.s32.totalorder %s142, 0
    %s145 = sadd.s32 %s144, 1
    %s146 = scalar_select %p143, %s144, %s145
    %p149 = pneg %p143
    %p150 = scmp.eq.s32.totalorder %s10, 1
    %p151 = por %p149, %p150
    %p152 = scmp.ne.s32.totalorder %s144, %s147
    %p153 = scmp.eq.s32.totalorder %s10, 0
    %p154 = por %p152, %p153
    %p155 = scmp.ne.s32.totalorder %s144, %s147
    %p156 = scmp.eq.s32.totalorder %s15, 1
    %p157 = por %p155, %p156
    %p158 = scmp.ne.s32.totalorder %s147, %s148
    %p159 = scmp.eq.s32.totalorder %s15, 0
    %p160 = por %p158, %p159
    %p161 = scmp.ne.s32.totalorder %s147, %s148
    %p162 = scmp.eq.s32.totalorder %s16, 1
    %p163 = por %p161, %p162
    %p165 = scmp.ne.s32.totalorder %s148, %s164
    %p166 = scmp.eq.s32.totalorder %s16, 0
    %p167 = por %p165, %p166
    %p168 = scmp.le.s32.totalorder 1, %s10
    %p169 = scmp.lt.s32.totalorder %s10, 3
    %p170 = pnand %p168, %p169
    %p171 = pneg %p170
    // Predicated region
    $region9: #{ar_forward.15} parent=5 // pred_check
      _
    $region10: #{ar_forward.15} parent=5 // pred_check_branch
      %173 = sbr.rel (%p170) target = $region12
    $region11: #{ar_forward.15} parent=5 // pred_region
      %s174 = ssub.s32 %s10, 1
      // Predicated region
      $region13: #{ar_forward.15} parent=11 // pred_check
        %p175 = pneg %p78
      $region14: #{ar_forward.15} parent=11 // pred_check_branch
        %177 = sbr.rel (%p175) target = $region16
      $region15: #{ar_forward.15} parent=11 // pred_region
        _
      $region16: #{ar_forward.15} parent=11 // pred_fallthru
        _
      // Predicated region
      $region17: #{ar_forward.15} parent=11 // pred_check
        %p178 = pneg %p104
      $region18: #{ar_forward.15} parent=11 // pred_check_branch
        %180 = sbr.rel (%p178) target = $region20
      $region19: #{ar_forward.15} parent=11 // pred_region
        %p181 = scmp.lt.s32.totalorder %s22, 0
        %s182 = scalar_select %p181, %s22, 0
        %s183 = smul.addr %s182, 4
        %s184 = scalar_lea.vmem %s2, %s183
      $region20: #{ar_forward.15} parent=11 // pred_fallthru
        _
      // Predicated region
      $region21: #{ar_forward.15} parent=11 // pred_check
        %p185 = pneg %p130
      $region22: #{ar_forward.15} parent=11 // pred_check_branch
        %187 = sbr.rel (%p185) target = $region24
      $region23: #{ar_forward.15} parent=11 // pred_region
        %p188 = scmp.lt.s32.totalorder %s22, 0
        %s189 = scalar_select %p188, %s22, 0
        %s190 = scalar_lea.vmem %s3, %s189
      $region24: #{ar_forward.15} parent=11 // pred_fallthru
        _
    $region12: #{ar_forward.15} parent=5 // pred_fallthru
      _
    %p191 = scmp.lt.s32.totalorder %s10, 2
    // Predicated region
    $region25: #{ar_forward.15} parent=5 // pred_check
      %p192 = pneg %p191
    $region26: #{ar_forward.15} parent=5 // pred_check_branch
      %194 = sbr.rel (%p192) target = $region28
    $region27: #{ar_forward.15} parent=5 // pred_region
      // Predicated region
      $region29: #{ar_forward.15} parent=27 // pred_check
        %p195 = pneg %p51
      $region30: #{ar_forward.15} parent=27 // pred_check_branch
        %197 = sbr.rel (%p195) target = $region32
      $region31: #{ar_forward.15} parent=27 // pred_region
        %s198 = smul.u32 2, %s18
        %p199 = scmp.lt.s32.totalorder %s17, 1
        %s200 = scalar_select %p199, %s17, 1
        %p201 = scmp.lt.s32.totalorder %s198, 1
        %s202 = scalar_select %p201, %s198, 1
        %s203 = smul.addr %s200, 2
        %s204 = sadd.s32 %s202, %s203
        %s205 = smul.addr %s204, 4
        %s206 = scalar_lea.vmem %s0, %s205
        %s207 = smul.u32 2, %s18
      $region32: #{ar_forward.15} parent=27 // pred_fallthru
        _
    $region28: #{ar_forward.15} parent=5 // pred_fallthru
      _
    %p208 = scmp.le.s32.totalorder 1, %s10
    %p209 = scmp.lt.s32.totalorder %s10, 3
    %p210 = pnand %p208, %p209
    %p211 = pneg %p210
    // Predicated region
    $region33: #{ar_forward.15} parent=5 // pred_check
      _
    $region34: #{ar_forward.15} parent=5 // pred_check_branch
      %213 = sbr.rel (%p210) target = $region36
    $region35: #{ar_forward.15} parent=5 // pred_region
      %s214 = ssub.s32 %s10, 1
      %s215 = smul.u32 2, %s21
      %p216 = scmp.lt.s32.totalorder %s20, 1
      %s217 = scalar_select %p216, %s20, 1
      %p218 = scmp.lt.s32.totalorder %s215, 1
      %s219 = scalar_select %p218, %s215, 1
      %s220 = smul.addr %s217, 2
      %s221 = sadd.s32 %s219, %s220
      %s222 = smul.addr %s221, 4
      %s223 = scalar_lea.vmem %s0, %s222
      %p224 = pneg %p57
      %p225 = pneg %p54
      %p226 = pneg %p78
      %p227 = pneg %p75
      %p228 = scmp.lt.s32.totalorder %s22, 0
      %s229 = scalar_select %p228, %s22, 0
      %s230 = smul.addr %s229, 4
      %s231 = scalar_lea.vmem %s2, %s230
      %p232 = pneg %p104
      %p233 = pneg %p101
      %p234 = scmp.lt.s32.totalorder %s22, 0
      %s235 = scalar_select %p234, %s22, 0
      %s236 = scalar_lea.vmem %s3, %s235
      %p237 = pneg %p130
      %p238 = pneg %p127
      %p239 = pneg %p160
      %p240 = pneg %p157
      %s241 = smul.u32 2, %s21
      %p242 = scmp.lt.s32.totalorder %s20, 1
      %s243 = scalar_select %p242, %s20, 1
      %p244 = scmp.lt.s32.totalorder %s241, 1
      %s245 = scalar_select %p244, %s241, 1
      %p246 = scmp.lt.s32.totalorder %s22, 0
      %s247 = scalar_select %p246, %s22, 0
      %s248 = sadd.s32 %s247, %s245
      %s249 = smul.addr %s243, 2
      %s250 = sadd.s32 %s248, %s249
      %s251 = smul.addr %s250, 4
      %s252 = scalar_lea.vmem %s4, %s251
      %s253 = smul.u32 2, %s21
      %p254 = scmp.lt.s32.totalorder %s20, 1
      %s255 = scalar_select %p254, %s20, 1
      %p256 = scmp.lt.s32.totalorder %s253, 1
      %s257 = scalar_select %p256, %s253, 1
      %s258 = smul.addr %s255, 2
      %s259 = sadd.s32 %s257, %s258
      %s260 = smul.addr %s259, 4
      %s261 = scalar_lea.vmem %s0, %s260
      %s262 = smul.u32 2, %s21
      %p263 = scmp.lt.s32.totalorder %s22, 0
      %s264 = scalar_select %p263, %s22, 0
      %s265 = smul.addr %s264, 4
      %s266 = scalar_lea.vmem %s2, %s265
      %p267 = scmp.lt.s32.totalorder %s22, 0
      %s268 = scalar_select %p267, %s22, 0
      %s269 = scalar_lea.vmem %s3, %s268
      %s270 = smul.u32 2, %s21
      %p271 = scmp.lt.s32.totalorder %s20, 1
      %s272 = scalar_select %p271, %s20, 1
      %p273 = scmp.lt.s32.totalorder %s270, 1
      %s274 = scalar_select %p273, %s270, 1
      %p275 = scmp.lt.s32.totalorder %s22, 0
      %s276 = scalar_select %p275, %s22, 0
      %s277 = sadd.s32 %s276, %s274
      %s278 = smul.addr %s272, 2
      %s279 = sadd.s32 %s277, %s278
      %s280 = smul.addr %s279, 4
      %s281 = scalar_lea.vmem %s4, %s280
      %s282 = smul.u32 2, %s21
      %p284 = scmp.eq.s32.totalorder %s22, 0
      // Predicated region
      $region37: #{ar_forward.15} parent=35 // pred_check
        %p285 = pneg %p284
      $region38: #{ar_forward.15} parent=35 // pred_check_branch
        %287 = sbr.rel (%p285) target = $region40
      $region39: #{ar_forward.15} parent=35 // pred_region
        %v288 = vld [vmem:[%s261] sm:$0xf]
        %v289 = vld [vmem:[%s261 + $0x4] sm:$0xf]
        %v290 = vld [vmem:[%s1] sm:$0x1]
        %v291 = vunpack.c.l.bf16 %v288
        %v292 = vunpack.c.l.bf16 %v289
        %vm293 = vcmask 261120
        %v294 = vsel %vm293, %v291, 0.0
        %295 = vadd.xlane.f32.xlu0 %v294
        %v296 = vpop.xlane.xlu0 %295
        %v297 = vsel %vm293, %v292, 0.0
        %298 = vadd.xlane.f32.xlu0 %v297
        %v299 = vpop.xlane.xlu0 %298
        %v300 = vrcp.pop 32.0
        %v301 = vmul.f32 %v296, %v300
        %v302 = vmul.f32 %v299, %v300
        %v303 = vsub.f32 %v291, %v301
        %v304 = vsub.f32 %v292, %v302
        %v305 = vmul.f32 %v303, %v303
        %v306 = vmul.f32 %v304, %v304
        %v307 = vsel %vm293, %v305, 0.0
        %308 = vadd.xlane.f32.xlu0 %v307
        %v309 = vpop.xlane.xlu0 %308
        %v310 = vsel %vm293, %v306, 0.0
        %311 = vadd.xlane.f32.xlu0 %v310
        %v312 = vpop.xlane.xlu0 %311
        %v313 = vmul.f32 %v309, %v300
        %v314 = vmul.f32 %v312, %v300
        %v315 = vadd.f32 %v313, 1e-05
        %v316 = vadd.f32 %v314, 1e-05
        %v317 = vrsqrt.pop %v315
        %v318 = vrsqrt.pop %v316
        %v319 = vmul.f32 %v303, %v317
        %v320 = vmul.f32 %v304, %v318
        %v322 = vlaneseq
        %v323 = vshrl.u32 %v322, 7
        %v324 = vsub.s32 0, %v323
        %v325 = vrot.slane %v290, %v324
        %v327 = vmul.f32 %v319, %v325
        %v328 = vmul.f32 %v320, %v325
        %v329 = vpack.c.bf16 %v328, %v327
        %v331 = vunpack.c.l.b16 %v329
        %v332 = vunpack.c.h.b16 %v329
        %v333 = vpack.c.b16 %v331, %v331
        %v334 = vpack.c.b16 %v332, %v332
        %vm337 = vcmask 257024
        %338 = vst.msk [vmem:[#allocation2] sm:$0xf] %vm337, %v333
        %339 = vst.msk [vmem:[#allocation2 + $0x4] sm:$0xf] %vm337, %v334
      $region40: #{ar_forward.15} parent=35 // pred_fallthru
        _
      %v340 = vld [vmem:[#allocation2] sm:$0xf]
      %v341 = vld [vmem:[#allocation2 + $0x4] sm:$0xf]
      %v342 = vld [vmem:[%s266] sm:$0xf]
      %v343 = vld [vmem:[%s266 + $0x4] sm:$0xf]
      %v344 = vld [vmem:[%s266 + $0x8] sm:$0xf]
      %v345 = vld [vmem:[%s266 + $0xc] sm:$0xf]
      %v346 = vld [vmem:[%s269] sm:$0x1]
      %v348 = vlaneseq
      %v349 = vshrl.u32 %v348, 7
      %v350 = vsub.s32 0, %v349
      %v351 = vrot.slane %v346, %v350
      %v355 = vunpack.c.l.b16 %v340
      %v356 = vunpack.c.l.b16 %v341
      %v357 = vpack.c.b16 %v356, %v355
      %v362 = vunpack.c.l.b16 %v342
      %v363 = vunpack.c.l.b16 %v343
      %v364 = vunpack.c.l.b16 %v344
      %v365 = vunpack.c.l.b16 %v345
      %v366 = vpack.c.b16 %v363, %v362
      %v367 = vpack.c.b16 %v365, %v364
      %vm370 = vcmask 261120
      %v372 = vsel %vm370, %v357, 0
      %374 = vmatprep.subr.bf16.mxu0 0
      %375 = vmatpush1.bf16.msra.mxu0 0
      %376 = vmatprep.subr.bf16.mxu0 0
      %377 = vmatpush1.bf16.msra.mxu0 0
      %378 = vmatprep.subr.bf16.mxu0 0
      %379 = vmatpush1.bf16.msra.mxu0 0
      %380 = vmatprep.subr.bf16.mxu0 0
      %381 = vmatpush1.bf16.msra.mxu0 0
      %382 = vmatprep.subr.bf16.mxu0 0
      %383 = vmatpush1.bf16.msra.mxu0 0
      %384 = vmatprep.subr.bf16.mxu0 0
      %385 = vmatpush1.bf16.msra.mxu0 0
      %386 = vmatprep.subr.bf16.mxu0 0
      %387 = vmatpush1.bf16.msra.mxu0 %v367
      %388 = vmatprep.subr.bf16.mxu0 0
      %389 = vmatpush1.bf16.msra.mxu0 %v366
      %390 = vmatprep.subr.bf16.mxu0 0
      %391 = vmatpush2.bf16.msra.mxu0 0
      %392 = vmatprep.subr.bf16.mxu0 0
      %393 = vmatpush2.bf16.msra.mxu0 0
      %394 = vmatprep.subr.bf16.mxu0 0
      %395 = vmatpush2.bf16.msra.mxu0 0
      %396 = vmatprep.subr.bf16.mxu0 0
      %397 = vmatpush2.bf16.msra.mxu0 0
      %398 = vmatprep.subr.bf16.mxu0 0
      %399 = vmatpush2.bf16.msra.mxu0 0
      %400 = vmatprep.subr.bf16.mxu0 0
      %401 = vmatpush2.bf16.msra.mxu0 0
      %402 = vmatprep.subr.bf16.mxu0 0
      %403 = vmatpush2.bf16.msra.mxu0 0
      %404 = vmatprep.subr.bf16.mxu0 0
      %405 = vmatpush2.bf16.msra.mxu0 0
      %406 = vmatprep.mubr.bf16.mxu0 0
      %407 = vmatmul.mubr.bf16.gmra.mxu0 %v372
      %v408 = vpop.f32.mrf.mxu0
      %v409 = vadd.f32 %v351, %v408
      %v410 = vpop.f32.mrf.mxu0
      %v411 = vpop.f32.mrf.mxu0
      %v412 = vadd.f32 %v351, %v411
      %v413 = vpop.f32.mrf.mxu0
      %414 = vdwg.mxu0
      %v415 = vmul.f32 %v409, %v409
      %v416 = vmul.f32 %v412, %v412
      %v417 = vmul.f32 %v409, %v415
      %v418 = vmul.f32 %v412, %v416
      %v419 = vmul.f32 %v417, 0.044715
      %v420 = vmul.f32 %v418, 0.044715
      %v421 = vadd.f32 %v409, %v419
      %v422 = vadd.f32 %v412, %v420
      %v423 = vmul.f32 %v421, 0.7978846
      %v424 = vmul.f32 %v422, 0.7978846
      %v425 = vtanh.pop %v423
      %v426 = vtanh.pop %v424
      %v427 = vadd.f32 %v425, 1.0
      %v428 = vadd.f32 %v426, 1.0
      %v429 = vmul.f32 %v427, 0.5
      %v430 = vmul.f32 %v428, 0.5
      %v431 = vmul.f32 %v409, %v429
      %v432 = vmul.f32 %v412, %v430
      %v433 = vpack.c.bf16 %v432, %v431
      %v435 = vunpack.c.l.b16 %v433
      %v436 = vunpack.c.h.b16 %v433
      %v437 = vpack.c.b16 %v435, %v435
      %v438 = vpack.c.b16 %v436, %v436
      %441 = vst [vmem:[%s281] sm:$0xf] %v437
      %442 = vst [vmem:[%s281 + $0x4] sm:$0xf] %v438
      %s443 = smul.u32 2, %s21
      %p444 = scmp.lt.s32.totalorder %s20, 1
      %s445 = scalar_select %p444, %s20, 1
      %p446 = scmp.lt.s32.totalorder %s443, 1
      %s447 = scalar_select %p446, %s443, 1
      %p448 = scmp.lt.s32.totalorder %s22, 0
      %s449 = scalar_select %p448, %s22, 0
      %s450 = sadd.s32 %s449, %s447
      %s451 = smul.addr %s445, 2
      %s452 = sadd.s32 %s450, %s451
      %s453 = smul.addr %s452, 4
      %s454 = scalar_lea.vmem %s4, %s453
      // Predicated region
      $region41: #{ar_forward.15} parent=35 // pred_check
        %p455 = pneg %p157
      $region42: #{ar_forward.15} parent=35 // pred_check_branch
        %457 = sbr.rel (%p455) target = $region44
      $region43: #{ar_forward.15} parent=35 // pred_region
        %s458 = smul.u32 2, %s21
      $region44: #{ar_forward.15} parent=35 // pred_fallthru
        _
    $region36: #{ar_forward.15} parent=5 // pred_fallthru
      _
    %p459 = scmp.le.s32.totalorder 2, %s10
    // Predicated region
    $region45: #{ar_forward.15} parent=5 // pred_check
      %p460 = pneg %p459
    $region46: #{ar_forward.15} parent=5 // pred_check_branch
      %462 = sbr.rel (%p460) target = $region48
    $region47: #{ar_forward.15} parent=5 // pred_region
      %s463 = ssub.s32 %s10, 2
      // Predicated region
      $region49: #{ar_forward.15} parent=47 // pred_check
        %p464 = pneg %p163
      $region50: #{ar_forward.15} parent=47 // pred_check_branch
        %466 = sbr.rel (%p464) target = $region52
      $region51: #{ar_forward.15} parent=47 // pred_region
        %s467 = smul.u32 2, %s24
        %p468 = scmp.lt.s32.totalorder %s23, 1
        %s469 = scalar_select %p468, %s23, 1
        %p470 = scmp.lt.s32.totalorder %s467, 1
        %s471 = scalar_select %p470, %s467, 1
        %p472 = scmp.lt.s32.totalorder %s25, 0
        %s473 = scalar_select %p472, %s25, 0
        %s474 = sadd.s32 %s473, %s471
        %s475 = smul.addr %s469, 2
        %s476 = sadd.s32 %s474, %s475
        %s477 = smul.addr %s476, 4
        %s478 = scalar_lea.vmem %s4, %s477
      $region52: #{ar_forward.15} parent=47 // pred_fallthru
        _
    $region48: #{ar_forward.15} parent=5 // pred_fallthru
      _
  $region6: #{ar_forward.15} parent=0 // loop_footer
    %s14 = sadd.s32 1, %s10
  $region7: #{ar_forward.15} parent=0 // loop_footer_branch
    %9 = sbr.rel target = $region3
  $region8: #{ar_forward.15} parent=0 // loop_exit
    _

// kernel: ar_forward.14
$region0: #{ar_forward.14}
  #allocation0 [shape = 'u32[]', space=smem, size = 0x4, offset = 0x4, fixed_abs, tag = 'smem constant byte address 0x4 - core index']
  #allocation1 [shape = 'u32[144,128]{1,0:T(1,128)}', space=vmem, size = 0x12000, scoped, tag = 'internal scratch']
  #allocation2 [shape = 'f32[16,32]{1,0:T(8,128)}', space=vmem, size = 0x2000, scoped, tag = 'scratch operand']
  %s0 = inlined_call_operand.vmem [shape: bf16[2,16,32], index: 0, kind: input, shape index: {}]
  %s1 = inlined_call_operand.vmem [shape: bf16[2,16,32], index: 1, kind: input, shape index: {}]
  %s2 = inlined_call_operand.vmem [shape: bf16[32,32], index: 2, kind: input, shape index: {}]
  %s3 = inlined_call_operand.vmem [shape: bf16[2,16,32], index: 3, kind: output, shape index: {}]
  %s4 = sld [smem:[#allocation0]]
  $region53: #{ar_forward.14} parent=0
    _
  %s6 = ssub.s32 1, %s4
  %s7 = scalar_select 0, %s6, %s4
  loop: start=0, step=1, limit=4
  $region2: #{ar_forward.14} parent=0 // loop_pre_header
    _
  $region3: #{ar_forward.14} parent=0 // loop_header
    %s9 = sphi 0, %s13
    %p10 = scmp.ge.s32.totalorder %s9, 4
    %s16 = sphi 0, %s42
    %s17 = sphi 0, %s38
    %s18 = sphi 0, %s34
    %s19 = sphi 0, %s30
    %s20 = sphi 0, %s16
    %s21 = sphi 0, %s17
    %s22 = sphi 0, %s18
    %s23 = sphi 0, %s19
    %s24 = sphi 0, %s20
    %s25 = sphi 0, %s21
    %s26 = sphi 0, %s22
    %s27 = sphi 0, %s23
    %s49 = sphi 0, %s51
    %s52 = sphi 0, %s49
    %s53 = sphi 0, %s52
    %s69 = sphi 0, %s53
    %s79 = sphi 0, %s81
    %s82 = sphi 0, %s79
    %s83 = sphi 0, %s82
    %s99 = sphi 0, %s83
    %s107 = sphi 0, %s109
    %s110 = sphi 0, %s107
    %s111 = sphi 0, %s110
    %s127 = sphi 0, %s111
    %s137 = sphi 0, %s139
    %s140 = sphi 0, %s137
    %s141 = sphi 0, %s140
    %s157 = sphi 0, %s141
  $region4: #{ar_forward.14} parent=0 // loop_header_branch
    %12 = sbr.rel (%p10) target = $region8
  $region5: #{ar_forward.14} parent=0 // loop_body
    %s14 = ssub.s32 %s9, 1
    %s15 = ssub.s32 %s9, 2
    %s28 = sadd.s32 1, %s19
    %p29 = scmp.ge.s32.totalorder %s28, 1
    %s30 = scalar_select %p29, 0, %s28
    %s31 = sadd.s32 1, %s18
    %s32 = scalar_select %p29, %s31, %s18
    %p33 = scmp.ge.s32.totalorder %s32, 1
    %s34 = scalar_select %p33, 0, %s32
    %s35 = sadd.s32 1, %s17
    %s36 = scalar_select %p33, %s35, %s17
    %p37 = scmp.ge.s32.totalorder %s36, 1
    %s38 = scalar_select %p37, 0, %s36
    %s39 = sadd.s32 1, %s16
    %s40 = scalar_select %p37, %s39, %s16
    %p41 = scmp.ge.s32.totalorder %s40, 2
    %s42 = scalar_select %p41, 0, %s40
    %s43 = ssub.s32 %s16, %s42
    %s44 = ssub.s32 %s17, %s38
    %s45 = sor.u32 %s43, %s44
    %s46 = ssub.s32 %s19, %s30
    %s47 = sor.u32 %s45, %s46
    %p48 = scmp.eq.s32.totalorder %s47, 0
    %s50 = sadd.s32 %s49, 1
    %s51 = scalar_select %p48, %s49, %s50
    %p54 = pneg %p48
    %p55 = scmp.eq.s32.totalorder %s9, 1
    %p56 = por %p54, %p55
    %p57 = scmp.ne.s32.totalorder %s49, %s52
    %p58 = scmp.eq.s32.totalorder %s9, 0
    %p59 = por %p57, %p58
    %p60 = scmp.ne.s32.totalorder %s49, %s52
    %p61 = scmp.eq.s32.totalorder %s14, 1
    %p62 = por %p60, %p61
    %p63 = scmp.ne.s32.totalorder %s52, %s53
    %p64 = scmp.eq.s32.totalorder %s14, 0
    %p65 = por %p63, %p64
    %p66 = scmp.ne.s32.totalorder %s52, %s53
    %p67 = scmp.eq.s32.totalorder %s15, 1
    %p68 = por %p66, %p67
    %p70 = scmp.ne.s32.totalorder %s53, %s69
    %p71 = scmp.eq.s32.totalorder %s15, 0
    %p72 = por %p70, %p71
    %s73 = ssub.s32 %s16, %s42
    %s74 = ssub.s32 %s17, %s38
    %s75 = sor.u32 %s73, %s74
    %s76 = ssub.s32 %s18, %s34
    %s77 = sor.u32 %s75, %s76
    %p78 = scmp.eq.s32.totalorder %s77, 0
    %s80 = sadd.s32 %s79, 1
    %s81 = scalar_select %p78, %s79, %s80
    %p84 = pneg %p78
    %p85 = scmp.eq.s32.totalorder %s9, 1
    %p86 = por %p84, %p85
    %p87 = scmp.ne.s32.totalorder %s79, %s82
    %p88 = scmp.eq.s32.totalorder %s9, 0
    %p89 = por %p87, %p88
    %p90 = scmp.ne.s32.totalorder %s79, %s82
    %p91 = scmp.eq.s32.totalorder %s14, 1
    %p92 = por %p90, %p91
    %p93 = scmp.ne.s32.totalorder %s82, %s83
    %p94 = scmp.eq.s32.totalorder %s14, 0
    %p95 = por %p93, %p94
    %p96 = scmp.ne.s32.totalorder %s82, %s83
    %p97 = scmp.eq.s32.totalorder %s15, 1
    %p98 = por %p96, %p97
    %p100 = scmp.ne.s32.totalorder %s83, %s99
    %p101 = scmp.eq.s32.totalorder %s15, 0
    %p102 = por %p100, %p101
    %s103 = ssub.s32 %s19, %s30
    %s104 = ssub.s32 %s18, %s34
    %s105 = sor.u32 %s103, %s104
    %p106 = scmp.eq.s32.totalorder %s105, 0
    %s108 = sadd.s32 %s107, 1
    %s109 = scalar_select %p106, %s107, %s108
    %p112 = pneg %p106
    %p113 = scmp.eq.s32.totalorder %s9, 1
    %p114 = por %p112, %p113
    %p115 = scmp.ne.s32.totalorder %s107, %s110
    %p116 = scmp.eq.s32.totalorder %s9, 0
    %p117 = por %p115, %p116
    %p118 = scmp.ne.s32.totalorder %s107, %s110
    %p119 = scmp.eq.s32.totalorder %s14, 1
    %p120 = por %p118, %p119
    %p121 = scmp.ne.s32.totalorder %s110, %s111
    %p122 = scmp.eq.s32.totalorder %s14, 0
    %p123 = por %p121, %p122
    %p124 = scmp.ne.s32.totalorder %s110, %s111
    %p125 = scmp.eq.s32.totalorder %s15, 1
    %p126 = por %p124, %p125
    %p128 = scmp.ne.s32.totalorder %s111, %s127
    %p129 = scmp.eq.s32.totalorder %s15, 0
    %p130 = por %p128, %p129
    %s131 = ssub.s32 %s16, %s42
    %s132 = ssub.s32 %s17, %s38
    %s133 = sor.u32 %s131, %s132
    %s134 = ssub.s32 %s18, %s34
    %s135 = sor.u32 %s133, %s134
    %p136 = scmp.eq.s32.totalorder %s135, 0
    %s138 = sadd.s32 %s137, 1
    %s139 = scalar_select %p136, %s137, %s138
    %p142 = pneg %p136
    %p143 = scmp.eq.s32.totalorder %s9, 1
    %p144 = por %p142, %p143
    %p145 = scmp.ne.s32.totalorder %s137, %s140
    %p146 = scmp.eq.s32.totalorder %s9, 0
    %p147 = por %p145, %p146
    %p148 = scmp.ne.s32.totalorder %s137, %s140
    %p149 = scmp.eq.s32.totalorder %s14, 1
    %p150 = por %p148, %p149
    %p151 = scmp.ne.s32.totalorder %s140, %s141
    %p152 = scmp.eq.s32.totalorder %s14, 0
    %p153 = por %p151, %p152
    %p154 = scmp.ne.s32.totalorder %s140, %s141
    %p155 = scmp.eq.s32.totalorder %s15, 1
    %p156 = por %p154, %p155
    %p158 = scmp.ne.s32.totalorder %s141, %s157
    %p159 = scmp.eq.s32.totalorder %s15, 0
    %p160 = por %p158, %p159
    %p161 = scmp.le.s32.totalorder 1, %s9
    %p162 = scmp.lt.s32.totalorder %s9, 3
    %p163 = pnand %p161, %p162
    %p164 = pneg %p163
    // Predicated region
    $region9: #{ar_forward.14} parent=5 // pred_check
      _
    $region10: #{ar_forward.14} parent=5 // pred_check_branch
      %166 = sbr.rel (%p163) target = $region12
    $region11: #{ar_forward.14} parent=5 // pred_region
      %s167 = ssub.s32 %s9, 1
      // Predicated region
      $region13: #{ar_forward.14} parent=11 // pred_check
        %p168 = pneg %p123
      $region14: #{ar_forward.14} parent=11 // pred_check_branch
        %170 = sbr.rel (%p168) target = $region16
      $region15: #{ar_forward.14} parent=11 // pred_region
        %s171 = smul.u32 4, %s23
        %p172 = scmp.lt.s32.totalorder %s171, 3
        %s173 = scalar_select %p172, %s171, 3
        %p174 = scmp.lt.s32.totalorder %s22, 0
        %s175 = scalar_select %p174, %s22, 0
        %s176 = sadd.s32 %s175, %s173
        %s177 = smul.addr %s176, 4
        %s178 = scalar_lea.vmem %s2, %s177
        %s179 = smul.u32 4, %s23
      $region16: #{ar_forward.14} parent=11 // pred_fallthru
        _
    $region12: #{ar_forward.14} parent=5 // pred_fallthru
      _
    %p180 = scmp.lt.s32.totalorder %s9, 2
    // Predicated region
    $region17: #{ar_forward.14} parent=5 // pred_check
      %p181 = pneg %p180
    $region18: #{ar_forward.14} parent=5 // pred_check_branch
      %183 = sbr.rel (%p181) target = $region20
    $region19: #{ar_forward.14} parent=5 // pred_region
      // Predicated region
      $region21: #{ar_forward.14} parent=19 // pred_check
        %p184 = pneg %p59
      $region22: #{ar_forward.14} parent=19 // pred_check_branch
        %186 = sbr.rel (%p184) target = $region24
      $region23: #{ar_forward.14} parent=19 // pred_region
        %s187 = smul.u32 2, %s17
        %p188 = scmp.lt.s32.totalorder %s16, 1
        %s189 = scalar_select %p188, %s16, 1
        %p190 = scmp.lt.s32.totalorder %s187, 1
        %s191 = scalar_select %p190, %s187, 1
        %p192 = scmp.lt.s32.totalorder %s19, 0
        %s193 = scalar_select %p192, %s19, 0
        %s194 = sadd.s32 %s193, %s191
        %s195 = smul.addr %s189, 2
        %s196 = sadd.s32 %s194, %s195
        %s197 = smul.addr %s196, 4
        %s198 = scalar_lea.vmem %s0, %s197
        %s199 = smul.u32 2, %s17
      $region24: #{ar_forward.14} parent=19 // pred_fallthru
        _
      // Predicated region
      $region25: #{ar_forward.14} parent=19 // pred_check
        %p200 = pneg %p89
      $region26: #{ar_forward.14} parent=19 // pred_check_branch
        %202 = sbr.rel (%p200) target = $region28
      $region27: #{ar_forward.14} parent=19 // pred_region
        %s203 = smul.u32 2, %s17
        %p204 = scmp.lt.s32.totalorder %s16, 1
        %s205 = scalar_select %p204, %s16, 1
        %p206 = scmp.lt.s32.totalorder %s203, 1
        %s207 = scalar_select %p206, %s203, 1
        %p208 = scmp.lt.s32.totalorder %s18, 0
        %s209 = scalar_select %p208, %s18, 0
        %s210 = sadd.s32 %s209, %s207
        %s211 = smul.addr %s205, 2
        %s212 = sadd.s32 %s210, %s211
        %s213 = smul.addr %s212, 4
        %s214 = scalar_lea.vmem %s1, %s213
        %s215 = smul.u32 2, %s17
      $region28: #{ar_forward.14} parent=19 // pred_fallthru
        _
    $region20: #{ar_forward.14} parent=5 // pred_fallthru
      _
    %p216 = scmp.le.s32.totalorder 1, %s9
    %p217 = scmp.lt.s32.totalorder %s9, 3
    %p218 = pnand %p216, %p217
    %p219 = pneg %p218
    // Predicated region
    $region29: #{ar_forward.14} parent=5 // pred_check
      _
    $region30: #{ar_forward.14} parent=5 // pred_check_branch
      %221 = sbr.rel (%p218) target = $region32
    $region31: #{ar_forward.14} parent=5 // pred_region
      %s222 = ssub.s32 %s9, 1
      %s223 = smul.u32 2, %s21
      %p224 = scmp.lt.s32.totalorder %s20, 1
      %s225 = scalar_select %p224, %s20, 1
      %p226 = scmp.lt.s32.totalorder %s223, 1
      %s227 = scalar_select %p226, %s223, 1
      %p228 = scmp.lt.s32.totalorder %s23, 0
      %s229 = scalar_select %p228, %s23, 0
      %s230 = sadd.s32 %s229, %s227
      %s231 = smul.addr %s225, 2
      %s232 = sadd.s32 %s230, %s231
      %s233 = smul.addr %s232, 4
      %s234 = scalar_lea.vmem %s0, %s233
      %p235 = pneg %p65
      %p236 = pneg %p62
      %s237 = smul.u32 2, %s21
      %p238 = scmp.lt.s32.totalorder %s20, 1
      %s239 = scalar_select %p238, %s20, 1
      %p240 = scmp.lt.s32.totalorder %s237, 1
      %s241 = scalar_select %p240, %s237, 1
      %p242 = scmp.lt.s32.totalorder %s22, 0
      %s243 = scalar_select %p242, %s22, 0
      %s244 = sadd.s32 %s243, %s241
      %s245 = smul.addr %s239, 2
      %s246 = sadd.s32 %s244, %s245
      %s247 = smul.addr %s246, 4
      %s248 = scalar_lea.vmem %s1, %s247
      %p249 = pneg %p95
      %p250 = pneg %p92
      %s251 = smul.u32 4, %s23
      %p252 = scmp.lt.s32.totalorder %s251, 3
      %s253 = scalar_select %p252, %s251, 3
      %p254 = scmp.lt.s32.totalorder %s22, 0
      %s255 = scalar_select %p254, %s22, 0
      %s256 = sadd.s32 %s255, %s253
      %s257 = smul.addr %s256, 4
      %s258 = scalar_lea.vmem %s2, %s257
      %p259 = pneg %p123
      %p260 = pneg %p120
      %p261 = pneg %p153
      %p262 = pneg %p150
      %s263 = smul.u32 2, %s21
      %p264 = scmp.lt.s32.totalorder %s20, 1
      %s265 = scalar_select %p264, %s20, 1
      %p266 = scmp.lt.s32.totalorder %s263, 1
      %s267 = scalar_select %p266, %s263, 1
      %p268 = scmp.lt.s32.totalorder %s22, 0
      %s269 = scalar_select %p268, %s22, 0
      %s270 = sadd.s32 %s269, %s267
      %s271 = smul.addr %s265, 2
      %s272 = sadd.s32 %s270, %s271
      %s273 = smul.addr %s272, 4
      %s274 = scalar_lea.vmem %s3, %s273
      %s275 = smul.u32 2, %s21
      %p276 = scmp.lt.s32.totalorder %s20, 1
      %s277 = scalar_select %p276, %s20, 1
      %p278 = scmp.lt.s32.totalorder %s275, 1
      %s279 = scalar_select %p278, %s275, 1
      %p280 = scmp.lt.s32.totalorder %s23, 0
      %s281 = scalar_select %p280, %s23, 0
      %s282 = sadd.s32 %s281, %s279
      %s283 = smul.addr %s277, 2
      %s284 = sadd.s32 %s282, %s283
      %s285 = smul.addr %s284, 4
      %s286 = scalar_lea.vmem %s0, %s285
      %s287 = smul.u32 2, %s21
      %s288 = smul.u32 2, %s21
      %p289 = scmp.lt.s32.totalorder %s20, 1
      %s290 = scalar_select %p289, %s20, 1
      %p291 = scmp.lt.s32.totalorder %s288, 1
      %s292 = scalar_select %p291, %s288, 1
      %p293 = scmp.lt.s32.totalorder %s22, 0
      %s294 = scalar_select %p293, %s22, 0
      %s295 = sadd.s32 %s294, %s292
      %s296 = smul.addr %s290, 2
      %s297 = sadd.s32 %s295, %s296
      %s298 = smul.addr %s297, 4
      %s299 = scalar_lea.vmem %s1, %s298
      %s300 = smul.u32 2, %s21
      %s301 = smul.u32 4, %s23
      %p302 = scmp.lt.s32.totalorder %s301, 3
      %s303 = scalar_select %p302, %s301, 3
      %p304 = scmp.lt.s32.totalorder %s22, 0
      %s305 = scalar_select %p304, %s22, 0
      %s306 = sadd.s32 %s305, %s303
      %s307 = smul.addr %s306, 4
      %s308 = scalar_lea.vmem %s2, %s307
      %s309 = smul.u32 4, %s23
      %s310 = smul.u32 2, %s21
      %p311 = scmp.lt.s32.totalorder %s20, 1
      %s312 = scalar_select %p311, %s20, 1
      %p313 = scmp.lt.s32.totalorder %s310, 1
      %s314 = scalar_select %p313, %s310, 1
      %p315 = scmp.lt.s32.totalorder %s22, 0
      %s316 = scalar_select %p315, %s22, 0
      %s317 = sadd.s32 %s316, %s314
      %s318 = smul.addr %s312, 2
      %s319 = sadd.s32 %s317, %s318
      %s320 = smul.addr %s319, 4
      %s321 = scalar_lea.vmem %s3, %s320
      %s322 = smul.u32 2, %s21
      %p324 = scmp.eq.s32.totalorder %s23, 0
      // Predicated region
      $region33: #{ar_forward.14} parent=31 // pred_check
        %p325 = pneg %p324
      $region34: #{ar_forward.14} parent=31 // pred_check_branch
        %327 = sbr.rel (%p325) target = $region36
      $region35: #{ar_forward.14} parent=31 // pred_region
        %vm328 = vcmask 261120
        %329 = vst.msk [vmem:[#allocation2] sm:$0xff] %vm328, 0.0
        %330 = vst.msk [vmem:[#allocation2 + $0x8] sm:$0xff] %vm328, 0.0
      $region36: #{ar_forward.14} parent=31 // pred_fallthru
        _
      %v331 = vld [vmem:[#allocation2] sm:$0xff]
      %v332 = vld [vmem:[#allocation2 + $0x8] sm:$0xff]
      %v333 = vld [vmem:[%s286] sm:$0xf]
      %v334 = vld [vmem:[%s286 + $0x4] sm:$0xf]
      %v335 = vld [vmem:[%s308] sm:$0xf]
      %v336 = vld [vmem:[%s308 + $0x4] sm:$0xf]
      %v337 = vld [vmem:[%s308 + $0x8] sm:$0xf]
      %v338 = vld [vmem:[%s308 + $0xc] sm:$0xf]
      %v341 = vunpack.c.l.b16 %v333
      %v342 = vunpack.c.l.b16 %v334
      %v343 = vpack.c.b16 %v342, %v341
      %v348 = vunpack.c.l.b16 %v335
      %v349 = vunpack.c.l.b16 %v336
      %v350 = vunpack.c.l.b16 %v337
      %v351 = vunpack.c.l.b16 %v338
      %v352 = vpack.c.b16 %v349, %v348
      %v353 = vpack.c.b16 %v351, %v350
      %vm356 = vcmask 261120
      %v358 = vsel %vm356, %v343, 0
      %360 = vmatprep.subr.bf16.mxu0 0
      %361 = vmatpush1.bf16.msra.mxu0 0
      %362 = vmatprep.subr.bf16.mxu0 0
      %363 = vmatpush1.bf16.msra.mxu0 0
      %364 = vmatprep.subr.bf16.mxu0 0
      %365 = vmatpush1.bf16.msra.mxu0 0
      %366 = vmatprep.subr.bf16.mxu0 0
      %367 = vmatpush1.bf16.msra.mxu0 0
      %368 = vmatprep.subr.bf16.mxu0 0
      %369 = vmatpush1.bf16.msra.mxu0 0
      %370 = vmatprep.subr.bf16.mxu0 0
      %371 = vmatpush1.bf16.msra.mxu0 0
      %372 = vmatprep.subr.bf16.mxu0 0
      %373 = vmatpush1.bf16.msra.mxu0 %v353
      %374 = vmatprep.subr.bf16.mxu0 0
      %375 = vmatpush1.bf16.msra.mxu0 %v352
      %376 = vmatprep.subr.bf16.mxu0 0
      %377 = vmatpush2.bf16.msra.mxu0 0
      %378 = vmatprep.subr.bf16.mxu0 0
      %379 = vmatpush2.bf16.msra.mxu0 0
      %380 = vmatprep.subr.bf16.mxu0 0
      %381 = vmatpush2.bf16.msra.mxu0 0
      %382 = vmatprep.subr.bf16.mxu0 0
      %383 = vmatpush2.bf16.msra.mxu0 0
      %384 = vmatprep.subr.bf16.mxu0 0
      %385 = vmatpush2.bf16.msra.mxu0 0
      %386 = vmatprep.subr.bf16.mxu0 0
      %387 = vmatpush2.bf16.msra.mxu0 0
      %388 = vmatprep.subr.bf16.mxu0 0
      %389 = vmatpush2.bf16.msra.mxu0 0
      %390 = vmatprep.subr.bf16.mxu0 0
      %391 = vmatpush2.bf16.msra.mxu0 0
      %392 = vmatprep.mubr.bf16.mxu0 0
      %393 = vmatmul.mubr.bf16.gmra.mxu0 %v358
      %v394 = vpop.f32.mrf.mxu0
      %v395 = vadd.f32 0.0, %v394
      %v396 = vpop.f32.mrf.mxu0
      %v397 = vpop.f32.mrf.mxu0
      %v398 = vadd.f32 0.0, %v397
      %v399 = vpop.f32.mrf.mxu0
      %400 = vdwg.mxu0
      %v401 = vadd.f32 %v331, %v395
      %v402 = vadd.f32 %v332, %v398
      %403 = vst.msk [vmem:[#allocation2] sm:$0xff] %vm356, %v401
      %404 = vst.msk [vmem:[#allocation2 + $0x8] sm:$0xff] %vm356, %v402
      // Predicated region
      $region37: #{ar_forward.14} parent=31 // pred_check
        %p405 = pneg %p324
      $region38: #{ar_forward.14} parent=31 // pred_check_branch
        %407 = sbr.rel (%p405) target = $region40
      $region39: #{ar_forward.14} parent=31 // pred_region
        %v408 = vld [vmem:[#allocation2] sm:$0xff]
        %v409 = vld [vmem:[#allocation2 + $0x8] sm:$0xff]
        %v410 = vld [vmem:[%s299] sm:$0xf]
        %v411 = vld [vmem:[%s299 + $0x4] sm:$0xf]
        %v412 = vunpack.c.l.bf16 %v410
        %v413 = vunpack.c.l.bf16 %v411
        %v414 = vadd.f32 %v408, %v412
        %v415 = vadd.f32 %v409, %v413
        %v416 = vpack.c.bf16 %v415, %v414
        %v418 = vunpack.c.l.b16 %v416
        %v419 = vunpack.c.h.b16 %v416
        %v420 = vpack.c.b16 %v418, %v418
        %v421 = vpack.c.b16 %v419, %v419
        %vm424 = vcmask 257024
        %425 = vst.msk [vmem:[%s321] sm:$0xf] %vm424, %v420
        %426 = vst.msk [vmem:[%s321 + $0x4] sm:$0xf] %vm424, %v421
      $region40: #{ar_forward.14} parent=31 // pred_fallthru
        _
      %s427 = smul.u32 2, %s21
      %p428 = scmp.lt.s32.totalorder %s20, 1
      %s429 = scalar_select %p428, %s20, 1
      %p430 = scmp.lt.s32.totalorder %s427, 1
      %s431 = scalar_select %p430, %s427, 1
      %p432 = scmp.lt.s32.totalorder %s22, 0
      %s433 = scalar_select %p432, %s22, 0
      %s434 = sadd.s32 %s433, %s431
      %s435 = smul.addr %s429, 2
      %s436 = sadd.s32 %s434, %s435
      %s437 = smul.addr %s436, 4
      %s438 = scalar_lea.vmem %s3, %s437
      // Predicated region
      $region41: #{ar_forward.14} parent=31 // pred_check
        %p439 = pneg %p150
      $region42: #{ar_forward.14} parent=31 // pred_check_branch
        %441 = sbr.rel (%p439) target = $region44
      $region43: #{ar_forward.14} parent=31 // pred_region
        %s442 = smul.u32 2, %s21
      $region44: #{ar_forward.14} parent=31 // pred_fallthru
        _
    $region32: #{ar_forward.14} parent=5 // pred_fallthru
      _
    %p443 = scmp.le.s32.totalorder 2, %s9
    // Predicated region
    $region45: #{ar_forward.14} parent=5 // pred_check
      %p444 = pneg %p443
    $region46: #{ar_forward.14} parent=5 // pred_check_branch
      %446 = sbr.rel (%p444) target = $region48
    $region47: #{ar_forward.14} parent=5 // pred_region
      %s447 = ssub.s32 %s9, 2
      // Predicated region
      $region49: #{ar_forward.14} parent=47 // pred_check
        %p448 = pneg %p156
      $region50: #{ar_forward.14} parent=47 // pred_check_branch
        %450 = sbr.rel (%p448) target = $region52
      $region51: #{ar_forward.14} parent=47 // pred_region
        %s451 = smul.u32 2, %s25
        %p452 = scmp.lt.s32.totalorder %s24, 1
        %s453 = scalar_select %p452, %s24, 1
        %p454 = scmp.lt.s32.totalorder %s451, 1
        %s455 = scalar_select %p454, %s451, 1
        %p456 = scmp.lt.s32.totalorder %s26, 0
        %s457 = scalar_select %p456, %s26, 0
        %s458 = sadd.s32 %s457, %s455
        %s459 = smul.addr %s453, 2
        %s460 = sadd.s32 %s458, %s459
        %s461 = smul.addr %s460, 4
        %s462 = scalar_lea.vmem %s3, %s461
      $region52: #{ar_forward.14} parent=47 // pred_fallthru
        _
    $region48: #{ar_forward.14} parent=5 // pred_fallthru
      _
  $region6: #{ar_forward.14} parent=0 // loop_footer
    %s13 = sadd.s32 1, %s9
  $region7: #{ar_forward.14} parent=0 // loop_footer_branch
    %8 = sbr.rel target = $region3
  $region8: #{ar_forward.14} parent=0 // loop_exit
    _

// kernel: ar_forward.12
$region0: #{ar_forward.12}
  #allocation0 [shape = 'u32[]', space=smem, size = 0x4, offset = 0x4, fixed_abs, tag = 'smem constant byte address 0x4 - core index']
  #allocation1 [shape = 'u32[144,128]{1,0:T(1,128)}', space=vmem, size = 0x12000, scoped, tag = 'internal scratch']
  #allocation2 [shape = 'bf16[16,32]{1,0:T(8,128)(2,1)}', space=vmem, size = 0x1000, scoped, tag = 'scratch operand']
  %s0 = inlined_call_operand.vmem [shape: bf16[2,16,32], index: 0, kind: input, shape index: {}]
  %s1 = inlined_call_operand.vmem [shape: f32[1,32], index: 1, kind: input, shape index: {}]
  %s2 = inlined_call_operand.vmem [shape: f32[16,32], index: 2, kind: input, shape index: {}]
  %s3 = inlined_call_operand.vmem [shape: f32[16,32], index: 3, kind: input, shape index: {}]
  %s4 = inlined_call_operand.vmem [shape: f32[16,32], index: 4, kind: input, shape index: {}]
  %s5 = inlined_call_operand.vmem [shape: bf16[32,32], index: 5, kind: input, shape index: {}]
  %s6 = inlined_call_operand.vmem [shape: bf16[32,32], index: 6, kind: input, shape index: {}]
  %s7 = inlined_call_operand.vmem [shape: bf16[32,32], index: 7, kind: input, shape index: {}]
  %s8 = inlined_call_operand.vmem [shape: bf16[2,16,32], index: 8, kind: output, shape index: {0}]
  %s9 = inlined_call_operand.vmem [shape: bf16[2,16,32], index: 9, kind: output, shape index: {1}]
  %s10 = inlined_call_operand.vmem [shape: bf16[2,16,32], index: 10, kind: output, shape index: {2}]
  %11 = xla_tuple %s8, %s9, %s10
  %s12 = sld [smem:[#allocation0]]
  $region85: #{ar_forward.12} parent=0
    _
  %s14 = ssub.s32 1, %s12
  %s15 = scalar_select 0, %s14, %s12
  loop: start=0, step=1, limit=4
  $region2: #{ar_forward.12} parent=0 // loop_pre_header
    _
  $region3: #{ar_forward.12} parent=0 // loop_header
    %s17 = sphi 0, %s21
    %p18 = scmp.ge.s32.totalorder %s17, 4
    %s24 = sphi 0, %s43
    %s25 = sphi 0, %s39
    %s26 = sphi 0, %s35
    %s27 = sphi 0, %s24
    %s28 = sphi 0, %s25
    %s29 = sphi 0, %s26
    %s30 = sphi 0, %s27
    %s31 = sphi 0, %s28
    %s32 = sphi 0, %s29
    %s48 = sphi 0, %s50
    %s51 = sphi 0, %s48
    %s52 = sphi 0, %s51
    %s68 = sphi 0, %s52
    %s72 = sphi 0, %s72
    %s74 = sphi 0, %s72
    %s75 = sphi 0, %s74
    %s89 = sphi 0, %s75
    %s97 = sphi 0, %s99
    %s100 = sphi 0, %s97
    %s101 = sphi 0, %s100
    %s117 = sphi 0, %s101
    %s125 = sphi 0, %s127
    %s128 = sphi 0, %s125
    %s129 = sphi 0, %s128
    %s145 = sphi 0, %s129
    %s153 = sphi 0, %s155
    %s156 = sphi 0, %s153
    %s157 = sphi 0, %s156
    %s173 = sphi 0, %s157
    %s179 = sphi 0, %s181
    %s182 = sphi 0, %s179
    %s183 = sphi 0, %s182
    %s199 = sphi 0, %s183
    %s205 = sphi 0, %s207
    %s208 = sphi 0, %s205
    %s209 = sphi 0, %s208
    %s225 = sphi 0, %s209
    %s231 = sphi 0, %s233
    %s234 = sphi 0, %s231
    %s235 = sphi 0, %s234
    %s251 = sphi 0, %s235
    %s261 = sphi 0, %s263
    %s264 = sphi 0, %s261
    %s265 = sphi 0, %s264
    %s281 = sphi 0, %s265
    %s291 = sphi 0, %s293
    %s294 = sphi 0, %s291
    %s295 = sphi 0, %s294
    %s311 = sphi 0, %s295
    %s321 = sphi 0, %s323
    %s324 = sphi 0, %s321
    %s325 = sphi 0, %s324
    %s341 = sphi 0, %s325
  $region4: #{ar_forward.12} parent=0 // loop_header_branch
    %20 = sbr.rel (%p18) target = $region8
  $region5: #{ar_forward.12} parent=0 // loop_body
    %s22 = ssub.s32 %s17, 1
    %s23 = ssub.s32 %s17, 2
    %s33 = sadd.s32 1, %s26
    %p34 = scmp.ge.s32.totalorder %s33, 1
    %s35 = scalar_select %p34, 0, %s33
    %s36 = sadd.s32 1, %s25
    %s37 = scalar_select %p34, %s36, %s25
    %p38 = scmp.ge.s32.totalorder %s37, 1
    %s39 = scalar_select %p38, 0, %s37
    %s40 = sadd.s32 1, %s24
    %s41 = scalar_select %p38, %s40, %s24
    %p42 = scmp.ge.s32.totalorder %s41, 2
    %s43 = scalar_select %p42, 0, %s41
    %s44 = ssub.s32 %s24, %s43
    %s45 = ssub.s32 %s25, %s39
    %s46 = sor.u32 %s44, %s45
    %p47 = scmp.eq.s32.totalorder %s46, 0
    %s49 = sadd.s32 %s48, 1
    %s50 = scalar_select %p47, %s48, %s49
    %p53 = pneg %p47
    %p54 = scmp.eq.s32.totalorder %s17, 1
    %p55 = por %p53, %p54
    %p56 = scmp.ne.s32.totalorder %s48, %s51
    %p57 = scmp.eq.s32.totalorder %s17, 0
    %p58 = por %p56, %p57
    %p59 = scmp.ne.s32.totalorder %s48, %s51
    %p60 = scmp.eq.s32.totalorder %s22, 1
    %p61 = por %p59, %p60
    %p62 = scmp.ne.s32.totalorder %s51, %s52
    %p63 = scmp.eq.s32.totalorder %s22, 0
    %p64 = por %p62, %p63
    %p65 = scmp.ne.s32.totalorder %s51, %s52
    %p66 = scmp.eq.s32.totalorder %s23, 1
    %p67 = por %p65, %p66
    %p69 = scmp.ne.s32.totalorder %s52, %s68
    %p70 = scmp.eq.s32.totalorder %s23, 0
    %p71 = por %p69, %p70
    %s73 = sadd.s32 %s72, 1
    %p76 = scmp.eq.s32.totalorder %s17, 1
    %p77 = scmp.ne.s32.totalorder %s72, %s74
    %p78 = scmp.eq.s32.totalorder %s17, 0
    %p79 = por %p77, %p78
    %p80 = scmp.ne.s32.totalorder %s72, %s74
    %p81 = scmp.eq.s32.totalorder %s22, 1
    %p82 = por %p80, %p81
    %p83 = scmp.ne.s32.totalorder %s74, %s75
    %p84 = scmp.eq.s32.totalorder %s22, 0
    %p85 = por %p83, %p84
    %p86 = scmp.ne.s32.totalorder %s74, %s75
    %p87 = scmp.eq.s32.totalorder %s23, 1
    %p88 = por %p86, %p87
    %p90 = scmp.ne.s32.totalorder %s75, %s89
    %p91 = scmp.eq.s32.totalorder %s23, 0
    %p92 = por %p90, %p91
    %s93 = ssub.s32 %s25, %s39
    %s94 = ssub.s32 %s26, %s35
    %s95 = sor.u32 %s93, %s94
    %p96 = scmp.eq.s32.totalorder %s95, 0
    %s98 = sadd.s32 %s97, 1
    %s99 = scalar_select %p96, %s97, %s98
    %p102 = pneg %p96
    %p103 = scmp.eq.s32.totalorder %s17, 1
    %p104 = por %p102, %p103
    %p105 = scmp.ne.s32.totalorder %s97, %s100
    %p106 = scmp.eq.s32.totalorder %s17, 0
    %p107 = por %p105, %p106
    %p108 = scmp.ne.s32.totalorder %s97, %s100
    %p109 = scmp.eq.s32.totalorder %s22, 1
    %p110 = por %p108, %p109
    %p111 = scmp.ne.s32.totalorder %s100, %s101
    %p112 = scmp.eq.s32.totalorder %s22, 0
    %p113 = por %p111, %p112
    %p114 = scmp.ne.s32.totalorder %s100, %s101
    %p115 = scmp.eq.s32.totalorder %s23, 1
    %p116 = por %p114, %p115
    %p118 = scmp.ne.s32.totalorder %s101, %s117
    %p119 = scmp.eq.s32.totalorder %s23, 0
    %p120 = por %p118, %p119
    %s121 = ssub.s32 %s25, %s39
    %s122 = ssub.s32 %s26, %s35
    %s123 = sor.u32 %s121, %s122
    %p124 = scmp.eq.s32.totalorder %s123, 0
    %s126 = sadd.s32 %s125, 1
    %s127 = scalar_select %p124, %s125, %s126
    %p130 = pneg %p124
    %p131 = scmp.eq.s32.totalorder %s17, 1
    %p132 = por %p130, %p131
    %p133 = scmp.ne.s32.totalorder %s125, %s128
    %p134 = scmp.eq.s32.totalorder %s17, 0
    %p135 = por %p133, %p134
    %p136 = scmp.ne.s32.totalorder %s125, %s128
    %p137 = scmp.eq.s32.totalorder %s22, 1
    %p138 = por %p136, %p137
    %p139 = scmp.ne.s32.totalorder %s128, %s129
    %p140 = scmp.eq.s32.totalorder %s22, 0
    %p141 = por %p139, %p140
    %p142 = scmp.ne.s32.totalorder %s128, %s129
    %p143 = scmp.eq.s32.totalorder %s23, 1
    %p144 = por %p142, %p143
    %p146 = scmp.ne.s32.totalorder %s129, %s145
    %p147 = scmp.eq.s32.totalorder %s23, 0
    %p148 = por %p146, %p147
    %s149 = ssub.s32 %s25, %s39
    %s150 = ssub.s32 %s26, %s35
    %s151 = sor.u32 %s149, %s150
    %p152 = scmp.eq.s32.totalorder %s151, 0
    %s154 = sadd.s32 %s153, 1
    %s155 = scalar_select %p152, %s153, %s154
    %p158 = pneg %p152
    %p159 = scmp.eq.s32.totalorder %s17, 1
    %p160 = por %p158, %p159
    %p161 = scmp.ne.s32.totalorder %s153, %s156
    %p162 = scmp.eq.s32.totalorder %s17, 0
    %p163 = por %p161, %p162
    %p164 = scmp.ne.s32.totalorder %s153, %s156
    %p165 = scmp.eq.s32.totalorder %s22, 1
    %p166 = por %p164, %p165
    %p167 = scmp.ne.s32.totalorder %s156, %s157
    %p168 = scmp.eq.s32.totalorder %s22, 0
    %p169 = por %p167, %p168
    %p170 = scmp.ne.s32.totalorder %s156, %s157
    %p171 = scmp.eq.s32.totalorder %s23, 1
    %p172 = por %p170, %p171
    %p174 = scmp.ne.s32.totalorder %s157, %s173
    %p175 = scmp.eq.s32.totalorder %s23, 0
    %p176 = por %p174, %p175
    %s177 = ssub.s32 %s26, %s35
    %p178 = scmp.eq.s32.totalorder %s177, 0
    %s180 = sadd.s32 %s179, 1
    %s181 = scalar_select %p178, %s179, %s180
    %p184 = pneg %p178
    %p185 = scmp.eq.s32.totalorder %s17, 1
    %p186 = por %p184, %p185
    %p187 = scmp.ne.s32.totalorder %s179, %s182
    %p188 = scmp.eq.s32.totalorder %s17, 0
    %p189 = por %p187, %p188
    %p190 = scmp.ne.s32.totalorder %s179, %s182
    %p191 = scmp.eq.s32.totalorder %s22, 1
    %p192 = por %p190, %p191
    %p193 = scmp.ne.s32.totalorder %s182, %s183
    %p194 = scmp.eq.s32.totalorder %s22, 0
    %p195 = por %p193, %p194
    %p196 = scmp.ne.s32.totalorder %s182, %s183
    %p197 = scmp.eq.s32.totalorder %s23, 1
    %p198 = por %p196, %p197
    %p200 = scmp.ne.s32.totalorder %s183, %s199
    %p201 = scmp.eq.s32.totalorder %s23, 0
    %p202 = por %p200, %p201
    %s203 = ssub.s32 %s26, %s35
    %p204 = scmp.eq.s32.totalorder %s203, 0
    %s206 = sadd.s32 %s205, 1
    %s207 = scalar_select %p204, %s205, %s206
    %p210 = pneg %p204
    %p211 = scmp.eq.s32.totalorder %s17, 1
    %p212 = por %p210, %p211
    %p213 = scmp.ne.s32.totalorder %s205, %s208
    %p214 = scmp.eq.s32.totalorder %s17, 0
    %p215 = por %p213, %p214
    %p216 = scmp.ne.s32.totalorder %s205, %s208
    %p217 = scmp.eq.s32.totalorder %s22, 1
    %p218 = por %p216, %p217
    %p219 = scmp.ne.s32.totalorder %s208, %s209
    %p220 = scmp.eq.s32.totalorder %s22, 0
    %p221 = por %p219, %p220
    %p222 = scmp.ne.s32.totalorder %s208, %s209
    %p223 = scmp.eq.s32.totalorder %s23, 1
    %p224 = por %p222, %p223
    %p226 = scmp.ne.s32.totalorder %s209, %s225
    %p227 = scmp.eq.s32.totalorder %s23, 0
    %p228 = por %p226, %p227
    %s229 = ssub.s32 %s26, %s35
    %p230 = scmp.eq.s32.totalorder %s229, 0
    %s232 = sadd.s32 %s231, 1
    %s233 = scalar_select %p230, %s231, %s232
    %p236 = pneg %p230
    %p237 = scmp.eq.s32.totalorder %s17, 1
    %p238 = por %p236, %p237
    %p239 = scmp.ne.s32.totalorder %s231, %s234
    %p240 = scmp.eq.s32.totalorder %s17, 0
    %p241 = por %p239, %p240
    %p242 = scmp.ne.s32.totalorder %s231, %s234
    %p243 = scmp.eq.s32.totalorder %s22, 1
    %p244 = por %p242, %p243
    %p245 = scmp.ne.s32.totalorder %s234, %s235
    %p246 = scmp.eq.s32.totalorder %s22, 0
    %p247 = por %p245, %p246
    %p248 = scmp.ne.s32.totalorder %s234, %s235
    %p249 = scmp.eq.s32.totalorder %s23, 1
    %p250 = por %p248, %p249
    %p252 = scmp.ne.s32.totalorder %s235, %s251
    %p253 = scmp.eq.s32.totalorder %s23, 0
    %p254 = por %p252, %p253
    %s255 = ssub.s32 %s24, %s43
    %s256 = ssub.s32 %s25, %s39
    %s257 = sor.u32 %s255, %s256
    %s258 = ssub.s32 %s26, %s35
    %s259 = sor.u32 %s257, %s258
    %p260 = scmp.eq.s32.totalorder %s259, 0
    %s262 = sadd.s32 %s261, 1
    %s263 = scalar_select %p260, %s261, %s262
    %p266 = pneg %p260
    %p267 = scmp.eq.s32.totalorder %s17, 1
    %p268 = por %p266, %p267
    %p269 = scmp.ne.s32.totalorder %s261, %s264
    %p270 = scmp.eq.s32.totalorder %s17, 0
    %p271 = por %p269, %p270
    %p272 = scmp.ne.s32.totalorder %s261, %s264
    %p273 = scmp.eq.s32.totalorder %s22, 1
    %p274 = por %p272, %p273
    %p275 = scmp.ne.s32.totalorder %s264, %s265
    %p276 = scmp.eq.s32.totalorder %s22, 0
    %p277 = por %p275, %p276
    %p278 = scmp.ne.s32.totalorder %s264, %s265
    %p279 = scmp.eq.s32.totalorder %s23, 1
    %p280 = por %p278, %p279
    %p282 = scmp.ne.s32.totalorder %s265, %s281
    %p283 = scmp.eq.s32.totalorder %s23, 0
    %p284 = por %p282, %p283
    %s285 = ssub.s32 %s24, %s43
    %s286 = ssub.s32 %s25, %s39
    %s287 = sor.u32 %s285, %s286
    %s288 = ssub.s32 %s26, %s35
    %s289 = sor.u32 %s287, %s288
    %p290 = scmp.eq.s32.totalorder %s289, 0
    %s292 = sadd.s32 %s291, 1
    %s293 = scalar_select %p290, %s291, %s292
    %p296 = pneg %p290
    %p297 = scmp.eq.s32.totalorder %s17, 1
    %p298 = por %p296, %p297
    %p299 = scmp.ne.s32.totalorder %s291, %s294
    %p300 = scmp.eq.s32.totalorder %s17, 0
    %p301 = por %p299, %p300
    %p302 = scmp.ne.s32.totalorder %s291, %s294
    %p303 = scmp.eq.s32.totalorder %s22, 1
    %p304 = por %p302, %p303
    %p305 = scmp.ne.s32.totalorder %s294, %s295
    %p306 = scmp.eq.s32.totalorder %s22, 0
    %p307 = por %p305, %p306
    %p308 = scmp.ne.s32.totalorder %s294, %s295
    %p309 = scmp.eq.s32.totalorder %s23, 1
    %p310 = por %p308, %p309
    %p312 = scmp.ne.s32.totalorder %s295, %s311
    %p313 = scmp.eq.s32.totalorder %s23, 0
    %p314 = por %p312, %p313
    %s315 = ssub.s32 %s24, %s43
    %s316 = ssub.s32 %s25, %s39
    %s317 = sor.u32 %s315, %s316
    %s318 = ssub.s32 %s26, %s35
    %s319 = sor.u32 %s317, %s318
    %p320 = scmp.eq.s32.totalorder %s319, 0
    %s322 = sadd.s32 %s321, 1
    %s323 = scalar_select %p320, %s321, %s322
    %p326 = pneg %p320
    %p327 = scmp.eq.s32.totalorder %s17, 1
    %p328 = por %p326, %p327
    %p329 = scmp.ne.s32.totalorder %s321, %s324
    %p330 = scmp.eq.s32.totalorder %s17, 0
    %p331 = por %p329, %p330
    %p332 = scmp.ne.s32.totalorder %s321, %s324
    %p333 = scmp.eq.s32.totalorder %s22, 1
    %p334 = por %p332, %p333
    %p335 = scmp.ne.s32.totalorder %s324, %s325
    %p336 = scmp.eq.s32.totalorder %s22, 0
    %p337 = por %p335, %p336
    %p338 = scmp.ne.s32.totalorder %s324, %s325
    %p339 = scmp.eq.s32.totalorder %s23, 1
    %p340 = por %p338, %p339
    %p342 = scmp.ne.s32.totalorder %s325, %s341
    %p343 = scmp.eq.s32.totalorder %s23, 0
    %p344 = por %p342, %p343
    %p345 = scmp.le.s32.totalorder 1, %s17
    %p346 = scmp.lt.s32.totalorder %s17, 3
    %p347 = pnand %p345, %p346
    %p348 = pneg %p347
    // Predicated region
    $region9: #{ar_forward.12} parent=5 // pred_check
      _
    $region10: #{ar_forward.12} parent=5 // pred_check_branch
      %350 = sbr.rel (%p347) target = $region12
    $region11: #{ar_forward.12} parent=5 // pred_region
      %s351 = ssub.s32 %s17, 1
      // Predicated region
      $region13: #{ar_forward.12} parent=11 // pred_check
        %p352 = pneg %p85
      $region14: #{ar_forward.12} parent=11 // pred_check_branch
        %354 = sbr.rel (%p352) target = $region16
      $region15: #{ar_forward.12} parent=11 // pred_region
        _
      $region16: #{ar_forward.12} parent=11 // pred_fallthru
        _
      // Predicated region
      $region17: #{ar_forward.12} parent=11 // pred_check
        %p355 = pneg %p113
      $region18: #{ar_forward.12} parent=11 // pred_check_branch
        %357 = sbr.rel (%p355) target = $region20
      $region19: #{ar_forward.12} parent=11 // pred_region
        %s358 = smul.u32 2, %s28
        %p359 = scmp.lt.s32.totalorder %s358, 1
        %s360 = scalar_select %p359, %s358, 1
        %p361 = scmp.lt.s32.totalorder %s29, 0
        %s362 = scalar_select %p361, %s29, 0
        %s363 = sadd.s32 %s362, %s360
        %s364 = smul.addr %s363, 8
        %s365 = scalar_lea.vmem %s2, %s364
        %s366 = smul.u32 2, %s28
      $region20: #{ar_forward.12} parent=11 // pred_fallthru
        _
      // Predicated region
      $region21: #{ar_forward.12} parent=11 // pred_check
        %p367 = pneg %p141
      $region22: #{ar_forward.12} parent=11 // pred_check_branch
        %369 = sbr.rel (%p367) target = $region24
      $region23: #{ar_forward.12} parent=11 // pred_region
        %s370 = smul.u32 2, %s28
        %p371 = scmp.lt.s32.totalorder %s370, 1
        %s372 = scalar_select %p371, %s370, 1
        %p373 = scmp.lt.s32.totalorder %s29, 0
        %s374 = scalar_select %p373, %s29, 0
        %s375 = sadd.s32 %s374, %s372
        %s376 = smul.addr %s375, 8
        %s377 = scalar_lea.vmem %s3, %s376
        %s378 = smul.u32 2, %s28
      $region24: #{ar_forward.12} parent=11 // pred_fallthru
        _
      // Predicated region
      $region25: #{ar_forward.12} parent=11 // pred_check
        %p379 = pneg %p169
      $region26: #{ar_forward.12} parent=11 // pred_check_branch
        %381 = sbr.rel (%p379) target = $region28
      $region27: #{ar_forward.12} parent=11 // pred_region
        %s382 = smul.u32 2, %s28
        %p383 = scmp.lt.s32.totalorder %s382, 1
        %s384 = scalar_select %p383, %s382, 1
        %p385 = scmp.lt.s32.totalorder %s29, 0
        %s386 = scalar_select %p385, %s29, 0
        %s387 = sadd.s32 %s386, %s384
        %s388 = smul.addr %s387, 8
        %s389 = scalar_lea.vmem %s4, %s388
        %s390 = smul.u32 2, %s28
      $region28: #{ar_forward.12} parent=11 // pred_fallthru
        _
      // Predicated region
      $region29: #{ar_forward.12} parent=11 // pred_check
        %p391 = pneg %p195
      $region30: #{ar_forward.12} parent=11 // pred_check_branch
        %393 = sbr.rel (%p391) target = $region32
      $region31: #{ar_forward.12} parent=11 // pred_region
        %p394 = scmp.lt.s32.totalorder %s29, 0
        %s395 = scalar_select %p394, %s29, 0
        %s396 = smul.addr %s395, 4
        %s397 = scalar_lea.vmem %s5, %s396
      $region32: #{ar_forward.12} parent=11 // pred_fallthru
        _
      // Predicated region
      $region33: #{ar_forward.12} parent=11 // pred_check
        %p398 = pneg %p221
      $region34: #{ar_forward.12} parent=11 // pred_check_branch
        %400 = sbr.rel (%p398) target = $region36
      $region35: #{ar_forward.12} parent=11 // pred_region
        %p401 = scmp.lt.s32.totalorder %s29, 0
        %s402 = scalar_select %p401, %s29, 0
        %s403 = smul.addr %s402, 4
        %s404 = scalar_lea.vmem %s6, %s403
      $region36: #{ar_forward.12} parent=11 // pred_fallthru
        _
      // Predicated region
      $region37: #{ar_forward.12} parent=11 // pred_check
        %p405 = pneg %p247
      $region38: #{ar_forward.12} parent=11 // pred_check_branch
        %407 = sbr.rel (%p405) target = $region40
      $region39: #{ar_forward.12} parent=11 // pred_region
        %p408 = scmp.lt.s32.totalorder %s29, 0
        %s409 = scalar_select %p408, %s29, 0
        %s410 = smul.addr %s409, 4
        %s411 = scalar_lea.vmem %s7, %s410
      $region40: #{ar_forward.12} parent=11 // pred_fallthru
        _
    $region12: #{ar_forward.12} parent=5 // pred_fallthru
      _
    %p412 = scmp.lt.s32.totalorder %s17, 2
    // Predicated region
    $region41: #{ar_forward.12} parent=5 // pred_check
      %p413 = pneg %p412
    $region42: #{ar_forward.12} parent=5 // pred_check_branch
      %415 = sbr.rel (%p413) target = $region44
    $region43: #{ar_forward.12} parent=5 // pred_region
      // Predicated region
      $region45: #{ar_forward.12} parent=43 // pred_check
        %p416 = pneg %p58
      $region46: #{ar_forward.12} parent=43 // pred_check_branch
        %418 = sbr.rel (%p416) target = $region48
      $region47: #{ar_forward.12} parent=43 // pred_region
        %s419 = smul.u32 2, %s25
        %p420 = scmp.lt.s32.totalorder %s24, 1
        %s421 = scalar_select %p420, %s24, 1
        %p422 = scmp.lt.s32.totalorder %s419, 1
        %s423 = scalar_select %p422, %s419, 1
        %s424 = smul.addr %s421, 2
        %s425 = sadd.s32 %s423, %s424
        %s426 = smul.addr %s425, 4
        %s427 = scalar_lea.vmem %s0, %s426
        %s428 = smul.u32 2, %s25
      $region48: #{ar_forward.12} parent=43 // pred_fallthru
        _
    $region44: #{ar_forward.12} parent=5 // pred_fallthru
      _
    %p429 = scmp.le.s32.totalorder 1, %s17
    %p430 = scmp.lt.s32.totalorder %s17, 3
    %p431 = pnand %p429, %p430
    %p432 = pneg %p431
    // Predicated region
    $region49: #{ar_forward.12} parent=5 // pred_check
      _
    $region50: #{ar_forward.12} parent=5 // pred_check_branch
      %434 = sbr.rel (%p431) target = $region52
    $region51: #{ar_forward.12} parent=5 // pred_region
      %s435 = ssub.s32 %s17, 1
      %s436 = smul.u32 2, %s28
      %p437 = scmp.lt.s32.totalorder %s27, 1
      %s438 = scalar_select %p437, %s27, 1
      %p439 = scmp.lt.s32.totalorder %s436, 1
      %s440 = scalar_select %p439, %s436, 1
      %s441 = smul.addr %s438, 2
      %s442 = sadd.s32 %s440, %s441
      %s443 = smul.addr %s442, 4
      %s444 = scalar_lea.vmem %s0, %s443
      %p445 = pneg %p64
      %p446 = pneg %p61
      %p447 = pneg %p85
      %p448 = pneg %p82
      %s449 = smul.u32 2, %s28
      %p450 = scmp.lt.s32.totalorder %s449, 1
      %s451 = scalar_select %p450, %s449, 1
      %p452 = scmp.lt.s32.totalorder %s29, 0
      %s453 = scalar_select %p452, %s29, 0
      %s454 = sadd.s32 %s453, %s451
      %s455 = smul.addr %s454, 8
      %s456 = scalar_lea.vmem %s2, %s455
      %p457 = pneg %p113
      %p458 = pneg %p110
      %s459 = smul.u32 2, %s28
      %p460 = scmp.lt.s32.totalorder %s459, 1
      %s461 = scalar_select %p460, %s459, 1
      %p462 = scmp.lt.s32.totalorder %s29, 0
      %s463 = scalar_select %p462, %s29, 0
      %s464 = sadd.s32 %s463, %s461
      %s465 = smul.addr %s464, 8
      %s466 = scalar_lea.vmem %s3, %s465
      %p467 = pneg %p141
      %p468 = pneg %p138
      %s469 = smul.u32 2, %s28
      %p470 = scmp.lt.s32.totalorder %s469, 1
      %s471 = scalar_select %p470, %s469, 1
      %p472 = scmp.lt.s32.totalorder %s29, 0
      %s473 = scalar_select %p472, %s29, 0
      %s474 = sadd.s32 %s473, %s471
      %s475 = smul.addr %s474, 8
      %s476 = scalar_lea.vmem %s4, %s475
      %p477 = pneg %p169
      %p478 = pneg %p166
      %p479 = scmp.lt.s32.totalorder %s29, 0
      %s480 = scalar_select %p479, %s29, 0
      %s481 = smul.addr %s480, 4
      %s482 = scalar_lea.vmem %s5, %s481
      %p483 = pneg %p195
      %p484 = pneg %p192
      %p485 = scmp.lt.s32.totalorder %s29, 0
      %s486 = scalar_select %p485, %s29, 0
      %s487 = smul.addr %s486, 4
      %s488 = scalar_lea.vmem %s6, %s487
      %p489 = pneg %p221
      %p490 = pneg %p218
      %p491 = scmp.lt.s32.totalorder %s29, 0
      %s492 = scalar_select %p491, %s29, 0
      %s493 = smul.addr %s492, 4
      %s494 = scalar_lea.vmem %s7, %s493
      %p495 = pneg %p247
      %p496 = pneg %p244
      %p497 = pneg %p277
      %p498 = pneg %p274
      %s499 = smul.u32 2, %s28
      %p500 = scmp.lt.s32.totalorder %s27, 1
      %s501 = scalar_select %p500, %s27, 1
      %p502 = scmp.lt.s32.totalorder %s499, 1
      %s503 = scalar_select %p502, %s499, 1
      %p504 = scmp.lt.s32.totalorder %s29, 0
      %s505 = scalar_select %p504, %s29, 0
      %s506 = sadd.s32 %s505, %s503
      %s507 = smul.addr %s501, 2
      %s508 = sadd.s32 %s506, %s507
      %s509 = smul.addr %s508, 4
      %s510 = scalar_lea.vmem %s8, %s509
      %p511 = pneg %p307
      %p512 = pneg %p304
      %s513 = smul.u32 2, %s28
      %p514 = scmp.lt.s32.totalorder %s27, 1
      %s515 = scalar_select %p514, %s27, 1
      %p516 = scmp.lt.s32.totalorder %s513, 1
      %s517 = scalar_select %p516, %s513, 1
      %p518 = scmp.lt.s32.totalorder %s29, 0
      %s519 = scalar_select %p518, %s29, 0
      %s520 = sadd.s32 %s519, %s517
      %s521 = smul.addr %s515, 2
      %s522 = sadd.s32 %s520, %s521
      %s523 = smul.addr %s522, 4
      %s524 = scalar_lea.vmem %s9, %s523
      %p525 = pneg %p337
      %p526 = pneg %p334
      %s527 = smul.u32 2, %s28
      %p528 = scmp.lt.s32.totalorder %s27, 1
      %s529 = scalar_select %p528, %s27, 1
      %p530 = scmp.lt.s32.totalorder %s527, 1
      %s531 = scalar_select %p530, %s527, 1
      %p532 = scmp.lt.s32.totalorder %s29, 0
      %s533 = scalar_select %p532, %s29, 0
      %s534 = sadd.s32 %s533, %s531
      %s535 = smul.addr %s529, 2
      %s536 = sadd.s32 %s534, %s535
      %s537 = smul.addr %s536, 4
      %s538 = scalar_lea.vmem %s10, %s537
      %s539 = smul.u32 2, %s28
      %p540 = scmp.lt.s32.totalorder %s27, 1
      %s541 = scalar_select %p540, %s27, 1
      %p542 = scmp.lt.s32.totalorder %s539, 1
      %s543 = scalar_select %p542, %s539, 1
      %s544 = smul.addr %s541, 2
      %s545 = sadd.s32 %s543, %s544
      %s546 = smul.addr %s545, 4
      %s547 = scalar_lea.vmem %s0, %s546
      %s548 = smul.u32 2, %s28
      %s549 = smul.u32 2, %s28
      %p550 = scmp.lt.s32.totalorder %s549, 1
      %s551 = scalar_select %p550, %s549, 1
      %p552 = scmp.lt.s32.totalorder %s29, 0
      %s553 = scalar_select %p552, %s29, 0
      %s554 = sadd.s32 %s553, %s551
      %s555 = smul.addr %s554, 8
      %s556 = scalar_lea.vmem %s2, %s555
      %s557 = smul.u32 2, %s28
      %s558 = smul.u32 2, %s28
      %p559 = scmp.lt.s32.totalorder %s558, 1
      %s560 = scalar_select %p559, %s558, 1
      %p561 = scmp.lt.s32.totalorder %s29, 0
      %s562 = scalar_select %p561, %s29, 0
      %s563 = sadd.s32 %s562, %s560
      %s564 = smul.addr %s563, 8
      %s565 = scalar_lea.vmem %s3, %s564
      %s566 = smul.u32 2, %s28
      %s567 = smul.u32 2, %s28
      %p568 = scmp.lt.s32.totalorder %s567, 1
      %s569 = scalar_select %p568, %s567, 1
      %p570 = scmp.lt.s32.totalorder %s29, 0
      %s571 = scalar_select %p570, %s29, 0
      %s572 = sadd.s32 %s571, %s569
      %s573 = smul.addr %s572, 8
      %s574 = scalar_lea.vmem %s4, %s573
      %s575 = smul.u32 2, %s28
      %p576 = scmp.lt.s32.totalorder %s29, 0
      %s577 = scalar_select %p576, %s29, 0
      %s578 = smul.addr %s577, 4
      %s579 = scalar_lea.vmem %s5, %s578
      %p580 = scmp.lt.s32.totalorder %s29, 0
      %s581 = scalar_select %p580, %s29, 0
      %s582 = smul.addr %s581, 4
      %s583 = scalar_lea.vmem %s6, %s582
      %p584 = scmp.lt.s32.totalorder %s29, 0
      %s585 = scalar_select %p584, %s29, 0
      %s586 = smul.addr %s585, 4
      %s587 = scalar_lea.vmem %s7, %s586
      %s588 = smul.u32 2, %s28
      %p589 = scmp.lt.s32.totalorder %s27, 1
      %s590 = scalar_select %p589, %s27, 1
      %p591 = scmp.lt.s32.totalorder %s588, 1
      %s592 = scalar_select %p591, %s588, 1
      %p593 = scmp.lt.s32.totalorder %s29, 0
      %s594 = scalar_select %p593, %s29, 0
      %s595 = sadd.s32 %s594, %s592
      %s596 = smul.addr %s590, 2
      %s597 = sadd.s32 %s595, %s596
      %s598 = smul.addr %s597, 4
      %s599 = scalar_lea.vmem %s8, %s598
      %s600 = smul.u32 2, %s28
      %s601 = smul.u32 2, %s28
      %p602 = scmp.lt.s32.totalorder %s27, 1
      %s603 = scalar_select %p602, %s27, 1
      %p604 = scmp.lt.s32.totalorder %s601, 1
      %s605 = scalar_select %p604, %s601, 1
      %p606 = scmp.lt.s32.totalorder %s29, 0
      %s607 = scalar_select %p606, %s29, 0
      %s608 = sadd.s32 %s607, %s605
      %s609 = smul.addr %s603, 2
      %s610 = sadd.s32 %s608, %s609
      %s611 = smul.addr %s610, 4
      %s612 = scalar_lea.vmem %s9, %s611
      %s613 = smul.u32 2, %s28
      %s614 = smul.u32 2, %s28
      %p615 = scmp.lt.s32.totalorder %s27, 1
      %s616 = scalar_select %p615, %s27, 1
      %p617 = scmp.lt.s32.totalorder %s614, 1
      %s618 = scalar_select %p617, %s614, 1
      %p619 = scmp.lt.s32.totalorder %s29, 0
      %s620 = scalar_select %p619, %s29, 0
      %s621 = sadd.s32 %s620, %s618
      %s622 = smul.addr %s616, 2
      %s623 = sadd.s32 %s621, %s622
      %s624 = smul.addr %s623, 4
      %s625 = scalar_lea.vmem %s10, %s624
      %s626 = smul.u32 2, %s28
      %p628 = scmp.eq.s32.totalorder %s29, 0
      // Predicated region
      $region53: #{ar_forward.12} parent=51 // pred_check
        %p629 = pneg %p628
      $region54: #{ar_forward.12} parent=51 // pred_check_branch
        %631 = sbr.rel (%p629) target = $region56
      $region55: #{ar_forward.12} parent=51 // pred_region
        %v632 = vld [vmem:[%s547] sm:$0xf]
        %v633 = vld [vmem:[%s547 + $0x4] sm:$0xf]
        %v634 = vld [vmem:[%s1] sm:$0x1]
        %v635 = vunpack.c.l.bf16 %v632
        %v636 = vunpack.c.l.bf16 %v633
        %vm637 = vcmask 261120
        %v638 = vsel %vm637, %v635, 0.0
        %639 = vadd.xlane.f32.xlu0 %v638
        %v640 = vpop.xlane.xlu0 %639
        %v641 = vsel %vm637, %v636, 0.0
        %642 = vadd.xlane.f32.xlu0 %v641
        %v643 = vpop.xlane.xlu0 %642
        %v644 = vrcp.pop 32.0
        %v645 = vmul.f32 %v640, %v644
        %v646 = vmul.f32 %v643, %v644
        %v647 = vsub.f32 %v635, %v645
        %v648 = vsub.f32 %v636, %v646
        %v649 = vmul.f32 %v647, %v647
        %v650 = vmul.f32 %v648, %v648
        %v651 = vsel %vm637, %v649, 0.0
        %652 = vadd.xlane.f32.xlu0 %v651
        %v653 = vpop.xlane.xlu0 %652
        %v654 = vsel %vm637, %v650, 0.0
        %655 = vadd.xlane.f32.xlu0 %v654
        %v656 = vpop.xlane.xlu0 %655
        %v657 = vmul.f32 %v653, %v644
        %v658 = vmul.f32 %v656, %v644
        %v659 = vadd.f32 %v657, 1e-05
        %v660 = vadd.f32 %v658, 1e-05
        %v661 = vrsqrt.pop %v659
        %v662 = vrsqrt.pop %v660
        %v663 = vmul.f32 %v647, %v661
        %v664 = vmul.f32 %v648, %v662
        %v666 = vlaneseq
        %v667 = vshrl.u32 %v666, 7
        %v668 = vsub.s32 0, %v667
        %v669 = vrot.slane %v634, %v668
        %v671 = vmul.f32 %v663, %v669
        %v672 = vmul.f32 %v664, %v669
        %v673 = vpack.c.bf16 %v672, %v671
        %v675 = vunpack.c.l.b16 %v673
        %v676 = vunpack.c.h.b16 %v673
        %v677 = vpack.c.b16 %v675, %v675
        %v678 = vpack.c.b16 %v676, %v676
        %vm681 = vcmask 257024
        %682 = vst.msk [vmem:[#allocation2] sm:$0xf] %vm681, %v677
        %683 = vst.msk [vmem:[#allocation2 + $0x4] sm:$0xf] %vm681, %v678
      $region56: #{ar_forward.12} parent=51 // pred_fallthru
        _
      %v684 = vld [vmem:[#allocation2] sm:$0xf]
      %v685 = vld [vmem:[#allocation2 + $0x4] sm:$0xf]
      %v686 = vld [vmem:[%s556] sm:$0xff]
      %v687 = vld [vmem:[%s556 + $0x8] sm:$0xff]
      %v688 = vld [vmem:[%s565] sm:$0xff]
      %v689 = vld [vmem:[%s565 + $0x8] sm:$0xff]
      %v690 = vld [vmem:[%s574] sm:$0xff]
      %v691 = vld [vmem:[%s574 + $0x8] sm:$0xff]
      %v692 = vld [vmem:[%s579] sm:$0xf]
      %v693 = vld [vmem:[%s579 + $0x4] sm:$0xf]
      %v694 = vld [vmem:[%s579 + $0x8] sm:$0xf]
      %v695 = vld [vmem:[%s579 + $0xc] sm:$0xf]
      %v698 = vunpack.c.l.b16 %v684
      %v699 = vunpack.c.l.b16 %v685
      %v700 = vpack.c.b16 %v699, %v698
      %v705 = vunpack.c.l.b16 %v692
      %v706 = vunpack.c.l.b16 %v693
      %v707 = vunpack.c.l.b16 %v694
      %v708 = vunpack.c.l.b16 %v695
      %v709 = vpack.c.b16 %v706, %v705
      %v710 = vpack.c.b16 %v708, %v707
      %vm713 = vcmask 261120
      %v715 = vsel %vm713, %v700, 0
      %717 = vmatprep.subr.bf16.mxu0 0
      %718 = vmatpush1.bf16.msra.mxu0 0
      %719 = vmatprep.subr.bf16.mxu0 0
      %720 = vmatpush1.bf16.msra.mxu0 0
      %721 = vmatprep.subr.bf16.mxu0 0
      %722 = vmatpush1.bf16.msra.mxu0 0
      %723 = vmatprep.subr.bf16.mxu0 0
      %724 = vmatpush1.bf16.msra.mxu0 0
      %725 = vmatprep.subr.bf16.mxu0 0
      %726 = vmatpush1.bf16.msra.mxu0 0
      %727 = vmatprep.subr.bf16.mxu0 0
      %728 = vmatpush1.bf16.msra.mxu0 0
      %729 = vmatprep.subr.bf16.mxu0 0
      %730 = vmatpush1.bf16.msra.mxu0 %v710
      %731 = vmatprep.subr.bf16.mxu0 0
      %732 = vmatpush1.bf16.msra.mxu0 %v709
      %733 = vmatprep.subr.bf16.mxu0 0
      %734 = vmatpush2.bf16.msra.mxu0 0
      %735 = vmatprep.subr.bf16.mxu0 0
      %736 = vmatpush2.bf16.msra.mxu0 0
      %737 = vmatprep.subr.bf16.mxu0 0
      %738 = vmatpush2.bf16.msra.mxu0 0
      %739 = vmatprep.subr.bf16.mxu0 0
      %740 = vmatpush2.bf16.msra.mxu0 0
      %741 = vmatprep.subr.bf16.mxu0 0
      %742 = vmatpush2.bf16.msra.mxu0 0
      %743 = vmatprep.subr.bf16.mxu0 0
      %744 = vmatpush2.bf16.msra.mxu0 0
      %745 = vmatprep.subr.bf16.mxu0 0
      %746 = vmatpush2.bf16.msra.mxu0 0
      %747 = vmatprep.subr.bf16.mxu0 0
      %748 = vmatpush2.bf16.msra.mxu0 0
      %749 = vmatprep.mubr.bf16.mxu0 0
      %750 = vmatmul.mubr.bf16.gmra.mxu0 %v715
      %v751 = vpop.f32.mrf.mxu0
      %v752 = vadd.f32 0.0, %v751
      %v753 = vpop.f32.mrf.mxu0
      %v754 = vpop.f32.mrf.mxu0
      %v755 = vadd.f32 0.0, %v754
      %v756 = vpop.f32.mrf.mxu0
      %757 = vdwg.mxu0
      %760 = vrot.lane.b32.xlu0 %v752, 124
      %v761 = vpop.permute.xlu0 %760
      %762 = vrot.lane.b32.xlu0 %v755, 124
      %v763 = vpop.permute.xlu0 %762
      %766 = vrot.lane.b32.xlu0 %v752, 28
      %v767 = vpop.permute.xlu0 %766
      %768 = vrot.lane.b32.xlu0 %v755, 28
      %v769 = vpop.permute.xlu0 %768
      %vm772 = vcmask 228352
      %v773 = vsel %vm772, %v761, %v767
      %v774 = vsel %vm772, %v763, %v769
      %775 = vrot.lane.b32.xlu0 %v752, 100
      %v776 = vpop.permute.xlu0 %775
      %777 = vrot.lane.b32.xlu0 %v755, 100
      %v778 = vpop.permute.xlu0 %777
      %781 = vrot.lane.b32.xlu0 %v752, 4
      %v782 = vpop.permute.xlu0 %781
      %783 = vrot.lane.b32.xlu0 %v755, 4
      %v784 = vpop.permute.xlu0 %783
      %vm787 = vcmask 31744
      %v788 = vsel %vm787, %v776, %v782
      %v789 = vsel %vm787, %v778, %v784
      %v790 = vmul.f32 %v752, %v686
      %v791 = vmul.f32 %v755, %v687
      %v792 = vmul.f32 %v773, %v688
      %v793 = vmul.f32 %v774, %v689
      %v794 = vadd.f32 %v790, %v792
      %v795 = vadd.f32 %v791, %v793
      %v796 = vmul.f32 %v788, %v690
      %v797 = vmul.f32 %v789, %v691
      %v798 = vadd.f32 %v794, %v796
      %v799 = vadd.f32 %v795, %v797
      %v800 = vpack.c.bf16 %v799, %v798
      %v802 = vunpack.c.l.b16 %v800
      %v803 = vunpack.c.h.b16 %v800
      %v804 = vpack.c.b16 %v802, %v802
      %v805 = vpack.c.b16 %v803, %v803
      %vm808 = vcmask 257024
      %809 = vst.msk [vmem:[%s599] sm:$0xf] %vm808, %v804
      %810 = vst.msk [vmem:[%s599 + $0x4] sm:$0xf] %vm808, %v805
      %v811 = vld [vmem:[%s583] sm:$0xf]
      %v812 = vld [vmem:[%s583 + $0x4] sm:$0xf]
      %v813 = vld [vmem:[%s583 + $0x8] sm:$0xf]
      %v814 = vld [vmem:[%s583 + $0xc] sm:$0xf]
      %v819 = vunpack.c.l.b16 %v811
      %v820 = vunpack.c.l.b16 %v812
      %v821 = vunpack.c.l.b16 %v813
      %v822 = vunpack.c.l.b16 %v814
      %v823 = vpack.c.b16 %v820, %v819
      %v824 = vpack.c.b16 %v822, %v821
      %827 = vmatprep.subr.bf16.mxu0 0
      %828 = vmatpush1.bf16.msra.mxu0 0
      %829 = vmatprep.subr.bf16.mxu0 0
      %830 = vmatpush1.bf16.msra.mxu0 0
      %831 = vmatprep.subr.bf16.mxu0 0
      %832 = vmatpush1.bf16.msra.mxu0 0
      %833 = vmatprep.subr.bf16.mxu0 0
      %834 = vmatpush1.bf16.msra.mxu0 0
      %835 = vmatprep.subr.bf16.mxu0 0
      %836 = vmatpush1.bf16.msra.mxu0 0
      %837 = vmatprep.subr.bf16.mxu0 0
      %838 = vmatpush1.bf16.msra.mxu0 0
      %839 = vmatprep.subr.bf16.mxu0 0
      %840 = vmatpush1.bf16.msra.mxu0 %v824
      %841 = vmatprep.subr.bf16.mxu0 0
      %842 = vmatpush1.bf16.msra.mxu0 %v823
      %843 = vmatprep.subr.bf16.mxu0 0
      %844 = vmatpush2.bf16.msra.mxu0 0
      %845 = vmatprep.subr.bf16.mxu0 0
      %846 = vmatpush2.bf16.msra.mxu0 0
      %847 = vmatprep.subr.bf16.mxu0 0
      %848 = vmatpush2.bf16.msra.mxu0 0
      %849 = vmatprep.subr.bf16.mxu0 0
      %850 = vmatpush2.bf16.msra.mxu0 0
      %851 = vmatprep.subr.bf16.mxu0 0
      %852 = vmatpush2.bf16.msra.mxu0 0
      %853 = vmatprep.subr.bf16.mxu0 0
      %854 = vmatpush2.bf16.msra.mxu0 0
      %855 = vmatprep.subr.bf16.mxu0 0
      %856 = vmatpush2.bf16.msra.mxu0 0
      %857 = vmatprep.subr.bf16.mxu0 0
      %858 = vmatpush2.bf16.msra.mxu0 0
      %859 = vmatprep.mubr.bf16.mxu0 0
      %860 = vmatmul.mubr.bf16.gmra.mxu0 %v715
      %v861 = vpop.f32.mrf.mxu0
      %v862 = vadd.f32 0.0, %v861
      %v863 = vpop.f32.mrf.mxu0
      %v864 = vpop.f32.mrf.mxu0
      %v865 = vadd.f32 0.0, %v864
      %v866 = vpop.f32.mrf.mxu0
      %867 = vdwg.mxu0
      %870 = vrot.lane.b32.xlu0 %v862, 124
      %v871 = vpop.permute.xlu0 %870
      %872 = vrot.lane.b32.xlu0 %v865, 124
      %v873 = vpop.permute.xlu0 %872
      %876 = vrot.lane.b32.xlu0 %v862, 28
      %v877 = vpop.permute.xlu0 %876
      %878 = vrot.lane.b32.xlu0 %v865, 28
      %v879 = vpop.permute.xlu0 %878
      %v882 = vsel %vm772, %v871, %v877
      %v883 = vsel %vm772, %v873, %v879
      %884 = vrot.lane.b32.xlu0 %v862, 100
      %v885 = vpop.permute.xlu0 %884
      %886 = vrot.lane.b32.xlu0 %v865, 100
      %v887 = vpop.permute.xlu0 %886
      %890 = vrot.lane.b32.xlu0 %v862, 4
      %v891 = vpop.permute.xlu0 %890
      %892 = vrot.lane.b32.xlu0 %v865, 4
      %v893 = vpop.permute.xlu0 %892
      %v896 = vsel %vm787, %v885, %v891
      %v897 = vsel %vm787, %v887, %v893
      %v898 = vmul.f32 %v862, %v686
      %v899 = vmul.f32 %v865, %v687
      %v900 = vmul.f32 %v882, %v688
      %v901 = vmul.f32 %v883, %v689
      %v902 = vadd.f32 %v898, %v900
      %v903 = vadd.f32 %v899, %v901
      %v904 = vmul.f32 %v896, %v690
      %v905 = vmul.f32 %v897, %v691
      %v906 = vadd.f32 %v902, %v904
      %v907 = vadd.f32 %v903, %v905
      %v908 = vpack.c.bf16 %v907, %v906
      %v910 = vunpack.c.l.b16 %v908
      %v911 = vunpack.c.h.b16 %v908
      %v912 = vpack.c.b16 %v910, %v910
      %v913 = vpack.c.b16 %v911, %v911
      %916 = vst.msk [vmem:[%s612] sm:$0xf] %vm808, %v912
      %917 = vst.msk [vmem:[%s612 + $0x4] sm:$0xf] %vm808, %v913
      %v918 = vld [vmem:[%s587] sm:$0xf]
      %v919 = vld [vmem:[%s587 + $0x4] sm:$0xf]
      %v920 = vld [vmem:[%s587 + $0x8] sm:$0xf]
      %v921 = vld [vmem:[%s587 + $0xc] sm:$0xf]
      %v926 = vunpack.c.l.b16 %v918
      %v927 = vunpack.c.l.b16 %v919
      %v928 = vunpack.c.l.b16 %v920
      %v929 = vunpack.c.l.b16 %v921
      %v930 = vpack.c.b16 %v927, %v926
      %v931 = vpack.c.b16 %v929, %v928
      %934 = vmatprep.subr.bf16.mxu0 0
      %935 = vmatpush1.bf16.msra.mxu0 0
      %936 = vmatprep.subr.bf16.mxu0 0
      %937 = vmatpush1.bf16.msra.mxu0 0
      %938 = vmatprep.subr.bf16.mxu0 0
      %939 = vmatpush1.bf16.msra.mxu0 0
      %940 = vmatprep.subr.bf16.mxu0 0
      %941 = vmatpush1.bf16.msra.mxu0 0
      %942 = vmatprep.subr.bf16.mxu0 0
      %943 = vmatpush1.bf16.msra.mxu0 0
      %944 = vmatprep.subr.bf16.mxu0 0
      %945 = vmatpush1.bf16.msra.mxu0 0
      %946 = vmatprep.subr.bf16.mxu0 0
      %947 = vmatpush1.bf16.msra.mxu0 %v931
      %948 = vmatprep.subr.bf16.mxu0 0
      %949 = vmatpush1.bf16.msra.mxu0 %v930
      %950 = vmatprep.subr.bf16.mxu0 0
      %951 = vmatpush2.bf16.msra.mxu0 0
      %952 = vmatprep.subr.bf16.mxu0 0
      %953 = vmatpush2.bf16.msra.mxu0 0
      %954 = vmatprep.subr.bf16.mxu0 0
      %955 = vmatpush2.bf16.msra.mxu0 0
      %956 = vmatprep.subr.bf16.mxu0 0
      %957 = vmatpush2.bf16.msra.mxu0 0
      %958 = vmatprep.subr.bf16.mxu0 0
      %959 = vmatpush2.bf16.msra.mxu0 0
      %960 = vmatprep.subr.bf16.mxu0 0
      %961 = vmatpush2.bf16.msra.mxu0 0
      %962 = vmatprep.subr.bf16.mxu0 0
      %963 = vmatpush2.bf16.msra.mxu0 0
      %964 = vmatprep.subr.bf16.mxu0 0
      %965 = vmatpush2.bf16.msra.mxu0 0
      %966 = vmatprep.mubr.bf16.mxu0 0
      %967 = vmatmul.mubr.bf16.gmra.mxu0 %v715
      %v968 = vpop.f32.mrf.mxu0
      %v969 = vadd.f32 0.0, %v968
      %v970 = vpop.f32.mrf.mxu0
      %v971 = vpop.f32.mrf.mxu0
      %v972 = vadd.f32 0.0, %v971
      %v973 = vpop.f32.mrf.mxu0
      %974 = vdwg.mxu0
      %v975 = vpack.c.bf16 %v972, %v969
      %v977 = vunpack.c.l.b16 %v975
      %v978 = vunpack.c.h.b16 %v975
      %v979 = vpack.c.b16 %v977, %v977
      %v980 = vpack.c.b16 %v978, %v978
      %983 = vst.msk [vmem:[%s625] sm:$0xf] %vm808, %v979
      %984 = vst.msk [vmem:[%s625 + $0x4] sm:$0xf] %vm808, %v980
      %s985 = smul.u32 2, %s28
      %p986 = scmp.lt.s32.totalorder %s27, 1
      %s987 = scalar_select %p986, %s27, 1
      %p988 = scmp.lt.s32.totalorder %s985, 1
      %s989 = scalar_select %p988, %s985, 1
      %p990 = scmp.lt.s32.totalorder %s29, 0
      %s991 = scalar_select %p990, %s29, 0
      %s992 = sadd.s32 %s991, %s989
      %s993 = smul.addr %s987, 2
      %s994 = sadd.s32 %s992, %s993
      %s995 = smul.addr %s994, 4
      %s996 = scalar_lea.vmem %s8, %s995
      %s997 = smul.u32 2, %s28
      %p998 = scmp.lt.s32.totalorder %s27, 1
      %s999 = scalar_select %p998, %s27, 1
      %p1000 = scmp.lt.s32.totalorder %s997, 1
      %s1001 = scalar_select %p1000, %s997, 1
      %p1002 = scmp.lt.s32.totalorder %s29, 0
      %s1003 = scalar_select %p1002, %s29, 0
      %s1004 = sadd.s32 %s1003, %s1001
      %s1005 = smul.addr %s999, 2
      %s1006 = sadd.s32 %s1004, %s1005
      %s1007 = smul.addr %s1006, 4
      %s1008 = scalar_lea.vmem %s9, %s1007
      %s1009 = smul.u32 2, %s28
      %p1010 = scmp.lt.s32.totalorder %s27, 1
      %s1011 = scalar_select %p1010, %s27, 1
      %p1012 = scmp.lt.s32.totalorder %s1009, 1
      %s1013 = scalar_select %p1012, %s1009, 1
      %p1014 = scmp.lt.s32.totalorder %s29, 0
      %s1015 = scalar_select %p1014, %s29, 0
      %s1016 = sadd.s32 %s1015, %s1013
      %s1017 = smul.addr %s1011, 2
      %s1018 = sadd.s32 %s1016, %s1017
      %s1019 = smul.addr %s1018, 4
      %s1020 = scalar_lea.vmem %s10, %s1019
      // Predicated region
      $region57: #{ar_forward.12} parent=51 // pred_check
        %p1021 = pneg %p274
      $region58: #{ar_forward.12} parent=51 // pred_check_branch
        %1023 = sbr.rel (%p1021) target = $region60
      $region59: #{ar_forward.12} parent=51 // pred_region
        %s1024 = smul.u32 2, %s28
      $region60: #{ar_forward.12} parent=51 // pred_fallthru
        _
      // Predicated region
      $region61: #{ar_forward.12} parent=51 // pred_check
        %p1025 = pneg %p304
      $region62: #{ar_forward.12} parent=51 // pred_check_branch
        %1027 = sbr.rel (%p1025) target = $region64
      $region63: #{ar_forward.12} parent=51 // pred_region
        %s1028 = smul.u32 2, %s28
      $region64: #{ar_forward.12} parent=51 // pred_fallthru
        _
      // Predicated region
      $region65: #{ar_forward.12} parent=51 // pred_check
        %p1029 = pneg %p334
      $region66: #{ar_forward.12} parent=51 // pred_check_branch
        %1031 = sbr.rel (%p1029) target = $region68
      $region67: #{ar_forward.12} parent=51 // pred_region
        %s1032 = smul.u32 2, %s28
      $region68: #{ar_forward.12} parent=51 // pred_fallthru
        _
    $region52: #{ar_forward.12} parent=5 // pred_fallthru
      _
    %p1033 = scmp.le.s32.totalorder 2, %s17
    // Predicated region
    $region69: #{ar_forward.12} parent=5 // pred_check
      %p1034 = pneg %p1033
    $region70: #{ar_forward.12} parent=5 // pred_check_branch
      %1036 = sbr.rel (%p1034) target = $region72
    $region71: #{ar_forward.12} parent=5 // pred_region
      %s1037 = ssub.s32 %s17, 2
      // Predicated region
      $region73: #{ar_forward.12} parent=71 // pred_check
        %p1038 = pneg %p280
      $region74: #{ar_forward.12} parent=71 // pred_check_branch
        %1040 = sbr.rel (%p1038) target = $region76
      $region75: #{ar_forward.12} parent=71 // pred_region
        %s1041 = smul.u32 2, %s31
        %p1042 = scmp.lt.s32.totalorder %s30, 1
        %s1043 = scalar_select %p1042, %s30, 1
        %p1044 = scmp.lt.s32.totalorder %s1041, 1
        %s1045 = scalar_select %p1044, %s1041, 1
        %p1046 = scmp.lt.s32.totalorder %s32, 0
        %s1047 = scalar_select %p1046, %s32, 0
        %s1048 = sadd.s32 %s1047, %s1045
        %s1049 = smul.addr %s1043, 2
        %s1050 = sadd.s32 %s1048, %s1049
        %s1051 = smul.addr %s1050, 4
        %s1052 = scalar_lea.vmem %s8, %s1051
      $region76: #{ar_forward.12} parent=71 // pred_fallthru
        _
      // Predicated region
      $region77: #{ar_forward.12} parent=71 // pred_check
        %p1053 = pneg %p310
      $region78: #{ar_forward.12} parent=71 // pred_check_branch
        %1055 = sbr.rel (%p1053) target = $region80
      $region79: #{ar_forward.12} parent=71 // pred_region
        %s1056 = smul.u32 2, %s31
        %p1057 = scmp.lt.s32.totalorder %s30, 1
        %s1058 = scalar_select %p1057, %s30, 1
        %p1059 = scmp.lt.s32.totalorder %s1056, 1
        %s1060 = scalar_select %p1059, %s1056, 1
        %p1061 = scmp.lt.s32.totalorder %s32, 0
        %s1062 = scalar_select %p1061, %s32, 0
        %s1063 = sadd.s32 %s1062, %s1060
        %s1064 = smul.addr %s1058, 2
        %s1065 = sadd.s32 %s1063, %s1064
        %s1066 = smul.addr %s1065, 4
        %s1067 = scalar_lea.vmem %s9, %s1066
      $region80: #{ar_forward.12} parent=71 // pred_fallthru
        _
      // Predicated region
      $region81: #{ar_forward.12} parent=71 // pred_check
        %p1068 = pneg %p340
      $region82: #{ar_forward.12} parent=71 // pred_check_branch
        %1070 = sbr.rel (%p1068) target = $region84
      $region83: #{ar_forward.12} parent=71 // pred_region
        %s1071 = smul.u32 2, %s31
        %p1072 = scmp.lt.s32.totalorder %s30, 1
        %s1073 = scalar_select %p1072, %s30, 1
        %p1074 = scmp.lt.s32.totalorder %s1071, 1
        %s1075 = scalar_select %p1074, %s1071, 1
        %p1076 = scmp.lt.s32.totalorder %s32, 0
        %s1077 = scalar_select %p1076, %s32, 0
        %s1078 = sadd.s32 %s1077, %s1075
        %s1079 = smul.addr %s1073, 2
        %s1080 = sadd.s32 %s1078, %s1079
        %s1081 = smul.addr %s1080, 4
        %s1082 = scalar_lea.vmem %s10, %s1081
      $region84: #{ar_forward.12} parent=71 // pred_fallthru
        _
    $region72: #{ar_forward.12} parent=5 // pred_fallthru
      _
  $region6: #{ar_forward.12} parent=0 // loop_footer
    %s21 = sadd.s32 1, %s17
  $region7: #{ar_forward.12} parent=0 // loop_footer_branch
    %16 = sbr.rel target = $region3
  $region8: #{ar_forward.12} parent=0 // loop_exit
    _

// kernel: ar_forward.13
$region0: #{ar_forward.13}
  #allocation0 [shape = 'u32[]', space=smem, size = 0x4, offset = 0x4, fixed_abs, tag = 'smem constant byte address 0x4 - core index']
  #allocation1 [shape = 'u32[144,128]{1,0:T(1,128)}', space=vmem, size = 0x12000, scoped, tag = 'internal scratch']
  #allocation2 [shape = 'f32[16,1]{1,0:T(8,128)}', space=vmem, size = 0x2000, scoped, tag = 'scratch operand']
  #allocation3 [shape = 'f32[16,1]{1,0:T(8,128)}', space=vmem, size = 0x2000, scoped, tag = 'scratch operand']
  #allocation4 [shape = 'f32[16,8]{1,0:T(8,128)}', space=vmem, size = 0x2000, scoped, tag = 'scratch operand']
  %s0 = inlined_call_operand.vmem [shape: bf16[2,4,16,8], index: 0, kind: input, shape index: {}]
  %s1 = inlined_call_operand.vmem [shape: bf16[2,4,16,8], index: 1, kind: input, shape index: {}]
  %s2 = inlined_call_operand.vmem [shape: bf16[2,4,16,8], index: 2, kind: input, shape index: {}]
  %s3 = inlined_call_operand.vmem [shape: bf16[2,4,16,8], index: 3, kind: output, shape index: {}]
  %s4 = sld [smem:[#allocation0]]
  $region61: #{ar_forward.13} parent=0
    _
  %s6 = ssub.s32 1, %s4
  %s7 = scalar_select 0, %s6, %s4
  loop: start=0, step=1, limit=10
  $region2: #{ar_forward.13} parent=0 // loop_pre_header
    _
  $region3: #{ar_forward.13} parent=0 // loop_header
    %s9 = sphi 0, %s13
    %p10 = scmp.ge.s32.totalorder %s9, 10
    %s16 = sphi 0, %s42
    %s17 = sphi 0, %s38
    %s18 = sphi 0, %s34
    %s19 = sphi 0, %s30
    %s20 = sphi 0, %s16
    %s21 = sphi 0, %s17
    %s22 = sphi 0, %s18
    %s23 = sphi 0, %s19
    %s24 = sphi 0, %s20
    %s25 = sphi 0, %s21
    %s26 = sphi 0, %s22
    %s27 = sphi 0, %s23
    %s49 = sphi 0, %s51
    %s52 = sphi 0, %s49
    %s53 = sphi 0, %s52
    %s69 = sphi 0, %s53
    %s83 = sphi 0, %s85
    %s86 = sphi 0, %s83
    %s87 = sphi 0, %s86
    %s103 = sphi 0, %s87
    %s117 = sphi 0, %s119
    %s120 = sphi 0, %s117
    %s121 = sphi 0, %s120
    %s137 = sphi 0, %s121
    %s147 = sphi 0, %s149
    %s150 = sphi 0, %s147
    %s151 = sphi 0, %s150
    %s167 = sphi 0, %s151
  $region4: #{ar_forward.13} parent=0 // loop_header_branch
    %12 = sbr.rel (%p10) target = $region8
  $region5: #{ar_forward.13} parent=0 // loop_body
    %s14 = ssub.s32 %s9, 1
    %s15 = ssub.s32 %s9, 2
    %s28 = sadd.s32 1, %s19
    %p29 = scmp.ge.s32.totalorder %s28, 1
    %s30 = scalar_select %p29, 0, %s28
    %s31 = sadd.s32 1, %s18
    %s32 = scalar_select %p29, %s31, %s18
    %p33 = scmp.ge.s32.totalorder %s32, 1
    %s34 = scalar_select %p33, 0, %s32
    %s35 = sadd.s32 1, %s17
    %s36 = scalar_select %p33, %s35, %s17
    %p37 = scmp.ge.s32.totalorder %s36, 4
    %s38 = scalar_select %p37, 0, %s36
    %s39 = sadd.s32 1, %s16
    %s40 = scalar_select %p37, %s39, %s16
    %p41 = scmp.ge.s32.totalorder %s40, 2
    %s42 = scalar_select %p41, 0, %s40
    %s43 = ssub.s32 %s16, %s42
    %s44 = ssub.s32 %s17, %s38
    %s45 = sor.u32 %s43, %s44
    %s46 = ssub.s32 %s18, %s34
    %s47 = sor.u32 %s45, %s46
    %p48 = scmp.eq.s32.totalorder %s47, 0
    %s50 = sadd.s32 %s49, 1
    %s51 = scalar_select %p48, %s49, %s50
    %p54 = pneg %p48
    %p55 = scmp.eq.s32.totalorder %s9, 7
    %p56 = por %p54, %p55
    %p57 = scmp.ne.s32.totalorder %s49, %s52
    %p58 = scmp.eq.s32.totalorder %s9, 0
    %p59 = por %p57, %p58
    %p60 = scmp.ne.s32.totalorder %s49, %s52
    %p61 = scmp.eq.s32.totalorder %s14, 7
    %p62 = por %p60, %p61
    %p63 = scmp.ne.s32.totalorder %s52, %s53
    %p64 = scmp.eq.s32.totalorder %s14, 0
    %p65 = por %p63, %p64
    %p66 = scmp.ne.s32.totalorder %s52, %s53
    %p67 = scmp.eq.s32.totalorder %s15, 7
    %p68 = por %p66, %p67
    %p70 = scmp.ne.s32.totalorder %s53, %s69
    %p71 = scmp.eq.s32.totalorder %s15, 0
    %p72 = por %p70, %p71
    %p73 = scmp.lt.s32.totalorder %s19, %s18
    %s74 = scalar_select %p73, %s19, %s18
    %p75 = scmp.lt.s32.totalorder %s30, %s34
    %s76 = scalar_select %p75, %s30, %s34
    %s77 = ssub.s32 %s16, %s42
    %s78 = ssub.s32 %s17, %s38
    %s79 = sor.u32 %s77, %s78
    %s80 = ssub.s32 %s74, %s76
    %s81 = sor.u32 %s79, %s80
    %p82 = scmp.eq.s32.totalorder %s81, 0
    %s84 = sadd.s32 %s83, 1
    %s85 = scalar_select %p82, %s83, %s84
    %p88 = pneg %p82
    %p89 = scmp.eq.s32.totalorder %s9, 7
    %p90 = por %p88, %p89
    %p91 = scmp.ne.s32.totalorder %s83, %s86
    %p92 = scmp.eq.s32.totalorder %s9, 0
    %p93 = por %p91, %p92
    %p94 = scmp.ne.s32.totalorder %s83, %s86
    %p95 = scmp.eq.s32.totalorder %s14, 7
    %p96 = por %p94, %p95
    %p97 = scmp.ne.s32.totalorder %s86, %s87
    %p98 = scmp.eq.s32.totalorder %s14, 0
    %p99 = por %p97, %p98
    %p100 = scmp.ne.s32.totalorder %s86, %s87
    %p101 = scmp.eq.s32.totalorder %s15, 7
    %p102 = por %p100, %p101
    %p104 = scmp.ne.s32.totalorder %s87, %s103
    %p105 = scmp.eq.s32.totalorder %s15, 0
    %p106 = por %p104, %p105
    %p107 = scmp.lt.s32.totalorder %s19, %s18
    %s108 = scalar_select %p107, %s19, %s18
    %p109 = scmp.lt.s32.totalorder %s30, %s34
    %s110 = scalar_select %p109, %s30, %s34
    %s111 = ssub.s32 %s16, %s42
    %s112 = ssub.s32 %s17, %s38
    %s113 = sor.u32 %s111, %s112
    %s114 = ssub.s32 %s108, %s110
    %s115 = sor.u32 %s113, %s114
    %p116 = scmp.eq.s32.totalorder %s115, 0
    %s118 = sadd.s32 %s117, 1
    %s119 = scalar_select %p116, %s117, %s118
    %p122 = pneg %p116
    %p123 = scmp.eq.s32.totalorder %s9, 7
    %p124 = por %p122, %p123
    %p125 = scmp.ne.s32.totalorder %s117, %s120
    %p126 = scmp.eq.s32.totalorder %s9, 0
    %p127 = por %p125, %p126
    %p128 = scmp.ne.s32.totalorder %s117, %s120
    %p129 = scmp.eq.s32.totalorder %s14, 7
    %p130 = por %p128, %p129
    %p131 = scmp.ne.s32.totalorder %s120, %s121
    %p132 = scmp.eq.s32.totalorder %s14, 0
    %p133 = por %p131, %p132
    %p134 = scmp.ne.s32.totalorder %s120, %s121
    %p135 = scmp.eq.s32.totalorder %s15, 7
    %p136 = por %p134, %p135
    %p138 = scmp.ne.s32.totalorder %s121, %s137
    %p139 = scmp.eq.s32.totalorder %s15, 0
    %p140 = por %p138, %p139
    %s141 = ssub.s32 %s16, %s42
    %s142 = ssub.s32 %s17, %s38
    %s143 = sor.u32 %s141, %s142
    %s144 = ssub.s32 %s18, %s34
    %s145 = sor.u32 %s143, %s144
    %p146 = scmp.eq.s32.totalorder %s145, 0
    %s148 = sadd.s32 %s147, 1
    %s149 = scalar_select %p146, %s147, %s148
    %p152 = pneg %p146
    %p153 = scmp.eq.s32.totalorder %s9, 7
    %p154 = por %p152, %p153
    %p155 = scmp.ne.s32.totalorder %s147, %s150
    %p156 = scmp.eq.s32.totalorder %s9, 0
    %p157 = por %p155, %p156
    %p158 = scmp.ne.s32.totalorder %s147, %s150
    %p159 = scmp.eq.s32.totalorder %s14, 7
    %p160 = por %p158, %p159
    %p161 = scmp.ne.s32.totalorder %s150, %s151
    %p162 = scmp.eq.s32.totalorder %s14, 0
    %p163 = por %p161, %p162
    %p164 = scmp.ne.s32.totalorder %s150, %s151
    %p165 = scmp.eq.s32.totalorder %s15, 7
    %p166 = por %p164, %p165
    %p168 = scmp.ne.s32.totalorder %s151, %s167
    %p169 = scmp.eq.s32.totalorder %s15, 0
    %p170 = por %p168, %p169
    %p171 = scmp.le.s32.totalorder 1, %s9
    %p172 = scmp.lt.s32.totalorder %s9, 9
    %p173 = pnand %p171, %p172
    %p174 = pneg %p173
    // Predicated region
    $region9: #{ar_forward.13} parent=5 // pred_check
      _
    $region10: #{ar_forward.13} parent=5 // pred_check_branch
      %176 = sbr.rel (%p173) target = $region12
    $region11: #{ar_forward.13} parent=5 // pred_region
      %s177 = ssub.s32 %s9, 1
    $region12: #{ar_forward.13} parent=5 // pred_fallthru
      _
    %p178 = scmp.lt.s32.totalorder %s9, 8
    // Predicated region
    $region13: #{ar_forward.13} parent=5 // pred_check
      %p179 = pneg %p178
    $region14: #{ar_forward.13} parent=5 // pred_check_branch
      %181 = sbr.rel (%p179) target = $region16
    $region15: #{ar_forward.13} parent=5 // pred_region
      // Predicated region
      $region17: #{ar_forward.13} parent=15 // pred_check
        %p182 = pneg %p59
      $region18: #{ar_forward.13} parent=15 // pred_check_branch
        %184 = sbr.rel (%p182) target = $region20
      $region19: #{ar_forward.13} parent=15 // pred_region
        %s185 = smul.u32 2, %s18
        %p186 = scmp.lt.s32.totalorder %s16, 1
        %s187 = scalar_select %p186, %s16, 1
        %p188 = scmp.lt.s32.totalorder %s17, 3
        %s189 = scalar_select %p188, %s17, 3
        %p190 = scmp.lt.s32.totalorder %s185, 1
        %s191 = scalar_select %p190, %s185, 1
        %s192 = smul.addr %s189, 2
        %s193 = sadd.s32 %s191, %s192
        %s194 = smul.addr %s187, 8
        %s195 = sadd.s32 %s193, %s194
        %s196 = smul.addr %s195, 4
        %s197 = scalar_lea.vmem %s0, %s196
        %s198 = smul.u32 2, %s18
      $region20: #{ar_forward.13} parent=15 // pred_fallthru
        _
      // Predicated region
      $region21: #{ar_forward.13} parent=15 // pred_check
        %p199 = pneg %p93
      $region22: #{ar_forward.13} parent=15 // pred_check_branch
        %201 = sbr.rel (%p199) target = $region24
      $region23: #{ar_forward.13} parent=15 // pred_region
        %p202 = scmp.lt.s32.totalorder %s19, %s18
        %s203 = scalar_select %p202, %s19, %s18
        %s204 = smul.u32 2, %s203
        %p205 = scmp.lt.s32.totalorder %s16, 1
        %s206 = scalar_select %p205, %s16, 1
        %p207 = scmp.lt.s32.totalorder %s17, 3
        %s208 = scalar_select %p207, %s17, 3
        %p209 = scmp.lt.s32.totalorder %s204, 1
        %s210 = scalar_select %p209, %s204, 1
        %s211 = smul.addr %s208, 2
        %s212 = sadd.s32 %s210, %s211
        %s213 = smul.addr %s206, 8
        %s214 = sadd.s32 %s212, %s213
        %s215 = smul.addr %s214, 4
        %s216 = scalar_lea.vmem %s1, %s215
        %p217 = scmp.lt.s32.totalorder %s19, %s18
        %s218 = scalar_select %p217, %s19, %s18
        %s219 = smul.u32 2, %s218
      $region24: #{ar_forward.13} parent=15 // pred_fallthru
        _
      // Predicated region
      $region25: #{ar_forward.13} parent=15 // pred_check
        %p220 = pneg %p127
      $region26: #{ar_forward.13} parent=15 // pred_check_branch
        %222 = sbr.rel (%p220) target = $region28
      $region27: #{ar_forward.13} parent=15 // pred_region
        %p223 = scmp.lt.s32.totalorder %s19, %s18
        %s224 = scalar_select %p223, %s19, %s18
        %s225 = smul.u32 2, %s224
        %p226 = scmp.lt.s32.totalorder %s16, 1
        %s227 = scalar_select %p226, %s16, 1
        %p228 = scmp.lt.s32.totalorder %s17, 3
        %s229 = scalar_select %p228, %s17, 3
        %p230 = scmp.lt.s32.totalorder %s225, 1
        %s231 = scalar_select %p230, %s225, 1
        %s232 = smul.addr %s229, 2
        %s233 = sadd.s32 %s231, %s232
        %s234 = smul.addr %s227, 8
        %s235 = sadd.s32 %s233, %s234
        %s236 = smul.addr %s235, 4
        %s237 = scalar_lea.vmem %s2, %s236
        %p238 = scmp.lt.s32.totalorder %s19, %s18
        %s239 = scalar_select %p238, %s19, %s18
        %s240 = smul.u32 2, %s239
      $region28: #{ar_forward.13} parent=15 // pred_fallthru
        _
    $region16: #{ar_forward.13} parent=5 // pred_fallthru
      _
    %p241 = scmp.le.s32.totalorder 1, %s9
    %p242 = scmp.lt.s32.totalorder %s9, 9
    %p243 = pnand %p241, %p242
    %p244 = pneg %p243
    // Predicated region
    $region29: #{ar_forward.13} parent=5 // pred_check
      _
    $region30: #{ar_forward.13} parent=5 // pred_check_branch
      %246 = sbr.rel (%p243) target = $region32
    $region31: #{ar_forward.13} parent=5 // pred_region
      %s247 = ssub.s32 %s9, 1
      %s248 = smul.u32 2, %s22
      %p249 = scmp.lt.s32.totalorder %s20, 1
      %s250 = scalar_select %p249, %s20, 1
      %p251 = scmp.lt.s32.totalorder %s21, 3
      %s252 = scalar_select %p251, %s21, 3
      %p253 = scmp.lt.s32.totalorder %s248, 1
      %s254 = scalar_select %p253, %s248, 1
      %s255 = smul.addr %s252, 2
      %s256 = sadd.s32 %s254, %s255
      %s257 = smul.addr %s250, 8
      %s258 = sadd.s32 %s256, %s257
      %s259 = smul.addr %s258, 4
      %s260 = scalar_lea.vmem %s0, %s259
      %p261 = pneg %p65
      %p262 = pneg %p62
      %p263 = scmp.lt.s32.totalorder %s23, %s22
      %s264 = scalar_select %p263, %s23, %s22
      %s265 = smul.u32 2, %s264
      %p266 = scmp.lt.s32.totalorder %s20, 1
      %s267 = scalar_select %p266, %s20, 1
      %p268 = scmp.lt.s32.totalorder %s21, 3
      %s269 = scalar_select %p268, %s21, 3
      %p270 = scmp.lt.s32.totalorder %s265, 1
      %s271 = scalar_select %p270, %s265, 1
      %s272 = smul.addr %s269, 2
      %s273 = sadd.s32 %s271, %s272
      %s274 = smul.addr %s267, 8
      %s275 = sadd.s32 %s273, %s274
      %s276 = smul.addr %s275, 4
      %s277 = scalar_lea.vmem %s1, %s276
      %p278 = pneg %p99
      %p279 = pneg %p96
      %p280 = scmp.lt.s32.totalorder %s23, %s22
      %s281 = scalar_select %p280, %s23, %s22
      %s282 = smul.u32 2, %s281
      %p283 = scmp.lt.s32.totalorder %s20, 1
      %s284 = scalar_select %p283, %s20, 1
      %p285 = scmp.lt.s32.totalorder %s21, 3
      %s286 = scalar_select %p285, %s21, 3
      %p287 = scmp.lt.s32.totalorder %s282, 1
      %s288 = scalar_select %p287, %s282, 1
      %s289 = smul.addr %s286, 2
      %s290 = sadd.s32 %s288, %s289
      %s291 = smul.addr %s284, 8
      %s292 = sadd.s32 %s290, %s291
      %s293 = smul.addr %s292, 4
      %s294 = scalar_lea.vmem %s2, %s293
      %p295 = pneg %p133
      %p296 = pneg %p130
      %p297 = pneg %p163
      %p298 = pneg %p160
      %s299 = smul.u32 2, %s22
      %p300 = scmp.lt.s32.totalorder %s20, 1
      %s301 = scalar_select %p300, %s20, 1
      %p302 = scmp.lt.s32.totalorder %s21, 3
      %s303 = scalar_select %p302, %s21, 3
      %p304 = scmp.lt.s32.totalorder %s299, 1
      %s305 = scalar_select %p304, %s299, 1
      %s306 = smul.addr %s303, 2
      %s307 = sadd.s32 %s305, %s306
      %s308 = smul.addr %s301, 8
      %s309 = sadd.s32 %s307, %s308
      %s310 = smul.addr %s309, 4
      %s311 = scalar_lea.vmem %s3, %s310
      %s312 = smul.u32 2, %s22
      %p313 = scmp.lt.s32.totalorder %s20, 1
      %s314 = scalar_select %p313, %s20, 1
      %p315 = scmp.lt.s32.totalorder %s21, 3
      %s316 = scalar_select %p315, %s21, 3
      %p317 = scmp.lt.s32.totalorder %s312, 1
      %s318 = scalar_select %p317, %s312, 1
      %s319 = smul.addr %s316, 2
      %s320 = sadd.s32 %s318, %s319
      %s321 = smul.addr %s314, 8
      %s322 = sadd.s32 %s320, %s321
      %s323 = smul.addr %s322, 4
      %s324 = scalar_lea.vmem %s0, %s323
      %s325 = smul.u32 2, %s22
      %p326 = scmp.lt.s32.totalorder %s23, %s22
      %s327 = scalar_select %p326, %s23, %s22
      %s328 = smul.u32 2, %s327
      %p329 = scmp.lt.s32.totalorder %s20, 1
      %s330 = scalar_select %p329, %s20, 1
      %p331 = scmp.lt.s32.totalorder %s21, 3
      %s332 = scalar_select %p331, %s21, 3
      %p333 = scmp.lt.s32.totalorder %s328, 1
      %s334 = scalar_select %p333, %s328, 1
      %s335 = smul.addr %s332, 2
      %s336 = sadd.s32 %s334, %s335
      %s337 = smul.addr %s330, 8
      %s338 = sadd.s32 %s336, %s337
      %s339 = smul.addr %s338, 4
      %s340 = scalar_lea.vmem %s1, %s339
      %p341 = scmp.lt.s32.totalorder %s23, %s22
      %s342 = scalar_select %p341, %s23, %s22
      %s343 = smul.u32 2, %s342
      %p344 = scmp.lt.s32.totalorder %s23, %s22
      %s345 = scalar_select %p344, %s23, %s22
      %s346 = smul.u32 2, %s345
      %p347 = scmp.lt.s32.totalorder %s20, 1
      %s348 = scalar_select %p347, %s20, 1
      %p349 = scmp.lt.s32.totalorder %s21, 3
      %s350 = scalar_select %p349, %s21, 3
      %p351 = scmp.lt.s32.totalorder %s346, 1
      %s352 = scalar_select %p351, %s346, 1
      %s353 = smul.addr %s350, 2
      %s354 = sadd.s32 %s352, %s353
      %s355 = smul.addr %s348, 8
      %s356 = sadd.s32 %s354, %s355
      %s357 = smul.addr %s356, 4
      %s358 = scalar_lea.vmem %s2, %s357
      %p359 = scmp.lt.s32.totalorder %s23, %s22
      %s360 = scalar_select %p359, %s23, %s22
      %s361 = smul.u32 2, %s360
      %s362 = smul.u32 2, %s22
      %p363 = scmp.lt.s32.totalorder %s20, 1
      %s364 = scalar_select %p363, %s20, 1
      %p365 = scmp.lt.s32.totalorder %s21, 3
      %s366 = scalar_select %p365, %s21, 3
      %p367 = scmp.lt.s32.totalorder %s362, 1
      %s368 = scalar_select %p367, %s362, 1
      %s369 = smul.addr %s366, 2
      %s370 = sadd.s32 %s368, %s369
      %s371 = smul.addr %s364, 8
      %s372 = sadd.s32 %s370, %s371
      %s373 = smul.addr %s372, 4
      %s374 = scalar_lea.vmem %s3, %s373
      %s375 = smul.u32 2, %s22
      %p377 = scmp.eq.s32.totalorder %s23, 0
      // Predicated region
      $region33: #{ar_forward.13} parent=31 // pred_check
        %p378 = pneg %p377
      $region34: #{ar_forward.13} parent=31 // pred_check_branch
        %380 = sbr.rel (%p378) target = $region36
      $region35: #{ar_forward.13} parent=31 // pred_region
        %vm381 = vcmask 7168
        %382 = vst.msk [vmem:[#allocation2] sm:$0xff] %vm381, -inf
        %383 = vst.msk [vmem:[#allocation2 + $0x8] sm:$0xff] %vm381, -inf
        %384 = vst.msk [vmem:[#allocation3] sm:$0xff] %vm381, 0.0
        %385 = vst.msk [vmem:[#allocation3 + $0x8] sm:$0xff] %vm381, 0.0
        %vm386 = vcmask 64512
        %387 = vst.msk [vmem:[#allocation4] sm:$0xff] %vm386, 0.0
        %388 = vst.msk [vmem:[#allocation4 + $0x8] sm:$0xff] %vm386, 0.0
      $region36: #{ar_forward.13} parent=31 // pred_fallthru
        _
      %p389 = scmp.lt.s32.totalorder %s23, %s22
      // Predicated region
      $region37: #{ar_forward.13} parent=31 // pred_check
        %p390 = pneg %p389
      $region38: #{ar_forward.13} parent=31 // pred_check_branch
        %392 = sbr.rel (%p390) target = $region40
      $region39: #{ar_forward.13} parent=31 // pred_region
        %v393 = vld [vmem:[%s324] sm:$0xf]
        %v394 = vld [vmem:[%s324 + $0x4] sm:$0xf]
        %v395 = vld [vmem:[%s340] sm:$0xf]
        %v396 = vld [vmem:[%s340 + $0x4] sm:$0xf]
        %v399 = vunpack.c.l.b16 %v393
        %v400 = vunpack.c.l.b16 %v394
        %v401 = vpack.c.b16 %v400, %v399
        %v404 = vunpack.c.l.b16 %v395
        %v405 = vunpack.c.l.b16 %v396
        %v406 = vpack.c.b16 %v405, %v404
        %vm407 = vcmask 64512
        %v409 = vsel %vm407, %v401, 0
        %v412 = vsel %vm407, %v406, 0
        %414 = vmatprep.subr.bf16.mxu0 0
        %415 = vmatpush1.bf16.xpose.msra.mxu0 0
        %416 = vmatprep.subr.bf16.mxu0 0
        %417 = vmatpush1.bf16.xpose.msra.mxu0 0
        %418 = vmatprep.subr.bf16.mxu0 0
        %419 = vmatpush1.bf16.xpose.msra.mxu0 0
        %420 = vmatprep.subr.bf16.mxu0 0
        %421 = vmatpush1.bf16.xpose.msra.mxu0 0
        %422 = vmatprep.subr.bf16.mxu0 0
        %423 = vmatpush1.bf16.xpose.msra.mxu0 0
        %424 = vmatprep.subr.bf16.mxu0 0
        %425 = vmatpush1.bf16.xpose.msra.mxu0 0
        %426 = vmatprep.subr.bf16.mxu0 0
        %427 = vmatpush1.bf16.xpose.msra.mxu0 0
        %428 = vmatprep.subr.bf16.mxu0 0
        %429 = vmatpush1.bf16.xpose.msra.mxu0 %v412
        %430 = vmatprep.subr.bf16.mxu0 0
        %431 = vmatpush2.bf16.xpose.msra.mxu0 0
        %432 = vmatprep.subr.bf16.mxu0 0
        %433 = vmatpush2.bf16.xpose.msra.mxu0 0
        %434 = vmatprep.subr.bf16.mxu0 0
        %435 = vmatpush2.bf16.xpose.msra.mxu0 0
        %436 = vmatprep.subr.bf16.mxu0 0
        %437 = vmatpush2.bf16.xpose.msra.mxu0 0
        %438 = vmatprep.subr.bf16.mxu0 0
        %439 = vmatpush2.bf16.xpose.msra.mxu0 0
        %440 = vmatprep.subr.bf16.mxu0 0
        %441 = vmatpush2.bf16.xpose.msra.mxu0 0
        %442 = vmatprep.subr.bf16.mxu0 0
        %443 = vmatpush2.bf16.xpose.msra.mxu0 0
        %444 = vmatprep.subr.bf16.mxu0 0
        %445 = vmatpush2.bf16.xpose.msra.mxu0 0
        %446 = vmatprep.mubr.bf16.mxu0 0
        %447 = vmatmul.mubr.bf16.gmra.mxu0 %v409
        %v448 = vpop.f32.mrf.mxu0
        %v449 = vadd.f32 0.0, %v448
        %v450 = vpop.f32.mrf.mxu0
        %v451 = vpop.f32.mrf.mxu0
        %v452 = vadd.f32 0.0, %v451
        %v453 = vpop.f32.mrf.mxu0
        %454 = vdwg.mxu0
        %v455 = vmul.f32 %v449, 0.35355338
        %v456 = vmul.f32 %v452, 0.35355338
        %v457 = vld [vmem:[#allocation2] sm:$0xff]
        %v458 = vld [vmem:[#allocation2 + $0x8] sm:$0xff]
        %vm459 = vcmask 130048
        %v460 = vsel %vm459, %v455, -inf
        %461 = vmax.xlane.f32.xlu0 %v460
        %v462 = vpop.xlane.xlu0 %461
        %v463 = vsel %vm459, %v456, -inf
        %464 = vmax.xlane.f32.xlu0 %v463
        %v465 = vpop.xlane.xlu0 %464
        %v466 = vmax.f32 %v457, %v462
        %v467 = vmax.f32 %v458, %v465
        %v468 = vsub.f32 %v457, %v466
        %v469 = vsub.f32 %v458, %v467
        %v470 = vmul.f32 %v468, 1.442695
        %v471 = vpow.pop %v470
        %v472 = vmul.f32 %v469, 1.442695
        %v473 = vpow.pop %v472
        %475 = vset.pattern.permute.xlu0 0
        %476 = vperm.xlu0 %475, %v466
        %v477 = vpop.permute.xlu0 %476
        %480 = vset.pattern.permute.xlu0 0
        %481 = vperm.xlu0 %480, %v467
        %v482 = vpop.permute.xlu0 %481
        %v484 = vsub.f32 %v455, %v477
        %v485 = vsub.f32 %v456, %v482
        %v486 = vmul.f32 %v484, 1.442695
        %v487 = vpow.pop %v486
        %v488 = vmul.f32 %v485, 1.442695
        %v489 = vpow.pop %v488
        %v490 = vld [vmem:[#allocation3] sm:$0xff]
        %v491 = vld [vmem:[#allocation3 + $0x8] sm:$0xff]
        %v492 = vmul.f32 %v471, %v490
        %v493 = vmul.f32 %v473, %v491
        %v494 = vsel %vm459, %v487, 0.0
        %495 = vadd.xlane.f32.xlu0 %v494
        %v496 = vpop.xlane.xlu0 %495
        %v497 = vsel %vm459, %v489, 0.0
        %498 = vadd.xlane.f32.xlu0 %v497
        %v499 = vpop.xlane.xlu0 %498
        %v500 = vadd.f32 %v492, %v496
        %v501 = vadd.f32 %v493, %v499
        %vm502 = vcmask 7168
        %503 = vst.msk [vmem:[#allocation3] sm:$0xff] %vm502, %v500
        %504 = vst.msk [vmem:[#allocation3 + $0x8] sm:$0xff] %vm502, %v501
        %v505 = vld [vmem:[#allocation4] sm:$0xff]
        %v506 = vld [vmem:[#allocation4 + $0x8] sm:$0xff]
        %508 = vset.pattern.permute.xlu0 0
        %509 = vperm.xlu0 %508, %v471
        %v510 = vpop.permute.xlu0 %509
        %513 = vset.pattern.permute.xlu0 0
        %514 = vperm.xlu0 %513, %v473
        %v515 = vpop.permute.xlu0 %514
        %v517 = vmul.f32 %v510, %v505
        %v518 = vmul.f32 %v515, %v506
        %v519 = vpack.c.bf16 %v489, %v487
        %v520 = vld [vmem:[%s358] sm:$0xf]
        %v521 = vld [vmem:[%s358 + $0x4] sm:$0xf]
        %v524 = vunpack.c.l.b16 %v520
        %v525 = vunpack.c.l.b16 %v521
        %v526 = vpack.c.b16 %v525, %v524
        %v529 = vsel %vm459, %v519, 0
        %531 = vmatprep.subr.bf16.mxu0 0
        %532 = vmatpush1.bf16.msra.mxu0 0
        %533 = vmatprep.subr.bf16.mxu0 0
        %534 = vmatpush1.bf16.msra.mxu0 0
        %535 = vmatprep.subr.bf16.mxu0 0
        %536 = vmatpush1.bf16.msra.mxu0 0
        %537 = vmatprep.subr.bf16.mxu0 0
        %538 = vmatpush1.bf16.msra.mxu0 0
        %539 = vmatprep.subr.bf16.mxu0 0
        %540 = vmatpush1.bf16.msra.mxu0 0
        %541 = vmatprep.subr.bf16.mxu0 0
        %542 = vmatpush1.bf16.msra.mxu0 0
        %543 = vmatprep.subr.bf16.mxu0 0
        %544 = vmatpush1.bf16.msra.mxu0 0
        %545 = vmatprep.subr.bf16.mxu0 0
        %546 = vmatpush1.bf16.msra.mxu0 %v526
        %547 = vmatprep.subr.bf16.mxu0 0
        %548 = vmatpush2.bf16.msra.mxu0 0
        %549 = vmatprep.subr.bf16.mxu0 0
        %550 = vmatpush2.bf16.msra.mxu0 0
        %551 = vmatprep.subr.bf16.mxu0 0
        %552 = vmatpush2.bf16.msra.mxu0 0
        %553 = vmatprep.subr.bf16.mxu0 0
        %554 = vmatpush2.bf16.msra.mxu0 0
        %555 = vmatprep.subr.bf16.mxu0 0
        %556 = vmatpush2.bf16.msra.mxu0 0
        %557 = vmatprep.subr.bf16.mxu0 0
        %558 = vmatpush2.bf16.msra.mxu0 0
        %559 = vmatprep.subr.bf16.mxu0 0
        %560 = vmatpush2.bf16.msra.mxu0 0
        %561 = vmatprep.subr.bf16.mxu0 0
        %562 = vmatpush2.bf16.msra.mxu0 0
        %563 = vmatprep.mubr.bf16.mxu0 0
        %564 = vmatmul.mubr.bf16.gmra.mxu0 %v529
        %v565 = vpop.f32.mrf.mxu0
        %v566 = vadd.f32 0.0, %v565
        %v567 = vpop.f32.mrf.mxu0
        %v568 = vpop.f32.mrf.mxu0
        %v569 = vadd.f32 0.0, %v568
        %v570 = vpop.f32.mrf.mxu0
        %571 = vdwg.mxu0
        %v572 = vadd.f32 %v517, %v566
        %v573 = vadd.f32 %v518, %v569
        %574 = vst.msk [vmem:[#allocation4] sm:$0xff] %vm407, %v572
        %575 = vst.msk [vmem:[#allocation4 + $0x8] sm:$0xff] %vm407, %v573
        %576 = vst.msk [vmem:[#allocation2] sm:$0xff] %vm502, %v466
        %577 = vst.msk [vmem:[#allocation2 + $0x8] sm:$0xff] %vm502, %v467
      $region40: #{ar_forward.13} parent=31 // pred_fallthru
        _
      %p578 = scmp.eq.s32.totalorder %s23, %s22
      // Predicated region
      $region41: #{ar_forward.13} parent=31 // pred_check
        %p579 = pneg %p578
      $region42: #{ar_forward.13} parent=31 // pred_check_branch
        %581 = sbr.rel (%p579) target = $region44
      $region43: #{ar_forward.13} parent=31 // pred_region
        %v582 = vld [vmem:[%s324] sm:$0xf]
        %v583 = vld [vmem:[%s324 + $0x4] sm:$0xf]
        %v584 = vld [vmem:[%s340] sm:$0xf]
        %v585 = vld [vmem:[%s340 + $0x4] sm:$0xf]
        %v588 = vunpack.c.l.b16 %v582
        %v589 = vunpack.c.l.b16 %v583
        %v590 = vpack.c.b16 %v589, %v588
        %v593 = vunpack.c.l.b16 %v584
        %v594 = vunpack.c.l.b16 %v585
        %v595 = vpack.c.b16 %v594, %v593
        %vm596 = vcmask 64512
        %v598 = vsel %vm596, %v590, 0
        %v601 = vsel %vm596, %v595, 0
        %603 = vmatprep.subr.bf16.mxu0 0
        %604 = vmatpush1.bf16.xpose.msra.mxu0 0
        %605 = vmatprep.subr.bf16.mxu0 0
        %606 = vmatpush1.bf16.xpose.msra.mxu0 0
        %607 = vmatprep.subr.bf16.mxu0 0
        %608 = vmatpush1.bf16.xpose.msra.mxu0 0
        %609 = vmatprep.subr.bf16.mxu0 0
        %610 = vmatpush1.bf16.xpose.msra.mxu0 0
        %611 = vmatprep.subr.bf16.mxu0 0
        %612 = vmatpush1.bf16.xpose.msra.mxu0 0
        %613 = vmatprep.subr.bf16.mxu0 0
        %614 = vmatpush1.bf16.xpose.msra.mxu0 0
        %615 = vmatprep.subr.bf16.mxu0 0
        %616 = vmatpush1.bf16.xpose.msra.mxu0 0
        %617 = vmatprep.subr.bf16.mxu0 0
        %618 = vmatpush1.bf16.xpose.msra.mxu0 %v601
        %619 = vmatprep.subr.bf16.mxu0 0
        %620 = vmatpush2.bf16.xpose.msra.mxu0 0
        %621 = vmatprep.subr.bf16.mxu0 0
        %622 = vmatpush2.bf16.xpose.msra.mxu0 0
        %623 = vmatprep.subr.bf16.mxu0 0
        %624 = vmatpush2.bf16.xpose.msra.mxu0 0
        %625 = vmatprep.subr.bf16.mxu0 0
        %626 = vmatpush2.bf16.xpose.msra.mxu0 0
        %627 = vmatprep.subr.bf16.mxu0 0
        %628 = vmatpush2.bf16.xpose.msra.mxu0 0
        %629 = vmatprep.subr.bf16.mxu0 0
        %630 = vmatpush2.bf16.xpose.msra.mxu0 0
        %631 = vmatprep.subr.bf16.mxu0 0
        %632 = vmatpush2.bf16.xpose.msra.mxu0 0
        %633 = vmatprep.subr.bf16.mxu0 0
        %634 = vmatpush2.bf16.xpose.msra.mxu0 0
        %635 = vmatprep.mubr.bf16.mxu0 0
        %636 = vmatmul.mubr.bf16.gmra.mxu0 %v598
        %v637 = vpop.f32.mrf.mxu0
        %v638 = vadd.f32 0.0, %v637
        %v639 = vpop.f32.mrf.mxu0
        %v640 = vpop.f32.mrf.mxu0
        %v641 = vadd.f32 0.0, %v640
        %v642 = vpop.f32.mrf.mxu0
        %643 = vdwg.mxu0
        %v644 = vmul.f32 %v638, 0.35355338
        %v645 = vmul.f32 %v641, 0.35355338
        %v646 = vlaneseq
        %v647 = vshrl.u32 %v646, 7
        %v648 = vadd.s32 %v647, 8
        %v649 = vlaneseq
        %v650 = vand.u32 %v649, 127
        %vm651 = vcmp.le.s32.totalorder %v650, %v647
        %vm652 = vcmp.le.s32.totalorder %v650, %v648
        %v653 = vsel %vm651, %v644, -1e+30
        %v654 = vsel %vm652, %v645, -1e+30
        %v655 = vld [vmem:[#allocation2] sm:$0xff]
        %v656 = vld [vmem:[#allocation2 + $0x8] sm:$0xff]
        %vm657 = vcmask 130048
        %v658 = vsel %vm657, %v653, -inf
        %659 = vmax.xlane.f32.xlu0 %v658
        %v660 = vpop.xlane.xlu0 %659
        %v661 = vsel %vm657, %v654, -inf
        %662 = vmax.xlane.f32.xlu0 %v661
        %v663 = vpop.xlane.xlu0 %662
        %v664 = vmax.f32 %v655, %v660
        %v665 = vmax.f32 %v656, %v663
        %v666 = vsub.f32 %v655, %v664
        %v667 = vsub.f32 %v656, %v665
        %v668 = vmul.f32 %v666, 1.442695
        %v669 = vpow.pop %v668
        %v670 = vmul.f32 %v667, 1.442695
        %v671 = vpow.pop %v670
        %673 = vset.pattern.permute.xlu0 0
        %674 = vperm.xlu0 %673, %v664
        %v675 = vpop.permute.xlu0 %674
        %678 = vset.pattern.permute.xlu0 0
        %679 = vperm.xlu0 %678, %v665
        %v680 = vpop.permute.xlu0 %679
        %v682 = vsub.f32 %v653, %v675
        %v683 = vsub.f32 %v654, %v680
        %v684 = vmul.f32 %v682, 1.442695
        %v685 = vpow.pop %v684
        %v686 = vmul.f32 %v683, 1.442695
        %v687 = vpow.pop %v686
        %v688 = vld [vmem:[#allocation3] sm:$0xff]
        %v689 = vld [vmem:[#allocation3 + $0x8] sm:$0xff]
        %v690 = vmul.f32 %v669, %v688
        %v691 = vmul.f32 %v671, %v689
        %v692 = vsel %vm657, %v685, 0.0
        %693 = vadd.xlane.f32.xlu0 %v692
        %v694 = vpop.xlane.xlu0 %693
        %v695 = vsel %vm657, %v687, 0.0
        %696 = vadd.xlane.f32.xlu0 %v695
        %v697 = vpop.xlane.xlu0 %696
        %v698 = vadd.f32 %v690, %v694
        %v699 = vadd.f32 %v691, %v697
        %vm700 = vcmask 7168
        %701 = vst.msk [vmem:[#allocation3] sm:$0xff] %vm700, %v698
        %702 = vst.msk [vmem:[#allocation3 + $0x8] sm:$0xff] %vm700, %v699
        %v703 = vld [vmem:[#allocation4] sm:$0xff]
        %v704 = vld [vmem:[#allocation4 + $0x8] sm:$0xff]
        %706 = vset.pattern.permute.xlu0 0
        %707 = vperm.xlu0 %706, %v669
        %v708 = vpop.permute.xlu0 %707
        %711 = vset.pattern.permute.xlu0 0
        %712 = vperm.xlu0 %711, %v671
        %v713 = vpop.permute.xlu0 %712
        %v715 = vmul.f32 %v708, %v703
        %v716 = vmul.f32 %v713, %v704
        %v717 = vpack.c.bf16 %v687, %v685
        %v718 = vld [vmem:[%s358] sm:$0xf]
        %v719 = vld [vmem:[%s358 + $0x4] sm:$0xf]
        %v722 = vunpack.c.l.b16 %v718
        %v723 = vunpack.c.l.b16 %v719
        %v724 = vpack.c.b16 %v723, %v722
        %v727 = vsel %vm657, %v717, 0
        %729 = vmatprep.subr.bf16.mxu0 0
        %730 = vmatpush1.bf16.msra.mxu0 0
        %731 = vmatprep.subr.bf16.mxu0 0
        %732 = vmatpush1.bf16.msra.mxu0 0
        %733 = vmatprep.subr.bf16.mxu0 0
        %734 = vmatpush1.bf16.msra.mxu0 0
        %735 = vmatprep.subr.bf16.mxu0 0
        %736 = vmatpush1.bf16.msra.mxu0 0
        %737 = vmatprep.subr.bf16.mxu0 0
        %738 = vmatpush1.bf16.msra.mxu0 0
        %739 = vmatprep.subr.bf16.mxu0 0
        %740 = vmatpush1.bf16.msra.mxu0 0
        %741 = vmatprep.subr.bf16.mxu0 0
        %742 = vmatpush1.bf16.msra.mxu0 0
        %743 = vmatprep.subr.bf16.mxu0 0
        %744 = vmatpush1.bf16.msra.mxu0 %v724
        %745 = vmatprep.subr.bf16.mxu0 0
        %746 = vmatpush2.bf16.msra.mxu0 0
        %747 = vmatprep.subr.bf16.mxu0 0
        %748 = vmatpush2.bf16.msra.mxu0 0
        %749 = vmatprep.subr.bf16.mxu0 0
        %750 = vmatpush2.bf16.msra.mxu0 0
        %751 = vmatprep.subr.bf16.mxu0 0
        %752 = vmatpush2.bf16.msra.mxu0 0
        %753 = vmatprep.subr.bf16.mxu0 0
        %754 = vmatpush2.bf16.msra.mxu0 0
        %755 = vmatprep.subr.bf16.mxu0 0
        %756 = vmatpush2.bf16.msra.mxu0 0
        %757 = vmatprep.subr.bf16.mxu0 0
        %758 = vmatpush2.bf16.msra.mxu0 0
        %759 = vmatprep.subr.bf16.mxu0 0
        %760 = vmatpush2.bf16.msra.mxu0 0
        %761 = vmatprep.mubr.bf16.mxu0 0
        %762 = vmatmul.mubr.bf16.gmra.mxu0 %v727
        %v763 = vpop.f32.mrf.mxu0
        %v764 = vadd.f32 0.0, %v763
        %v765 = vpop.f32.mrf.mxu0
        %v766 = vpop.f32.mrf.mxu0
        %v767 = vadd.f32 0.0, %v766
        %v768 = vpop.f32.mrf.mxu0
        %769 = vdwg.mxu0
        %v770 = vadd.f32 %v715, %v764
        %v771 = vadd.f32 %v716, %v767
        %772 = vst.msk [vmem:[#allocation4] sm:$0xff] %vm596, %v770
        %773 = vst.msk [vmem:[#allocation4 + $0x8] sm:$0xff] %vm596, %v771
        %774 = vst.msk [vmem:[#allocation2] sm:$0xff] %vm700, %v664
        %775 = vst.msk [vmem:[#allocation2 + $0x8] sm:$0xff] %vm700, %v665
      $region44: #{ar_forward.13} parent=31 // pred_fallthru
        _
      // Predicated region
      $region45: #{ar_forward.13} parent=31 // pred_check
        %p776 = pneg %p377
      $region46: #{ar_forward.13} parent=31 // pred_check_branch
        %778 = sbr.rel (%p776) target = $region48
      $region47: #{ar_forward.13} parent=31 // pred_region
        %v779 = vld [vmem:[#allocation3] sm:$0xff]
        %v780 = vld [vmem:[#allocation3 + $0x8] sm:$0xff]
        %v781 = vrcp.pop %v779
        %v782 = vrcp.pop %v780
        %v783 = vld [vmem:[#allocation4] sm:$0xff]
        %v784 = vld [vmem:[#allocation4 + $0x8] sm:$0xff]
        %786 = vset.pattern.permute.xlu0 0
        %787 = vperm.xlu0 %786, %v781
        %v788 = vpop.permute.xlu0 %787
        %791 = vset.pattern.permute.xlu0 0
        %792 = vperm.xlu0 %791, %v782
        %v793 = vpop.permute.xlu0 %792
        %v795 = vmul.f32 %v783, %v788
        %v796 = vmul.f32 %v784, %v793
        %v797 = vpack.c.bf16 %v796, %v795
        %v799 = vunpack.c.l.b16 %v797
        %v800 = vunpack.c.h.b16 %v797
        %v801 = vpack.c.b16 %v799, %v799
        %v802 = vpack.c.b16 %v800, %v800
        %vm805 = vcmask 60416
        %806 = vst.msk [vmem:[%s374] sm:$0xf] %vm805, %v801
        %807 = vst.msk [vmem:[%s374 + $0x4] sm:$0xf] %vm805, %v802
      $region48: #{ar_forward.13} parent=31 // pred_fallthru
        _
      %s808 = smul.u32 2, %s22
      %p809 = scmp.lt.s32.totalorder %s20, 1
      %s810 = scalar_select %p809, %s20, 1
      %p811 = scmp.lt.s32.totalorder %s21, 3
      %s812 = scalar_select %p811, %s21, 3
      %p813 = scmp.lt.s32.totalorder %s808, 1
      %s814 = scalar_select %p813, %s808, 1
      %s815 = smul.addr %s812, 2
      %s816 = sadd.s32 %s814, %s815
      %s817 = smul.addr %s810, 8
      %s818 = sadd.s32 %s816, %s817
      %s819 = smul.addr %s818, 4
      %s820 = scalar_lea.vmem %s3, %s819
      // Predicated region
      $region49: #{ar_forward.13} parent=31 // pred_check
        %p821 = pneg %p160
      $region50: #{ar_forward.13} parent=31 // pred_check_branch
        %823 = sbr.rel (%p821) target = $region52
      $region51: #{ar_forward.13} parent=31 // pred_region
        %s824 = smul.u32 2, %s22
      $region52: #{ar_forward.13} parent=31 // pred_fallthru
        _
    $region32: #{ar_forward.13} parent=5 // pred_fallthru
      _
    %p825 = scmp.le.s32.totalorder 2, %s9
    // Predicated region
    $region53: #{ar_forward.13} parent=5 // pred_check
      %p826 = pneg %p825
    $region54: #{ar_forward.13} parent=5 // pred_check_branch
      %828 = sbr.rel (%p826) target = $region56
    $region55: #{ar_forward.13} parent=5 // pred_region
      %s829 = ssub.s32 %s9, 2
      // Predicated region
      $region57: #{ar_forward.13} parent=55 // pred_check
        %p830 = pneg %p166
      $region58: #{ar_forward.13} parent=55 // pred_check_branch
        %832 = sbr.rel (%p830) target = $region60
      $region59: #{ar_forward.13} parent=55 // pred_region
        %s833 = smul.u32 2, %s26
        %p834 = scmp.lt.s32.totalorder %s24, 1
        %s835 = scalar_select %p834, %s24, 1
        %p836 = scmp.lt.s32.totalorder %s25, 3
        %s837 = scalar_select %p836, %s25, 3
        %p838 = scmp.lt.s32.totalorder %s833, 1
        %s839 = scalar_select %p838, %s833, 1
        %s840 = smul.addr %s837, 2
        %s841 = sadd.s32 %s839, %s840
        %s842 = smul.addr %s835, 8
        %s843 = sadd.s32 %s841, %s842
        %s844 = smul.addr %s843, 4
        %s845 = scalar_lea.vmem %s3, %s844
      $region60: #{ar_forward.13} parent=55 // pred_fallthru
        _
    $region56: #{ar_forward.13} parent=5 // pred_fallthru
      _
  $region6: #{ar_forward.13} parent=0 // loop_footer
    %s13 = sadd.s32 1, %s9
  $region7: #{ar_forward.13} parent=0 // loop_footer_branch
    %8 = sbr.rel target = $region3
  $region8: #{ar_forward.13} parent=0 // loop_exit
    _

// kernel: ar_forward.23
$region0: #{ar_forward.23}
  #allocation0 [shape = 'u32[]', space=smem, size = 0x4, offset = 0x4, fixed_abs, tag = 'smem constant byte address 0x4 - core index']
  #allocation1 [shape = 'u32[144,128]{1,0:T(1,128)}', space=vmem, size = 0x12000, scoped, tag = 'internal scratch']
  %s0 = inlined_call_operand.hbm [shape: f32[2,16,64], index: 0, kind: input, shape index: {}, may-alias: {0,2}]
  %s1 = inlined_call_operand.vmem [shape: f32[2,16,1], index: 1, kind: input, shape index: {}]
  %s2 = inlined_call_operand.hbm [shape: f32[2,16,64], index: 2, kind: output, shape index: {}, may-alias: {0,2}]
  %s3 = sld [smem:[#allocation0]]
  $region45: #{ar_forward.23} parent=0
    _
  %s5 = ssub.s32 1, %s3
  %s6 = scalar_select 0, %s5, %s3
  $region1: #{ar_forward.23} parent=0
    #allocation2 [shape = 'u8[16384]{0}', space=vmem, size = 0x4000, scoped, tag = 'input window, operand 0']
    #allocation3 [shape = 's32[2]{0}', space=sflag, size = 0x8, scoped, tag = 'scoped memory for ar_forward.23']
    #allocation4 [shape = 's32[2]{0}', space=sflag, size = 0x8, scoped, tag = 'scoped memory for ar_forward.23']
    #allocation5 [shape = 'u8[16384]{0}', space=vmem, size = 0x4000, scoped, tag = 'output window, operand 0']
    %7 = vsyncpa [#allocation3], 0
    %s8 = scalar_lea.sflag [#allocation3], 1
    %9 = vsyncpa %s8, 0
    %10 = vsyncpa [#allocation4], 0
    %s11 = scalar_lea.sflag [#allocation4], 1
    %12 = vsyncpa %s11, 0
    loop: start=0, step=1, limit=4
    $region2: #{ar_forward.23} parent=1 // loop_pre_header
      _
    $region3: #{ar_forward.23} parent=1 // loop_header
      %s14 = sphi 0, %s18
      %p15 = scmp.ge.s32.totalorder %s14, 4
      %s21 = sphi 0, %s40
      %s22 = sphi 0, %s36
      %s23 = sphi 0, %s32
      %s24 = sphi 0, %s21
      %s25 = sphi 0, %s22
      %s26 = sphi 0, %s23
      %s27 = sphi 0, %s24
      %s28 = sphi 0, %s25
      %s29 = sphi 0, %s26
      %s47 = sphi 0, %s49
      %s50 = sphi 0, %s47
      %s51 = sphi 0, %s50
      %s67 = sphi 0, %s51
      %s75 = sphi 0, %s77
      %s78 = sphi 0, %s75
      %s79 = sphi 0, %s78
      %s95 = sphi 0, %s79
      %s105 = sphi 0, %s107
      %s108 = sphi 0, %s105
      %s109 = sphi 0, %s108
      %s125 = sphi 0, %s109
    $region4: #{ar_forward.23} parent=1 // loop_header_branch
      %17 = sbr.rel (%p15) target = $region8
    $region5: #{ar_forward.23} parent=1 // loop_body
      %s19 = ssub.s32 %s14, 1
      %s20 = ssub.s32 %s14, 2
      %s30 = sadd.s32 1, %s23
      %p31 = scmp.ge.s32.totalorder %s30, 1
      %s32 = scalar_select %p31, 0, %s30
      %s33 = sadd.s32 1, %s22
      %s34 = scalar_select %p31, %s33, %s22
      %p35 = scmp.ge.s32.totalorder %s34, 1
      %s36 = scalar_select %p35, 0, %s34
      %s37 = sadd.s32 1, %s21
      %s38 = scalar_select %p35, %s37, %s21
      %p39 = scmp.ge.s32.totalorder %s38, 2
      %s40 = scalar_select %p39, 0, %s38
      %s41 = ssub.s32 %s21, %s40
      %s42 = ssub.s32 %s22, %s36
      %s43 = sor.u32 %s41, %s42
      %s44 = ssub.s32 %s23, %s32
      %s45 = sor.u32 %s43, %s44
      %p46 = scmp.eq.s32.totalorder %s45, 0
      %s48 = sadd.s32 %s47, 1
      %s49 = scalar_select %p46, %s47, %s48
      %p52 = pneg %p46
      %p53 = scmp.eq.s32.totalorder %s14, 1
      %p54 = por %p52, %p53
      %p55 = scmp.ne.s32.totalorder %s47, %s50
      %p56 = scmp.eq.s32.totalorder %s14, 0
      %p57 = por %p55, %p56
      %p58 = scmp.ne.s32.totalorder %s47, %s50
      %p59 = scmp.eq.s32.totalorder %s19, 1
      %p60 = por %p58, %p59
      %p61 = scmp.ne.s32.totalorder %s50, %s51
      %p62 = scmp.eq.s32.totalorder %s19, 0
      %p63 = por %p61, %p62
      %p64 = scmp.ne.s32.totalorder %s50, %s51
      %p65 = scmp.eq.s32.totalorder %s20, 1
      %p66 = por %p64, %p65
      %p68 = scmp.ne.s32.totalorder %s51, %s67
      %p69 = scmp.eq.s32.totalorder %s20, 0
      %p70 = por %p68, %p69
      %s71 = ssub.s32 %s21, %s40
      %s72 = ssub.s32 %s22, %s36
      %s73 = sor.u32 %s71, %s72
      %p74 = scmp.eq.s32.totalorder %s73, 0
      %s76 = sadd.s32 %s75, 1
      %s77 = scalar_select %p74, %s75, %s76
      %p80 = pneg %p74
      %p81 = scmp.eq.s32.totalorder %s14, 1
      %p82 = por %p80, %p81
      %p83 = scmp.ne.s32.totalorder %s75, %s78
      %p84 = scmp.eq.s32.totalorder %s14, 0
      %p85 = por %p83, %p84
      %p86 = scmp.ne.s32.totalorder %s75, %s78
      %p87 = scmp.eq.s32.totalorder %s19, 1
      %p88 = por %p86, %p87
      %p89 = scmp.ne.s32.totalorder %s78, %s79
      %p90 = scmp.eq.s32.totalorder %s19, 0
      %p91 = por %p89, %p90
      %p92 = scmp.ne.s32.totalorder %s78, %s79
      %p93 = scmp.eq.s32.totalorder %s20, 1
      %p94 = por %p92, %p93
      %p96 = scmp.ne.s32.totalorder %s79, %s95
      %p97 = scmp.eq.s32.totalorder %s20, 0
      %p98 = por %p96, %p97
      %s99 = ssub.s32 %s21, %s40
      %s100 = ssub.s32 %s22, %s36
      %s101 = sor.u32 %s99, %s100
      %s102 = ssub.s32 %s23, %s32
      %s103 = sor.u32 %s101, %s102
      %p104 = scmp.eq.s32.totalorder %s103, 0
      %s106 = sadd.s32 %s105, 1
      %s107 = scalar_select %p104, %s105, %s106
      %p110 = pneg %p104
      %p111 = scmp.eq.s32.totalorder %s14, 1
      %p112 = por %p110, %p111
      %p113 = scmp.ne.s32.totalorder %s105, %s108
      %p114 = scmp.eq.s32.totalorder %s14, 0
      %p115 = por %p113, %p114
      %p116 = scmp.ne.s32.totalorder %s105, %s108
      %p117 = scmp.eq.s32.totalorder %s19, 1
      %p118 = por %p116, %p117
      %p119 = scmp.ne.s32.totalorder %s108, %s109
      %p120 = scmp.eq.s32.totalorder %s19, 0
      %p121 = por %p119, %p120
      %p122 = scmp.ne.s32.totalorder %s108, %s109
      %p123 = scmp.eq.s32.totalorder %s20, 1
      %p124 = por %p122, %p123
      %p126 = scmp.ne.s32.totalorder %s109, %s125
      %p127 = scmp.eq.s32.totalorder %s20, 0
      %p128 = por %p126, %p127
      %p129 = scmp.le.s32.totalorder 1, %s14
      %p130 = scmp.lt.s32.totalorder %s14, 3
      %p131 = pnand %p129, %p130
      %p132 = pneg %p131
      // Predicated region
      $region9: #{ar_forward.23} parent=5 // pred_check
        _
      $region10: #{ar_forward.23} parent=5 // pred_check_branch
        %134 = sbr.rel (%p131) target = $region12
      $region11: #{ar_forward.23} parent=5 // pred_region
        %s135 = ssub.s32 %s14, 1
      $region12: #{ar_forward.23} parent=5 // pred_fallthru
        _
      %p136 = scmp.lt.s32.totalorder %s14, 2
      // Predicated region
      $region13: #{ar_forward.23} parent=5 // pred_check
        %p137 = pneg %p136
      $region14: #{ar_forward.23} parent=5 // pred_check_branch
        %139 = sbr.rel (%p137) target = $region16
      $region15: #{ar_forward.23} parent=5 // pred_region
        // Predicated region
        $region17: #{ar_forward.23} parent=15 // pred_check
          %p140 = pneg %p57
        $region18: #{ar_forward.23} parent=15 // pred_check_branch
          %142 = sbr.rel (%p140) target = $region20
        $region19: #{ar_forward.23} parent=15 // pred_region
          %s143 = sand.u32 %s47, 1
          %s144 = scalar_lea.sflag [#allocation3], %s143
          %s145 = sand.u32 %s47, 1
          %s146 = smul.addr %s145, 16
          %s147 = scalar_lea.vmem [#allocation2], %s146
          %s148 = smul.u32 2, %s22
          %s150 = ssub.s32 256, 256
          %151 = vsyncadd %s144, %s150
          %s152 = sadd.s32 %s23, %s148
          %s153 = smul.addr %s21, 2
          %s154 = sadd.s32 %s152, %s153
          %s155 = smul.addr %s154, 128
          %s156 = scalar_lea.hbm %s0, %s155
          %s157 = sshll.u32 %s147, 4
          %s158 = int_to_ptr.vmem [resolvable:$true] %s157
          %163 = dma.hbm_to_vmem [thread:$0]  %s156, 256, %s158, %s144, 128, 128, 8
        $region20: #{ar_forward.23} parent=15 // pred_fallthru
          _
        // Predicated region
        $region21: #{ar_forward.23} parent=15 // pred_check
          %p164 = pneg %p85
        $region22: #{ar_forward.23} parent=15 // pred_check_branch
          %166 = sbr.rel (%p164) target = $region24
        $region23: #{ar_forward.23} parent=15 // pred_region
          %s167 = smul.u32 2, %s22
          %p168 = scmp.lt.s32.totalorder %s21, 1
          %s169 = scalar_select %p168, %s21, 1
          %p170 = scmp.lt.s32.totalorder %s167, 1
          %s171 = scalar_select %p170, %s167, 1
          %s172 = smul.addr %s169, 2
          %s173 = sadd.s32 %s171, %s172
          %s174 = smul.addr %s173, 8
          %s175 = scalar_lea.vmem %s1, %s174
          %s176 = smul.u32 2, %s22
        $region24: #{ar_forward.23} parent=15 // pred_fallthru
          _
      $region16: #{ar_forward.23} parent=5 // pred_fallthru
        _
      %p177 = scmp.le.s32.totalorder 1, %s14
      %p178 = scmp.lt.s32.totalorder %s14, 3
      %p179 = pnand %p177, %p178
      %p180 = pneg %p179
      // Predicated region
      $region25: #{ar_forward.23} parent=5 // pred_check
        _
      $region26: #{ar_forward.23} parent=5 // pred_check_branch
        %182 = sbr.rel (%p179) target = $region28
      $region27: #{ar_forward.23} parent=5 // pred_region
        %s183 = ssub.s32 %s14, 1
        %s184 = sand.u32 %s50, 1
        %s185 = scalar_lea.sflag [#allocation3], %s184
        %s186 = sand.u32 %s50, 1
        %s187 = smul.addr %s186, 16
        %s188 = scalar_lea.vmem [#allocation2], %s187
        // Predicated region
        $region29: #{ar_forward.23} parent=27 // pred_check
          %p189 = pneg %p63
        $region30: #{ar_forward.23} parent=27 // pred_check_branch
          %191 = sbr.rel (%p189) target = $region32
        $region31: #{ar_forward.23} parent=27 // pred_region
          %192 = dma.done %s185, 256
        $region32: #{ar_forward.23} parent=27 // pred_fallthru
          _
        %s193 = sand.u32 %s50, 1
        %s194 = scalar_lea.sflag [#allocation3], %s193
        %s195 = sand.u32 %s50, 1
        %s196 = smul.addr %s195, 16
        %s197 = scalar_lea.vmem [#allocation2], %s196
        %p198 = pneg %p63
        %p199 = pneg %p60
        %s200 = smul.u32 2, %s25
        %p201 = scmp.lt.s32.totalorder %s24, 1
        %s202 = scalar_select %p201, %s24, 1
        %p203 = scmp.lt.s32.totalorder %s200, 1
        %s204 = scalar_select %p203, %s200, 1
        %s205 = smul.addr %s202, 2
        %s206 = sadd.s32 %s204, %s205
        %s207 = smul.addr %s206, 8
        %s208 = scalar_lea.vmem %s1, %s207
        %p209 = pneg %p91
        %p210 = pneg %p88
        %p211 = pneg %p121
        %p212 = pneg %p118
        %s213 = sand.u32 %s108, 1
        %s214 = scalar_lea.sflag [#allocation4], %s213
        %s215 = sand.u32 %s108, 1
        %s216 = smul.addr %s215, 16
        %s217 = scalar_lea.vmem [#allocation5], %s216
        %s218 = smul.u32 2, %s25
        %s219 = smul.u32 2, %s25
        %p220 = scmp.lt.s32.totalorder %s24, 1
        %s221 = scalar_select %p220, %s24, 1
        %p222 = scmp.lt.s32.totalorder %s219, 1
        %s223 = scalar_select %p222, %s219, 1
        %s224 = smul.addr %s221, 2
        %s225 = sadd.s32 %s223, %s224
        %s226 = smul.addr %s225, 8
        %s227 = scalar_lea.vmem %s1, %s226
        %s228 = smul.u32 2, %s25
        %s229 = smul.u32 2, %s25
        %v230 = vld [vmem:[%s188] sm:$0xff]
        %v231 = vld [vmem:[%s188 + $0x8] sm:$0xff]
        %v232 = vld [vmem:[%s227] sm:$0xff]
        %v233 = vld [vmem:[%s227 + $0x8] sm:$0xff]
        %235 = vset.pattern.permute.xlu0 0
        %236 = vperm.xlu0 %235, %v232
        %v237 = vpop.permute.xlu0 %236
        %240 = vset.pattern.permute.xlu0 0
        %241 = vperm.xlu0 %240, %v233
        %v242 = vpop.permute.xlu0 %241
        %v244 = vsub.f32 %v230, %v237
        %v245 = vsub.f32 %v231, %v242
        %vm246 = vcmask 523264
        %247 = vst.msk [vmem:[%s217] sm:$0xff] %vm246, %v244
        %248 = vst.msk [vmem:[%s217 + $0x8] sm:$0xff] %vm246, %v245
        %s249 = sand.u32 %s108, 1
        %s250 = scalar_lea.sflag [#allocation4], %s249
        %s251 = sand.u32 %s108, 1
        %s252 = smul.addr %s251, 16
        %s253 = scalar_lea.vmem [#allocation5], %s252
        // Predicated region
        $region33: #{ar_forward.23} parent=27 // pred_check
          %p254 = pneg %p118
        $region34: #{ar_forward.23} parent=27 // pred_check_branch
          %256 = sbr.rel (%p254) target = $region36
        $region35: #{ar_forward.23} parent=27 // pred_region
          %s257 = smul.u32 2, %s25
          %s259 = ssub.s32 256, 256
          %260 = vsyncadd %s250, %s259
          %s261 = sadd.s32 %s26, %s257
          %s262 = smul.addr %s24, 2
          %s263 = sadd.s32 %s261, %s262
          %s264 = smul.addr %s263, 128
          %s265 = scalar_lea.hbm %s2, %s264
          %s266 = sshll.u32 %s253, 4
          %s267 = int_to_ptr.vmem [resolvable:$true] %s266
          %272 = dma.vmem_to_hbm [thread:$0]  %s267, 256, %s265, %s250, 128, 128, 8
        $region36: #{ar_forward.23} parent=27 // pred_fallthru
          _
      $region28: #{ar_forward.23} parent=5 // pred_fallthru
        _
      %p273 = scmp.le.s32.totalorder 2, %s14
      // Predicated region
      $region37: #{ar_forward.23} parent=5 // pred_check
        %p274 = pneg %p273
      $region38: #{ar_forward.23} parent=5 // pred_check_branch
        %276 = sbr.rel (%p274) target = $region40
      $region39: #{ar_forward.23} parent=5 // pred_region
        %s277 = ssub.s32 %s14, 2
        // Predicated region
        $region41: #{ar_forward.23} parent=39 // pred_check
          %p278 = pneg %p124
        $region42: #{ar_forward.23} parent=39 // pred_check_branch
          %280 = sbr.rel (%p278) target = $region44
        $region43: #{ar_forward.23} parent=39 // pred_region
          %s281 = sand.u32 %s109, 1
          %s282 = scalar_lea.sflag [#allocation4], %s281
          %s283 = sand.u32 %s109, 1
          %s284 = smul.addr %s283, 16
          %s285 = scalar_lea.vmem [#allocation5], %s284
          %286 = dma.done %s282, 256
        $region44: #{ar_forward.23} parent=39 // pred_fallthru
          _
      $region40: #{ar_forward.23} parent=5 // pred_fallthru
        _
    $region6: #{ar_forward.23} parent=1 // loop_footer
      %s18 = sadd.s32 1, %s14
    $region7: #{ar_forward.23} parent=1 // loop_footer_branch
      %13 = sbr.rel target = $region3
    $region8: #{ar_forward.23} parent=1 // loop_exit
      _
    %287 = vsyncpa [#allocation3], 1
    %s288 = scalar_lea.sflag [#allocation3], 1
    %289 = vsyncpa %s288, 1
    %290 = vsyncpa [#allocation4], 1
    %s291 = scalar_lea.sflag [#allocation4], 1
    %292 = vsyncpa %s291, 1

// kernel: ar_forward.16
$region0: #{ar_forward.16}
  #allocation0 [shape = 'u32[]', space=smem, size = 0x4, offset = 0x4, fixed_abs, tag = 'smem constant byte address 0x4 - core index']
  #allocation1 [shape = 'u32[144,128]{1,0:T(1,128)}', space=vmem, size = 0x12000, scoped, tag = 'internal scratch']
  #allocation2 [shape = 'f32[16,32]{1,0:T(8,128)}', space=vmem, size = 0x2000, scoped, tag = 'scratch operand']
  %s0 = inlined_call_operand.vmem [shape: bf16[2,16,128], index: 0, kind: input, shape index: {}]
  %s1 = inlined_call_operand.vmem [shape: bf16[2,16,32], index: 1, kind: input, shape index: {}]
  %s2 = inlined_call_operand.vmem [shape: bf16[128,32], index: 2, kind: input, shape index: {}]
  %s3 = inlined_call_operand.vmem [shape: f32[1,32], index: 3, kind: input, shape index: {}]
  %s4 = inlined_call_operand.vmem [shape: bf16[2,16,32], index: 4, kind: output, shape index: {}]
  %s5 = sld [smem:[#allocation0]]
  $region57: #{ar_forward.16} parent=0
    _
  %s7 = ssub.s32 1, %s5
  %s8 = scalar_select 0, %s7, %s5
  loop: start=0, step=1, limit=4
  $region2: #{ar_forward.16} parent=0 // loop_pre_header
    _
  $region3: #{ar_forward.16} parent=0 // loop_header
    %s10 = sphi 0, %s14
    %p11 = scmp.ge.s32.totalorder %s10, 4
    %s17 = sphi 0, %s43
    %s18 = sphi 0, %s39
    %s19 = sphi 0, %s35
    %s20 = sphi 0, %s31
    %s21 = sphi 0, %s17
    %s22 = sphi 0, %s18
    %s23 = sphi 0, %s19
    %s24 = sphi 0, %s20
    %s25 = sphi 0, %s21
    %s26 = sphi 0, %s22
    %s27 = sphi 0, %s23
    %s28 = sphi 0, %s24
    %s50 = sphi 0, %s52
    %s53 = sphi 0, %s50
    %s54 = sphi 0, %s53
    %s70 = sphi 0, %s54
    %s80 = sphi 0, %s82
    %s83 = sphi 0, %s80
    %s84 = sphi 0, %s83
    %s100 = sphi 0, %s84
    %s108 = sphi 0, %s110
    %s111 = sphi 0, %s108
    %s112 = sphi 0, %s111
    %s128 = sphi 0, %s112
    %s134 = sphi 0, %s136
    %s137 = sphi 0, %s134
    %s138 = sphi 0, %s137
    %s154 = sphi 0, %s138
    %s164 = sphi 0, %s166
    %s167 = sphi 0, %s164
    %s168 = sphi 0, %s167
    %s184 = sphi 0, %s168
  $region4: #{ar_forward.16} parent=0 // loop_header_branch
    %13 = sbr.rel (%p11) target = $region8
  $region5: #{ar_forward.16} parent=0 // loop_body
    %s15 = ssub.s32 %s10, 1
    %s16 = ssub.s32 %s10, 2
    %s29 = sadd.s32 1, %s20
    %p30 = scmp.ge.s32.totalorder %s29, 1
    %s31 = scalar_select %p30, 0, %s29
    %s32 = sadd.s32 1, %s19
    %s33 = scalar_select %p30, %s32, %s19
    %p34 = scmp.ge.s32.totalorder %s33, 1
    %s35 = scalar_select %p34, 0, %s33
    %s36 = sadd.s32 1, %s18
    %s37 = scalar_select %p34, %s36, %s18
    %p38 = scmp.ge.s32.totalorder %s37, 1
    %s39 = scalar_select %p38, 0, %s37
    %s40 = sadd.s32 1, %s17
    %s41 = scalar_select %p38, %s40, %s17
    %p42 = scmp.ge.s32.totalorder %s41, 2
    %s43 = scalar_select %p42, 0, %s41
    %s44 = ssub.s32 %s17, %s43
    %s45 = ssub.s32 %s18, %s39
    %s46 = sor.u32 %s44, %s45
    %s47 = ssub.s32 %s20, %s31
    %s48 = sor.u32 %s46, %s47
    %p49 = scmp.eq.s32.totalorder %s48, 0
    %s51 = sadd.s32 %s50, 1
    %s52 = scalar_select %p49, %s50, %s51
    %p55 = pneg %p49
    %p56 = scmp.eq.s32.totalorder %s10, 1
    %p57 = por %p55, %p56
    %p58 = scmp.ne.s32.totalorder %s50, %s53
    %p59 = scmp.eq.s32.totalorder %s10, 0
    %p60 = por %p58, %p59
    %p61 = scmp.ne.s32.totalorder %s50, %s53
    %p62 = scmp.eq.s32.totalorder %s15, 1
    %p63 = por %p61, %p62
    %p64 = scmp.ne.s32.totalorder %s53, %s54
    %p65 = scmp.eq.s32.totalorder %s15, 0
    %p66 = por %p64, %p65
    %p67 = scmp.ne.s32.totalorder %s53, %s54
    %p68 = scmp.eq.s32.totalorder %s16, 1
    %p69 = por %p67, %p68
    %p71 = scmp.ne.s32.totalorder %s54, %s70
    %p72 = scmp.eq.s32.totalorder %s16, 0
    %p73 = por %p71, %p72
    %s74 = ssub.s32 %s17, %s43
    %s75 = ssub.s32 %s18, %s39
    %s76 = sor.u32 %s74, %s75
    %s77 = ssub.s32 %s19, %s35
    %s78 = sor.u32 %s76, %s77
    %p79 = scmp.eq.s32.totalorder %s78, 0
    %s81 = sadd.s32 %s80, 1
    %s82 = scalar_select %p79, %s80, %s81
    %p85 = pneg %p79
    %p86 = scmp.eq.s32.totalorder %s10, 1
    %p87 = por %p85, %p86
    %p88 = scmp.ne.s32.totalorder %s80, %s83
    %p89 = scmp.eq.s32.totalorder %s10, 0
    %p90 = por %p88, %p89
    %p91 = scmp.ne.s32.totalorder %s80, %s83
    %p92 = scmp.eq.s32.totalorder %s15, 1
    %p93 = por %p91, %p92
    %p94 = scmp.ne.s32.totalorder %s83, %s84
    %p95 = scmp.eq.s32.totalorder %s15, 0
    %p96 = por %p94, %p95
    %p97 = scmp.ne.s32.totalorder %s83, %s84
    %p98 = scmp.eq.s32.totalorder %s16, 1
    %p99 = por %p97, %p98
    %p101 = scmp.ne.s32.totalorder %s84, %s100
    %p102 = scmp.eq.s32.totalorder %s16, 0
    %p103 = por %p101, %p102
    %s104 = ssub.s32 %s20, %s31
    %s105 = ssub.s32 %s19, %s35
    %s106 = sor.u32 %s104, %s105
    %p107 = scmp.eq.s32.totalorder %s106, 0
    %s109 = sadd.s32 %s108, 1
    %s110 = scalar_select %p107, %s108, %s109
    %p113 = pneg %p107
    %p114 = scmp.eq.s32.totalorder %s10, 1
    %p115 = por %p113, %p114
    %p116 = scmp.ne.s32.totalorder %s108, %s111
    %p117 = scmp.eq.s32.totalorder %s10, 0
    %p118 = por %p116, %p117
    %p119 = scmp.ne.s32.totalorder %s108, %s111
    %p120 = scmp.eq.s32.totalorder %s15, 1
    %p121 = por %p119, %p120
    %p122 = scmp.ne.s32.totalorder %s111, %s112
    %p123 = scmp.eq.s32.totalorder %s15, 0
    %p124 = por %p122, %p123
    %p125 = scmp.ne.s32.totalorder %s111, %s112
    %p126 = scmp.eq.s32.totalorder %s16, 1
    %p127 = por %p125, %p126
    %p129 = scmp.ne.s32.totalorder %s112, %s128
    %p130 = scmp.eq.s32.totalorder %s16, 0
    %p131 = por %p129, %p130
    %s132 = ssub.s32 %s19, %s35
    %p133 = scmp.eq.s32.totalorder %s132, 0
    %s135 = sadd.s32 %s134, 1
    %s136 = scalar_select %p133, %s134, %s135
    %p139 = pneg %p133
    %p140 = scmp.eq.s32.totalorder %s10, 1
    %p141 = por %p139, %p140
    %p142 = scmp.ne.s32.totalorder %s134, %s137
    %p143 = scmp.eq.s32.totalorder %s10, 0
    %p144 = por %p142, %p143
    %p145 = scmp.ne.s32.totalorder %s134, %s137
    %p146 = scmp.eq.s32.totalorder %s15, 1
    %p147 = por %p145, %p146
    %p148 = scmp.ne.s32.totalorder %s137, %s138
    %p149 = scmp.eq.s32.totalorder %s15, 0
    %p150 = por %p148, %p149
    %p151 = scmp.ne.s32.totalorder %s137, %s138
    %p152 = scmp.eq.s32.totalorder %s16, 1
    %p153 = por %p151, %p152
    %p155 = scmp.ne.s32.totalorder %s138, %s154
    %p156 = scmp.eq.s32.totalorder %s16, 0
    %p157 = por %p155, %p156
    %s158 = ssub.s32 %s17, %s43
    %s159 = ssub.s32 %s18, %s39
    %s160 = sor.u32 %s158, %s159
    %s161 = ssub.s32 %s19, %s35
    %s162 = sor.u32 %s160, %s161
    %p163 = scmp.eq.s32.totalorder %s162, 0
    %s165 = sadd.s32 %s164, 1
    %s166 = scalar_select %p163, %s164, %s165
    %p169 = pneg %p163
    %p170 = scmp.eq.s32.totalorder %s10, 1
    %p171 = por %p169, %p170
    %p172 = scmp.ne.s32.totalorder %s164, %s167
    %p173 = scmp.eq.s32.totalorder %s10, 0
    %p174 = por %p172, %p173
    %p175 = scmp.ne.s32.totalorder %s164, %s167
    %p176 = scmp.eq.s32.totalorder %s15, 1
    %p177 = por %p175, %p176
    %p178 = scmp.ne.s32.totalorder %s167, %s168
    %p179 = scmp.eq.s32.totalorder %s15, 0
    %p180 = por %p178, %p179
    %p181 = scmp.ne.s32.totalorder %s167, %s168
    %p182 = scmp.eq.s32.totalorder %s16, 1
    %p183 = por %p181, %p182
    %p185 = scmp.ne.s32.totalorder %s168, %s184
    %p186 = scmp.eq.s32.totalorder %s16, 0
    %p187 = por %p185, %p186
    %p188 = scmp.le.s32.totalorder 1, %s10
    %p189 = scmp.lt.s32.totalorder %s10, 3
    %p190 = pnand %p188, %p189
    %p191 = pneg %p190
    // Predicated region
    $region9: #{ar_forward.16} parent=5 // pred_check
      _
    $region10: #{ar_forward.16} parent=5 // pred_check_branch
      %193 = sbr.rel (%p190) target = $region12
    $region11: #{ar_forward.16} parent=5 // pred_region
      %s194 = ssub.s32 %s10, 1
      // Predicated region
      $region13: #{ar_forward.16} parent=11 // pred_check
        %p195 = pneg %p124
      $region14: #{ar_forward.16} parent=11 // pred_check_branch
        %197 = sbr.rel (%p195) target = $region16
      $region15: #{ar_forward.16} parent=11 // pred_region
        %s198 = smul.u32 16, %s24
        %p199 = scmp.lt.s32.totalorder %s198, 15
        %s200 = scalar_select %p199, %s198, 15
        %p201 = scmp.lt.s32.totalorder %s23, 0
        %s202 = scalar_select %p201, %s23, 0
        %s203 = sadd.s32 %s202, %s200
        %s204 = smul.addr %s203, 4
        %s205 = scalar_lea.vmem %s2, %s204
        %s206 = smul.u32 16, %s24
      $region16: #{ar_forward.16} parent=11 // pred_fallthru
        _
      // Predicated region
      $region17: #{ar_forward.16} parent=11 // pred_check
        %p207 = pneg %p150
      $region18: #{ar_forward.16} parent=11 // pred_check_branch
        %209 = sbr.rel (%p207) target = $region20
      $region19: #{ar_forward.16} parent=11 // pred_region
        %p210 = scmp.lt.s32.totalorder %s23, 0
        %s211 = scalar_select %p210, %s23, 0
        %s212 = scalar_lea.vmem %s3, %s211
      $region20: #{ar_forward.16} parent=11 // pred_fallthru
        _
    $region12: #{ar_forward.16} parent=5 // pred_fallthru
      _
    %p213 = scmp.lt.s32.totalorder %s10, 2
    // Predicated region
    $region21: #{ar_forward.16} parent=5 // pred_check
      %p214 = pneg %p213
    $region22: #{ar_forward.16} parent=5 // pred_check_branch
      %216 = sbr.rel (%p214) target = $region24
    $region23: #{ar_forward.16} parent=5 // pred_region
      // Predicated region
      $region25: #{ar_forward.16} parent=23 // pred_check
        %p217 = pneg %p60
      $region26: #{ar_forward.16} parent=23 // pred_check_branch
        %219 = sbr.rel (%p217) target = $region28
      $region27: #{ar_forward.16} parent=23 // pred_region
        %s220 = smul.u32 2, %s18
        %p221 = scmp.lt.s32.totalorder %s17, 1
        %s222 = scalar_select %p221, %s17, 1
        %p223 = scmp.lt.s32.totalorder %s220, 1
        %s224 = scalar_select %p223, %s220, 1
        %p225 = scmp.lt.s32.totalorder %s20, 0
        %s226 = scalar_select %p225, %s20, 0
        %s227 = sadd.s32 %s226, %s224
        %s228 = smul.addr %s222, 2
        %s229 = sadd.s32 %s227, %s228
        %s230 = smul.addr %s229, 4
        %s231 = scalar_lea.vmem %s0, %s230
        %s232 = smul.u32 2, %s18
      $region28: #{ar_forward.16} parent=23 // pred_fallthru
        _
      // Predicated region
      $region29: #{ar_forward.16} parent=23 // pred_check
        %p233 = pneg %p90
      $region30: #{ar_forward.16} parent=23 // pred_check_branch
        %235 = sbr.rel (%p233) target = $region32
      $region31: #{ar_forward.16} parent=23 // pred_region
        %s236 = smul.u32 2, %s18
        %p237 = scmp.lt.s32.totalorder %s17, 1
        %s238 = scalar_select %p237, %s17, 1
        %p239 = scmp.lt.s32.totalorder %s236, 1
        %s240 = scalar_select %p239, %s236, 1
        %p241 = scmp.lt.s32.totalorder %s19, 0
        %s242 = scalar_select %p241, %s19, 0
        %s243 = sadd.s32 %s242, %s240
        %s244 = smul.addr %s238, 2
        %s245 = sadd.s32 %s243, %s244
        %s246 = smul.addr %s245, 4
        %s247 = scalar_lea.vmem %s1, %s246
        %s248 = smul.u32 2, %s18
      $region32: #{ar_forward.16} parent=23 // pred_fallthru
        _
    $region24: #{ar_forward.16} parent=5 // pred_fallthru
      _
    %p249 = scmp.le.s32.totalorder 1, %s10
    %p250 = scmp.lt.s32.totalorder %s10, 3
    %p251 = pnand %p249, %p250
    %p252 = pneg %p251
    // Predicated region
    $region33: #{ar_forward.16} parent=5 // pred_check
      _
    $region34: #{ar_forward.16} parent=5 // pred_check_branch
      %254 = sbr.rel (%p251) target = $region36
    $region35: #{ar_forward.16} parent=5 // pred_region
      %s255 = ssub.s32 %s10, 1
      %s256 = smul.u32 2, %s22
      %p257 = scmp.lt.s32.totalorder %s21, 1
      %s258 = scalar_select %p257, %s21, 1
      %p259 = scmp.lt.s32.totalorder %s256, 1
      %s260 = scalar_select %p259, %s256, 1
      %p261 = scmp.lt.s32.totalorder %s24, 0
      %s262 = scalar_select %p261, %s24, 0
      %s263 = sadd.s32 %s262, %s260
      %s264 = smul.addr %s258, 2
      %s265 = sadd.s32 %s263, %s264
      %s266 = smul.addr %s265, 4
      %s267 = scalar_lea.vmem %s0, %s266
      %p268 = pneg %p66
      %p269 = pneg %p63
      %s270 = smul.u32 2, %s22
      %p271 = scmp.lt.s32.totalorder %s21, 1
      %s272 = scalar_select %p271, %s21, 1
      %p273 = scmp.lt.s32.totalorder %s270, 1
      %s274 = scalar_select %p273, %s270, 1
      %p275 = scmp.lt.s32.totalorder %s23, 0
      %s276 = scalar_select %p275, %s23, 0
      %s277 = sadd.s32 %s276, %s274
      %s278 = smul.addr %s272, 2
      %s279 = sadd.s32 %s277, %s278
      %s280 = smul.addr %s279, 4
      %s281 = scalar_lea.vmem %s1, %s280
      %p282 = pneg %p96
      %p283 = pneg %p93
      %s284 = smul.u32 16, %s24
      %p285 = scmp.lt.s32.totalorder %s284, 15
      %s286 = scalar_select %p285, %s284, 15
      %p287 = scmp.lt.s32.totalorder %s23, 0
      %s288 = scalar_select %p287, %s23, 0
      %s289 = sadd.s32 %s288, %s286
      %s290 = smul.addr %s289, 4
      %s291 = scalar_lea.vmem %s2, %s290
      %p292 = pneg %p124
      %p293 = pneg %p121
      %p294 = scmp.lt.s32.totalorder %s23, 0
      %s295 = scalar_select %p294, %s23, 0
      %s296 = scalar_lea.vmem %s3, %s295
      %p297 = pneg %p150
      %p298 = pneg %p147
      %p299 = pneg %p180
      %p300 = pneg %p177
      %s301 = smul.u32 2, %s22
      %p302 = scmp.lt.s32.totalorder %s21, 1
      %s303 = scalar_select %p302, %s21, 1
      %p304 = scmp.lt.s32.totalorder %s301, 1
      %s305 = scalar_select %p304, %s301, 1
      %p306 = scmp.lt.s32.totalorder %s23, 0
      %s307 = scalar_select %p306, %s23, 0
      %s308 = sadd.s32 %s307, %s305
      %s309 = smul.addr %s303, 2
      %s310 = sadd.s32 %s308, %s309
      %s311 = smul.addr %s310, 4
      %s312 = scalar_lea.vmem %s4, %s311
      %s313 = smul.u32 2, %s22
      %p314 = scmp.lt.s32.totalorder %s21, 1
      %s315 = scalar_select %p314, %s21, 1
      %p316 = scmp.lt.s32.totalorder %s313, 1
      %s317 = scalar_select %p316, %s313, 1
      %p318 = scmp.lt.s32.totalorder %s24, 0
      %s319 = scalar_select %p318, %s24, 0
      %s320 = sadd.s32 %s319, %s317
      %s321 = smul.addr %s315, 2
      %s322 = sadd.s32 %s320, %s321
      %s323 = smul.addr %s322, 4
      %s324 = scalar_lea.vmem %s0, %s323
      %s325 = smul.u32 2, %s22
      %s326 = smul.u32 2, %s22
      %p327 = scmp.lt.s32.totalorder %s21, 1
      %s328 = scalar_select %p327, %s21, 1
      %p329 = scmp.lt.s32.totalorder %s326, 1
      %s330 = scalar_select %p329, %s326, 1
      %p331 = scmp.lt.s32.totalorder %s23, 0
      %s332 = scalar_select %p331, %s23, 0
      %s333 = sadd.s32 %s332, %s330
      %s334 = smul.addr %s328, 2
      %s335 = sadd.s32 %s333, %s334
      %s336 = smul.addr %s335, 4
      %s337 = scalar_lea.vmem %s1, %s336
      %s338 = smul.u32 2, %s22
      %s339 = smul.u32 16, %s24
      %p340 = scmp.lt.s32.totalorder %s339, 15
      %s341 = scalar_select %p340, %s339, 15
      %p342 = scmp.lt.s32.totalorder %s23, 0
      %s343 = scalar_select %p342, %s23, 0
      %s344 = sadd.s32 %s343, %s341
      %s345 = smul.addr %s344, 4
      %s346 = scalar_lea.vmem %s2, %s345
      %s347 = smul.u32 16, %s24
      %p348 = scmp.lt.s32.totalorder %s23, 0
      %s349 = scalar_select %p348, %s23, 0
      %s350 = scalar_lea.vmem %s3, %s349
      %s351 = smul.u32 2, %s22
      %p352 = scmp.lt.s32.totalorder %s21, 1
      %s353 = scalar_select %p352, %s21, 1
      %p354 = scmp.lt.s32.totalorder %s351, 1
      %s355 = scalar_select %p354, %s351, 1
      %p356 = scmp.lt.s32.totalorder %s23, 0
      %s357 = scalar_select %p356, %s23, 0
      %s358 = sadd.s32 %s357, %s355
      %s359 = smul.addr %s353, 2
      %s360 = sadd.s32 %s358, %s359
      %s361 = smul.addr %s360, 4
      %s362 = scalar_lea.vmem %s4, %s361
      %s363 = smul.u32 2, %s22
      %p365 = scmp.eq.s32.totalorder %s24, 0
      // Predicated region
      $region37: #{ar_forward.16} parent=35 // pred_check
        %p366 = pneg %p365
      $region38: #{ar_forward.16} parent=35 // pred_check_branch
        %368 = sbr.rel (%p366) target = $region40
      $region39: #{ar_forward.16} parent=35 // pred_region
        %vm369 = vcmask 261120
        %370 = vst.msk [vmem:[#allocation2] sm:$0xff] %vm369, 0.0
        %371 = vst.msk [vmem:[#allocation2 + $0x8] sm:$0xff] %vm369, 0.0
      $region40: #{ar_forward.16} parent=35 // pred_fallthru
        _
      %v372 = vld [vmem:[#allocation2] sm:$0xff]
      %v373 = vld [vmem:[#allocation2 + $0x8] sm:$0xff]
      %v374 = vld [vmem:[%s324] sm:$0xf]
      %v375 = vld [vmem:[%s324 + $0x4] sm:$0xf]
      %v376 = vld [vmem:[%s346] sm:$0xf]
      %v377 = vld [vmem:[%s346 + $0x4] sm:$0xf]
      %v378 = vld [vmem:[%s346 + $0x8] sm:$0xf]
      %v379 = vld [vmem:[%s346 + $0xc] sm:$0xf]
      %v380 = vld [vmem:[%s346 + $0x10] sm:$0xf]
      %v381 = vld [vmem:[%s346 + $0x14] sm:$0xf]
      %v382 = vld [vmem:[%s346 + $0x18] sm:$0xf]
      %v383 = vld [vmem:[%s346 + $0x1c] sm:$0xf]
      %v384 = vld [vmem:[%s346 + $0x20] sm:$0xf]
      %v385 = vld [vmem:[%s346 + $0x24] sm:$0xf]
      %v386 = vld [vmem:[%s346 + $0x28] sm:$0xf]
      %v387 = vld [vmem:[%s346 + $0x2c] sm:$0xf]
      %v388 = vld [vmem:[%s346 + $0x30] sm:$0xf]
      %v389 = vld [vmem:[%s346 + $0x34] sm:$0xf]
      %v390 = vld [vmem:[%s346 + $0x38] sm:$0xf]
      %v391 = vld [vmem:[%s346 + $0x3c] sm:$0xf]
      %v394 = vunpack.c.l.b16 %v374
      %v395 = vunpack.c.l.b16 %v375
      %v396 = vpack.c.b16 %v395, %v394
      %v414 = vunpack.c.l.b16 %v376
      %v415 = vunpack.c.l.b16 %v377
      %v416 = vunpack.c.l.b16 %v378
      %v417 = vunpack.c.l.b16 %v379
      %v418 = vunpack.c.l.b16 %v380
      %v419 = vunpack.c.l.b16 %v381
      %v420 = vunpack.c.l.b16 %v382
      %v421 = vunpack.c.l.b16 %v383
      %v422 = vunpack.c.l.b16 %v384
      %v423 = vunpack.c.l.b16 %v385
      %v424 = vunpack.c.l.b16 %v386
      %v425 = vunpack.c.l.b16 %v387
      %v426 = vunpack.c.l.b16 %v388
      %v427 = vunpack.c.l.b16 %v389
      %v428 = vunpack.c.l.b16 %v390
      %v429 = vunpack.c.l.b16 %v391
      %v430 = vpack.c.b16 %v415, %v414
      %v431 = vpack.c.b16 %v417, %v416
      %v432 = vpack.c.b16 %v419, %v418
      %v433 = vpack.c.b16 %v421, %v420
      %v434 = vpack.c.b16 %v423, %v422
      %v435 = vpack.c.b16 %v425, %v424
      %v436 = vpack.c.b16 %v427, %v426
      %v437 = vpack.c.b16 %v429, %v428
      %446 = vmatprep.subr.bf16.mxu0 0
      %447 = vmatpush1.bf16.msra.mxu0 %v437
      %448 = vmatprep.subr.bf16.mxu0 0
      %449 = vmatpush1.bf16.msra.mxu0 %v436
      %450 = vmatprep.subr.bf16.mxu0 0
      %451 = vmatpush1.bf16.msra.mxu0 %v435
      %452 = vmatprep.subr.bf16.mxu0 0
      %453 = vmatpush1.bf16.msra.mxu0 %v434
      %454 = vmatprep.subr.bf16.mxu0 0
      %455 = vmatpush1.bf16.msra.mxu0 %v433
      %456 = vmatprep.subr.bf16.mxu0 0
      %457 = vmatpush1.bf16.msra.mxu0 %v432
      %458 = vmatprep.subr.bf16.mxu0 0
      %459 = vmatpush1.bf16.msra.mxu0 %v431
      %460 = vmatprep.subr.bf16.mxu0 0
      %461 = vmatpush1.bf16.msra.mxu0 %v430
      %462 = vmatprep.subr.bf16.mxu0 0
      %463 = vmatpush2.bf16.msra.mxu0 0
      %464 = vmatprep.subr.bf16.mxu0 0
      %465 = vmatpush2.bf16.msra.mxu0 0
      %466 = vmatprep.subr.bf16.mxu0 0
      %467 = vmatpush2.bf16.msra.mxu0 0
      %468 = vmatprep.subr.bf16.mxu0 0
      %469 = vmatpush2.bf16.msra.mxu0 0
      %470 = vmatprep.subr.bf16.mxu0 0
      %471 = vmatpush2.bf16.msra.mxu0 0
      %472 = vmatprep.subr.bf16.mxu0 0
      %473 = vmatpush2.bf16.msra.mxu0 0
      %474 = vmatprep.subr.bf16.mxu0 0
      %475 = vmatpush2.bf16.msra.mxu0 0
      %476 = vmatprep.subr.bf16.mxu0 0
      %477 = vmatpush2.bf16.msra.mxu0 0
      %478 = vmatprep.mubr.bf16.mxu0 0
      %479 = vmatmul.mubr.bf16.gmra.mxu0 %v396
      %v480 = vpop.f32.mrf.mxu0
      %v481 = vadd.f32 0.0, %v480
      %v482 = vpop.f32.mrf.mxu0
      %v483 = vpop.f32.mrf.mxu0
      %v484 = vadd.f32 0.0, %v483
      %v485 = vpop.f32.mrf.mxu0
      %486 = vdwg.mxu0
      %v487 = vadd.f32 %v372, %v481
      %v488 = vadd.f32 %v373, %v484
      %vm489 = vcmask 261120
      %490 = vst.msk [vmem:[#allocation2] sm:$0xff] %vm489, %v487
      %491 = vst.msk [vmem:[#allocation2 + $0x8] sm:$0xff] %vm489, %v488
      // Predicated region
      $region41: #{ar_forward.16} parent=35 // pred_check
        %p492 = pneg %p365
      $region42: #{ar_forward.16} parent=35 // pred_check_branch
        %494 = sbr.rel (%p492) target = $region44
      $region43: #{ar_forward.16} parent=35 // pred_region
        %v495 = vld [vmem:[#allocation2] sm:$0xff]
        %v496 = vld [vmem:[#allocation2 + $0x8] sm:$0xff]
        %v497 = vld [vmem:[%s350] sm:$0x1]
        %v499 = vlaneseq
        %v500 = vshrl.u32 %v499, 7
        %v501 = vsub.s32 0, %v500
        %v502 = vrot.slane %v497, %v501
        %v504 = vadd.f32 %v495, %v502
        %v505 = vadd.f32 %v496, %v502
        %v506 = vld [vmem:[%s337] sm:$0xf]
        %v507 = vld [vmem:[%s337 + $0x4] sm:$0xf]
        %v508 = vunpack.c.l.bf16 %v506
        %v509 = vunpack.c.l.bf16 %v507
        %v510 = vadd.f32 %v504, %v508
        %v511 = vadd.f32 %v505, %v509
        %v512 = vpack.c.bf16 %v511, %v510
        %v514 = vunpack.c.l.b16 %v512
        %v515 = vunpack.c.h.b16 %v512
        %v516 = vpack.c.b16 %v514, %v514
        %v517 = vpack.c.b16 %v515, %v515
        %vm520 = vcmask 257024
        %521 = vst.msk [vmem:[%s362] sm:$0xf] %vm520, %v516
        %522 = vst.msk [vmem:[%s362 + $0x4] sm:$0xf] %vm520, %v517
      $region44: #{ar_forward.16} parent=35 // pred_fallthru
        _
      %s523 = smul.u32 2, %s22
      %p524 = scmp.lt.s32.totalorder %s21, 1
      %s525 = scalar_select %p524, %s21, 1
      %p526 = scmp.lt.s32.totalorder %s523, 1
      %s527 = scalar_select %p526, %s523, 1
      %p528 = scmp.lt.s32.totalorder %s23, 0
      %s529 = scalar_select %p528, %s23, 0
      %s530 = sadd.s32 %s529, %s527
      %s531 = smul.addr %s525, 2
      %s532 = sadd.s32 %s530, %s531
      %s533 = smul.addr %s532, 4
      %s534 = scalar_lea.vmem %s4, %s533
      // Predicated region
      $region45: #{ar_forward.16} parent=35 // pred_check
        %p535 = pneg %p177
      $region46: #{ar_forward.16} parent=35 // pred_check_branch
        %537 = sbr.rel (%p535) target = $region48
      $region47: #{ar_forward.16} parent=35 // pred_region
        %s538 = smul.u32 2, %s22
      $region48: #{ar_forward.16} parent=35 // pred_fallthru
        _
    $region36: #{ar_forward.16} parent=5 // pred_fallthru
      _
    %p539 = scmp.le.s32.totalorder 2, %s10
    // Predicated region
    $region49: #{ar_forward.16} parent=5 // pred_check
      %p540 = pneg %p539
    $region50: #{ar_forward.16} parent=5 // pred_check_branch
      %542 = sbr.rel (%p540) target = $region52
    $region51: #{ar_forward.16} parent=5 // pred_region
      %s543 = ssub.s32 %s10, 2
      // Predicated region
      $region53: #{ar_forward.16} parent=51 // pred_check
        %p544 = pneg %p183
      $region54: #{ar_forward.16} parent=51 // pred_check_branch
        %546 = sbr.rel (%p544) target = $region56
      $region55: #{ar_forward.16} parent=51 // pred_region
        %s547 = smul.u32 2, %s26
        %p548 = scmp.lt.s32.totalorder %s25, 1
        %s549 = scalar_select %p548, %s25, 1
        %p550 = scmp.lt.s32.totalorder %s547, 1
        %s551 = scalar_select %p550, %s547, 1
        %p552 = scmp.lt.s32.totalorder %s27, 0
        %s553 = scalar_select %p552, %s27, 0
        %s554 = sadd.s32 %s553, %s551
        %s555 = smul.addr %s549, 2
        %s556 = sadd.s32 %s554, %s555
        %s557 = smul.addr %s556, 4
        %s558 = scalar_lea.vmem %s4, %s557
      $region56: #{ar_forward.16} parent=51 // pred_fallthru
        _
    $region52: #{ar_forward.16} parent=5 // pred_fallthru
      _
  $region6: #{ar_forward.16} parent=0 // loop_footer
    %s14 = sadd.s32 1, %s10
  $region7: #{ar_forward.16} parent=0 // loop_footer_branch
    %9 = sbr.rel target = $region3
  $region8: #{ar_forward.16} parent=0 // loop_exit
    _

// kernel: ar_forward.22
$region0: #{ar_forward.22}
  #allocation0 [shape = 'u32[]', space=smem, size = 0x4, offset = 0x4, fixed_abs, tag = 'smem constant byte address 0x4 - core index']
  #allocation1 [shape = 'u32[144,128]{1,0:T(1,128)}', space=vmem, size = 0x12000, scoped, tag = 'internal scratch']
  #allocation2 [shape = 'bf16[16,32]{1,0:T(8,128)(2,1)}', space=vmem, size = 0x1000, scoped, tag = 'scratch operand']
  #allocation3 [shape = 'f32[16,1]{1,0:T(8,128)}', space=vmem, size = 0x2000, scoped, tag = 'scratch operand']
  #allocation4 [shape = 'f32[16,1]{1,0:T(8,128)}', space=vmem, size = 0x2000, scoped, tag = 'scratch operand']
  %s0 = inlined_call_operand.vmem [shape: bf16[2,16,32], index: 0, kind: input, shape index: {}]
  %s1 = inlined_call_operand.vmem [shape: f32[1,32], index: 1, kind: input, shape index: {}]
  %s2 = inlined_call_operand.vmem [shape: bf16[32,64], index: 2, kind: input, shape index: {}]
  %s3 = inlined_call_operand.vmem [shape: f32[1,64], index: 3, kind: input, shape index: {}]
  %s4 = inlined_call_operand.hbm [shape: f32[2,16,64], index: 4, kind: output, shape index: {0}]
  %s5 = inlined_call_operand.vmem [shape: f32[2,16,1], index: 5, kind: output, shape index: {1}]
  %6 = xla_tuple %s4, %s5
  %s7 = sld [smem:[#allocation0]]
  $region65: #{ar_forward.22} parent=0
    _
  %s9 = ssub.s32 1, %s7
  %s10 = scalar_select 0, %s9, %s7
  $region1: #{ar_forward.22} parent=0
    #allocation5 [shape = 'u8[16384]{0}', space=vmem, size = 0x4000, scoped, tag = 'output window, operand 0']
    #allocation6 [shape = 's32[2]{0}', space=sflag, size = 0x8, scoped, tag = 'scoped memory for ar_forward.22']
    %11 = vsyncpa [#allocation6], 0
    %s12 = scalar_lea.sflag [#allocation6], 1
    %13 = vsyncpa %s12, 0
    loop: start=0, step=1, limit=4
    $region2: #{ar_forward.22} parent=1 // loop_pre_header
      _
    $region3: #{ar_forward.22} parent=1 // loop_header
      %s15 = sphi 0, %s19
      %p16 = scmp.ge.s32.totalorder %s15, 4
      %s22 = sphi 0, %s41
      %s23 = sphi 0, %s37
      %s24 = sphi 0, %s33
      %s25 = sphi 0, %s22
      %s26 = sphi 0, %s23
      %s27 = sphi 0, %s24
      %s28 = sphi 0, %s25
      %s29 = sphi 0, %s26
      %s30 = sphi 0, %s27
      %s46 = sphi 0, %s48
      %s49 = sphi 0, %s46
      %s50 = sphi 0, %s49
      %s66 = sphi 0, %s50
      %s70 = sphi 0, %s70
      %s72 = sphi 0, %s70
      %s73 = sphi 0, %s72
      %s87 = sphi 0, %s73
      %s93 = sphi 0, %s95
      %s96 = sphi 0, %s93
      %s97 = sphi 0, %s96
      %s113 = sphi 0, %s97
      %s119 = sphi 0, %s121
      %s122 = sphi 0, %s119
      %s123 = sphi 0, %s122
      %s139 = sphi 0, %s123
      %s149 = sphi 0, %s151
      %s152 = sphi 0, %s149
      %s153 = sphi 0, %s152
      %s169 = sphi 0, %s153
      %s177 = sphi 0, %s179
      %s180 = sphi 0, %s177
      %s181 = sphi 0, %s180
      %s197 = sphi 0, %s181
    $region4: #{ar_forward.22} parent=1 // loop_header_branch
      %18 = sbr.rel (%p16) target = $region8
    $region5: #{ar_forward.22} parent=1 // loop_body
      %s20 = ssub.s32 %s15, 1
      %s21 = ssub.s32 %s15, 2
      %s31 = sadd.s32 1, %s24
      %p32 = scmp.ge.s32.totalorder %s31, 1
      %s33 = scalar_select %p32, 0, %s31
      %s34 = sadd.s32 1, %s23
      %s35 = scalar_select %p32, %s34, %s23
      %p36 = scmp.ge.s32.totalorder %s35, 1
      %s37 = scalar_select %p36, 0, %s35
      %s38 = sadd.s32 1, %s22
      %s39 = scalar_select %p36, %s38, %s22
      %p40 = scmp.ge.s32.totalorder %s39, 2
      %s41 = scalar_select %p40, 0, %s39
      %s42 = ssub.s32 %s22, %s41
      %s43 = ssub.s32 %s23, %s37
      %s44 = sor.u32 %s42, %s43
      %p45 = scmp.eq.s32.totalorder %s44, 0
      %s47 = sadd.s32 %s46, 1
      %s48 = scalar_select %p45, %s46, %s47
      %p51 = pneg %p45
      %p52 = scmp.eq.s32.totalorder %s15, 1
      %p53 = por %p51, %p52
      %p54 = scmp.ne.s32.totalorder %s46, %s49
      %p55 = scmp.eq.s32.totalorder %s15, 0
      %p56 = por %p54, %p55
      %p57 = scmp.ne.s32.totalorder %s46, %s49
      %p58 = scmp.eq.s32.totalorder %s20, 1
      %p59 = por %p57, %p58
      %p60 = scmp.ne.s32.totalorder %s49, %s50
      %p61 = scmp.eq.s32.totalorder %s20, 0
      %p62 = por %p60, %p61
      %p63 = scmp.ne.s32.totalorder %s49, %s50
      %p64 = scmp.eq.s32.totalorder %s21, 1
      %p65 = por %p63, %p64
      %p67 = scmp.ne.s32.totalorder %s50, %s66
      %p68 = scmp.eq.s32.totalorder %s21, 0
      %p69 = por %p67, %p68
      %s71 = sadd.s32 %s70, 1
      %p74 = scmp.eq.s32.totalorder %s15, 1
      %p75 = scmp.ne.s32.totalorder %s70, %s72
      %p76 = scmp.eq.s32.totalorder %s15, 0
      %p77 = por %p75, %p76
      %p78 = scmp.ne.s32.totalorder %s70, %s72
      %p79 = scmp.eq.s32.totalorder %s20, 1
      %p80 = por %p78, %p79
      %p81 = scmp.ne.s32.totalorder %s72, %s73
      %p82 = scmp.eq.s32.totalorder %s20, 0
      %p83 = por %p81, %p82
      %p84 = scmp.ne.s32.totalorder %s72, %s73
      %p85 = scmp.eq.s32.totalorder %s21, 1
      %p86 = por %p84, %p85
      %p88 = scmp.ne.s32.totalorder %s73, %s87
      %p89 = scmp.eq.s32.totalorder %s21, 0
      %p90 = por %p88, %p89
      %s91 = ssub.s32 %s24, %s33
      %p92 = scmp.eq.s32.totalorder %s91, 0
      %s94 = sadd.s32 %s93, 1
      %s95 = scalar_select %p92, %s93, %s94
      %p98 = pneg %p92
      %p99 = scmp.eq.s32.totalorder %s15, 1
      %p100 = por %p98, %p99
      %p101 = scmp.ne.s32.totalorder %s93, %s96
      %p102 = scmp.eq.s32.totalorder %s15, 0
      %p103 = por %p101, %p102
      %p104 = scmp.ne.s32.totalorder %s93, %s96
      %p105 = scmp.eq.s32.totalorder %s20, 1
      %p106 = por %p104, %p105
      %p107 = scmp.ne.s32.totalorder %s96, %s97
      %p108 = scmp.eq.s32.totalorder %s20, 0
      %p109 = por %p107, %p108
      %p110 = scmp.ne.s32.totalorder %s96, %s97
      %p111 = scmp.eq.s32.totalorder %s21, 1
      %p112 = por %p110, %p111
      %p114 = scmp.ne.s32.totalorder %s97, %s113
      %p115 = scmp.eq.s32.totalorder %s21, 0
      %p116 = por %p114, %p115
      %s117 = ssub.s32 %s24, %s33
      %p118 = scmp.eq.s32.totalorder %s117, 0
      %s120 = sadd.s32 %s119, 1
      %s121 = scalar_select %p118, %s119, %s120
      %p124 = pneg %p118
      %p125 = scmp.eq.s32.totalorder %s15, 1
      %p126 = por %p124, %p125
      %p127 = scmp.ne.s32.totalorder %s119, %s122
      %p128 = scmp.eq.s32.totalorder %s15, 0
      %p129 = por %p127, %p128
      %p130 = scmp.ne.s32.totalorder %s119, %s122
      %p131 = scmp.eq.s32.totalorder %s20, 1
      %p132 = por %p130, %p131
      %p133 = scmp.ne.s32.totalorder %s122, %s123
      %p134 = scmp.eq.s32.totalorder %s20, 0
      %p135 = por %p133, %p134
      %p136 = scmp.ne.s32.totalorder %s122, %s123
      %p137 = scmp.eq.s32.totalorder %s21, 1
      %p138 = por %p136, %p137
      %p140 = scmp.ne.s32.totalorder %s123, %s139
      %p141 = scmp.eq.s32.totalorder %s21, 0
      %p142 = por %p140, %p141
      %s143 = ssub.s32 %s22, %s41
      %s144 = ssub.s32 %s23, %s37
      %s145 = sor.u32 %s143, %s144
      %s146 = ssub.s32 %s24, %s33
      %s147 = sor.u32 %s145, %s146
      %p148 = scmp.eq.s32.totalorder %s147, 0
      %s150 = sadd.s32 %s149, 1
      %s151 = scalar_select %p148, %s149, %s150
      %p154 = pneg %p148
      %p155 = scmp.eq.s32.totalorder %s15, 1
      %p156 = por %p154, %p155
      %p157 = scmp.ne.s32.totalorder %s149, %s152
      %p158 = scmp.eq.s32.totalorder %s15, 0
      %p159 = por %p157, %p158
      %p160 = scmp.ne.s32.totalorder %s149, %s152
      %p161 = scmp.eq.s32.totalorder %s20, 1
      %p162 = por %p160, %p161
      %p163 = scmp.ne.s32.totalorder %s152, %s153
      %p164 = scmp.eq.s32.totalorder %s20, 0
      %p165 = por %p163, %p164
      %p166 = scmp.ne.s32.totalorder %s152, %s153
      %p167 = scmp.eq.s32.totalorder %s21, 1
      %p168 = por %p166, %p167
      %p170 = scmp.ne.s32.totalorder %s153, %s169
      %p171 = scmp.eq.s32.totalorder %s21, 0
      %p172 = por %p170, %p171
      %s173 = ssub.s32 %s22, %s41
      %s174 = ssub.s32 %s23, %s37
      %s175 = sor.u32 %s173, %s174
      %p176 = scmp.eq.s32.totalorder %s175, 0
      %s178 = sadd.s32 %s177, 1
      %s179 = scalar_select %p176, %s177, %s178
      %p182 = pneg %p176
      %p183 = scmp.eq.s32.totalorder %s15, 1
      %p184 = por %p182, %p183
      %p185 = scmp.ne.s32.totalorder %s177, %s180
      %p186 = scmp.eq.s32.totalorder %s15, 0
      %p187 = por %p185, %p186
      %p188 = scmp.ne.s32.totalorder %s177, %s180
      %p189 = scmp.eq.s32.totalorder %s20, 1
      %p190 = por %p188, %p189
      %p191 = scmp.ne.s32.totalorder %s180, %s181
      %p192 = scmp.eq.s32.totalorder %s20, 0
      %p193 = por %p191, %p192
      %p194 = scmp.ne.s32.totalorder %s180, %s181
      %p195 = scmp.eq.s32.totalorder %s21, 1
      %p196 = por %p194, %p195
      %p198 = scmp.ne.s32.totalorder %s181, %s197
      %p199 = scmp.eq.s32.totalorder %s21, 0
      %p200 = por %p198, %p199
      %p201 = scmp.le.s32.totalorder 1, %s15
      %p202 = scmp.lt.s32.totalorder %s15, 3
      %p203 = pnand %p201, %p202
      %p204 = pneg %p203
      // Predicated region
      $region9: #{ar_forward.22} parent=5 // pred_check
        _
      $region10: #{ar_forward.22} parent=5 // pred_check_branch
        %206 = sbr.rel (%p203) target = $region12
      $region11: #{ar_forward.22} parent=5 // pred_region
        %s207 = ssub.s32 %s15, 1
        // Predicated region
        $region13: #{ar_forward.22} parent=11 // pred_check
          %p208 = pneg %p83
        $region14: #{ar_forward.22} parent=11 // pred_check_branch
          %210 = sbr.rel (%p208) target = $region16
        $region15: #{ar_forward.22} parent=11 // pred_region
          _
        $region16: #{ar_forward.22} parent=11 // pred_fallthru
          _
        // Predicated region
        $region17: #{ar_forward.22} parent=11 // pred_check
          %p211 = pneg %p109
        $region18: #{ar_forward.22} parent=11 // pred_check_branch
          %213 = sbr.rel (%p211) target = $region20
        $region19: #{ar_forward.22} parent=11 // pred_region
          %p214 = scmp.lt.s32.totalorder %s27, 0
          %s215 = scalar_select %p214, %s27, 0
          %s216 = smul.addr %s215, 4
          %s217 = scalar_lea.vmem %s2, %s216
        $region20: #{ar_forward.22} parent=11 // pred_fallthru
          _
        // Predicated region
        $region21: #{ar_forward.22} parent=11 // pred_check
          %p218 = pneg %p135
        $region22: #{ar_forward.22} parent=11 // pred_check_branch
          %220 = sbr.rel (%p218) target = $region24
        $region23: #{ar_forward.22} parent=11 // pred_region
          %p221 = scmp.lt.s32.totalorder %s27, 0
          %s222 = scalar_select %p221, %s27, 0
          %s223 = scalar_lea.vmem %s3, %s222
        $region24: #{ar_forward.22} parent=11 // pred_fallthru
          _
      $region12: #{ar_forward.22} parent=5 // pred_fallthru
        _
      %p224 = scmp.lt.s32.totalorder %s15, 2
      // Predicated region
      $region25: #{ar_forward.22} parent=5 // pred_check
        %p225 = pneg %p224
      $region26: #{ar_forward.22} parent=5 // pred_check_branch
        %227 = sbr.rel (%p225) target = $region28
      $region27: #{ar_forward.22} parent=5 // pred_region
        // Predicated region
        $region29: #{ar_forward.22} parent=27 // pred_check
          %p228 = pneg %p56
        $region30: #{ar_forward.22} parent=27 // pred_check_branch
          %230 = sbr.rel (%p228) target = $region32
        $region31: #{ar_forward.22} parent=27 // pred_region
          %s231 = smul.u32 2, %s23
          %p232 = scmp.lt.s32.totalorder %s22, 1
          %s233 = scalar_select %p232, %s22, 1
          %p234 = scmp.lt.s32.totalorder %s231, 1
          %s235 = scalar_select %p234, %s231, 1
          %s236 = smul.addr %s233, 2
          %s237 = sadd.s32 %s235, %s236
          %s238 = smul.addr %s237, 4
          %s239 = scalar_lea.vmem %s0, %s238
          %s240 = smul.u32 2, %s23
        $region32: #{ar_forward.22} parent=27 // pred_fallthru
          _
      $region28: #{ar_forward.22} parent=5 // pred_fallthru
        _
      %p241 = scmp.le.s32.totalorder 1, %s15
      %p242 = scmp.lt.s32.totalorder %s15, 3
      %p243 = pnand %p241, %p242
      %p244 = pneg %p243
      // Predicated region
      $region33: #{ar_forward.22} parent=5 // pred_check
        _
      $region34: #{ar_forward.22} parent=5 // pred_check_branch
        %246 = sbr.rel (%p243) target = $region36
      $region35: #{ar_forward.22} parent=5 // pred_region
        %s247 = ssub.s32 %s15, 1
        %s248 = smul.u32 2, %s26
        %p249 = scmp.lt.s32.totalorder %s25, 1
        %s250 = scalar_select %p249, %s25, 1
        %p251 = scmp.lt.s32.totalorder %s248, 1
        %s252 = scalar_select %p251, %s248, 1
        %s253 = smul.addr %s250, 2
        %s254 = sadd.s32 %s252, %s253
        %s255 = smul.addr %s254, 4
        %s256 = scalar_lea.vmem %s0, %s255
        %p257 = pneg %p62
        %p258 = pneg %p59
        %p259 = pneg %p83
        %p260 = pneg %p80
        %p261 = scmp.lt.s32.totalorder %s27, 0
        %s262 = scalar_select %p261, %s27, 0
        %s263 = smul.addr %s262, 4
        %s264 = scalar_lea.vmem %s2, %s263
        %p265 = pneg %p109
        %p266 = pneg %p106
        %p267 = scmp.lt.s32.totalorder %s27, 0
        %s268 = scalar_select %p267, %s27, 0
        %s269 = scalar_lea.vmem %s3, %s268
        %p270 = pneg %p135
        %p271 = pneg %p132
        %p272 = pneg %p165
        %p273 = pneg %p162
        %s274 = sand.u32 %s152, 1
        %s275 = scalar_lea.sflag [#allocation6], %s274
        %s276 = sand.u32 %s152, 1
        %s277 = smul.addr %s276, 16
        %s278 = scalar_lea.vmem [#allocation5], %s277
        %p279 = pneg %p193
        %p280 = pneg %p190
        %s281 = smul.u32 2, %s26
        %p282 = scmp.lt.s32.totalorder %s25, 1
        %s283 = scalar_select %p282, %s25, 1
        %p284 = scmp.lt.s32.totalorder %s281, 1
        %s285 = scalar_select %p284, %s281, 1
        %s286 = smul.addr %s283, 2
        %s287 = sadd.s32 %s285, %s286
        %s288 = smul.addr %s287, 8
        %s289 = scalar_lea.vmem %s5, %s288
        %s290 = smul.u32 2, %s26
        %p291 = scmp.lt.s32.totalorder %s25, 1
        %s292 = scalar_select %p291, %s25, 1
        %p293 = scmp.lt.s32.totalorder %s290, 1
        %s294 = scalar_select %p293, %s290, 1
        %s295 = smul.addr %s292, 2
        %s296 = sadd.s32 %s294, %s295
        %s297 = smul.addr %s296, 4
        %s298 = scalar_lea.vmem %s0, %s297
        %s299 = smul.u32 2, %s26
        %p300 = scmp.lt.s32.totalorder %s27, 0
        %s301 = scalar_select %p300, %s27, 0
        %s302 = smul.addr %s301, 4
        %s303 = scalar_lea.vmem %s2, %s302
        %p304 = scmp.lt.s32.totalorder %s27, 0
        %s305 = scalar_select %p304, %s27, 0
        %s306 = scalar_lea.vmem %s3, %s305
        %s307 = smul.u32 2, %s26
        %s308 = smul.u32 2, %s26
        %p309 = scmp.lt.s32.totalorder %s25, 1
        %s310 = scalar_select %p309, %s25, 1
        %p311 = scmp.lt.s32.totalorder %s308, 1
        %s312 = scalar_select %p311, %s308, 1
        %s313 = smul.addr %s310, 2
        %s314 = sadd.s32 %s312, %s313
        %s315 = smul.addr %s314, 8
        %s316 = scalar_lea.vmem %s5, %s315
        %s317 = smul.u32 2, %s26
        %p319 = scmp.eq.s32.totalorder %s27, 0
        // Predicated region
        $region37: #{ar_forward.22} parent=35 // pred_check
          %p320 = pneg %p319
        $region38: #{ar_forward.22} parent=35 // pred_check_branch
          %322 = sbr.rel (%p320) target = $region40
        $region39: #{ar_forward.22} parent=35 // pred_region
          %v323 = vld [vmem:[%s298] sm:$0xf]
          %v324 = vld [vmem:[%s298 + $0x4] sm:$0xf]
          %v325 = vld [vmem:[%s1] sm:$0x1]
          %v326 = vunpack.c.l.bf16 %v323
          %v327 = vunpack.c.l.bf16 %v324
          %vm328 = vcmask 261120
          %v329 = vsel %vm328, %v326, 0.0
          %330 = vadd.xlane.f32.xlu0 %v329
          %v331 = vpop.xlane.xlu0 %330
          %v332 = vsel %vm328, %v327, 0.0
          %333 = vadd.xlane.f32.xlu0 %v332
          %v334 = vpop.xlane.xlu0 %333
          %v335 = vrcp.pop 32.0
          %v336 = vmul.f32 %v331, %v335
          %v337 = vmul.f32 %v334, %v335
          %v338 = vsub.f32 %v326, %v336
          %v339 = vsub.f32 %v327, %v337
          %v340 = vmul.f32 %v338, %v338
          %v341 = vmul.f32 %v339, %v339
          %v342 = vsel %vm328, %v340, 0.0
          %343 = vadd.xlane.f32.xlu0 %v342
          %v344 = vpop.xlane.xlu0 %343
          %v345 = vsel %vm328, %v341, 0.0
          %346 = vadd.xlane.f32.xlu0 %v345
          %v347 = vpop.xlane.xlu0 %346
          %v348 = vmul.f32 %v344, %v335
          %v349 = vmul.f32 %v347, %v335
          %v350 = vadd.f32 %v348, 1e-05
          %v351 = vadd.f32 %v349, 1e-05
          %v352 = vrsqrt.pop %v350
          %v353 = vrsqrt.pop %v351
          %v354 = vmul.f32 %v338, %v352
          %v355 = vmul.f32 %v339, %v353
          %v357 = vlaneseq
          %v358 = vshrl.u32 %v357, 7
          %v359 = vsub.s32 0, %v358
          %v360 = vrot.slane %v325, %v359
          %v362 = vmul.f32 %v354, %v360
          %v363 = vmul.f32 %v355, %v360
          %v364 = vpack.c.bf16 %v363, %v362
          %v366 = vunpack.c.l.b16 %v364
          %v367 = vunpack.c.h.b16 %v364
          %v368 = vpack.c.b16 %v366, %v366
          %v369 = vpack.c.b16 %v367, %v367
          %vm372 = vcmask 257024
          %373 = vst.msk [vmem:[#allocation2] sm:$0xf] %vm372, %v368
          %374 = vst.msk [vmem:[#allocation2 + $0x4] sm:$0xf] %vm372, %v369
          %vm375 = vcmask 7168
          %376 = vst.msk [vmem:[#allocation3] sm:$0xff] %vm375, -inf
          %377 = vst.msk [vmem:[#allocation3 + $0x8] sm:$0xff] %vm375, -inf
          %378 = vst.msk [vmem:[#allocation4] sm:$0xff] %vm375, 0.0
          %379 = vst.msk [vmem:[#allocation4 + $0x8] sm:$0xff] %vm375, 0.0
        $region40: #{ar_forward.22} parent=35 // pred_fallthru
          _
        %v380 = vld [vmem:[#allocation2] sm:$0xf]
        %v381 = vld [vmem:[#allocation2 + $0x4] sm:$0xf]
        %v382 = vld [vmem:[%s303] sm:$0xf]
        %v383 = vld [vmem:[%s303 + $0x4] sm:$0xf]
        %v384 = vld [vmem:[%s303 + $0x8] sm:$0xf]
        %v385 = vld [vmem:[%s303 + $0xc] sm:$0xf]
        %v386 = vld [vmem:[%s306] sm:$0x1]
        %v388 = vlaneseq
        %v389 = vshrl.u32 %v388, 7
        %v390 = vsub.s32 0, %v389
        %v391 = vrot.slane %v386, %v390
        %v395 = vunpack.c.l.b16 %v380
        %v396 = vunpack.c.l.b16 %v381
        %v397 = vpack.c.b16 %v396, %v395
        %v402 = vunpack.c.l.b16 %v382
        %v403 = vunpack.c.l.b16 %v383
        %v404 = vunpack.c.l.b16 %v384
        %v405 = vunpack.c.l.b16 %v385
        %v406 = vpack.c.b16 %v403, %v402
        %v407 = vpack.c.b16 %v405, %v404
        %vm410 = vcmask 261120
        %v412 = vsel %vm410, %v397, 0
        %414 = vmatprep.subr.bf16.mxu0 0
        %415 = vmatpush1.bf16.msra.mxu0 0
        %416 = vmatprep.subr.bf16.mxu0 0
        %417 = vmatpush1.bf16.msra.mxu0 0
        %418 = vmatprep.subr.bf16.mxu0 0
        %419 = vmatpush1.bf16.msra.mxu0 0
        %420 = vmatprep.subr.bf16.mxu0 0
        %421 = vmatpush1.bf16.msra.mxu0 0
        %422 = vmatprep.subr.bf16.mxu0 0
        %423 = vmatpush1.bf16.msra.mxu0 0
        %424 = vmatprep.subr.bf16.mxu0 0
        %425 = vmatpush1.bf16.msra.mxu0 0
        %426 = vmatprep.subr.bf16.mxu0 0
        %427 = vmatpush1.bf16.msra.mxu0 %v407
        %428 = vmatprep.subr.bf16.mxu0 0
        %429 = vmatpush1.bf16.msra.mxu0 %v406
        %430 = vmatprep.subr.bf16.mxu0 0
        %431 = vmatpush2.bf16.msra.mxu0 0
        %432 = vmatprep.subr.bf16.mxu0 0
        %433 = vmatpush2.bf16.msra.mxu0 0
        %434 = vmatprep.subr.bf16.mxu0 0
        %435 = vmatpush2.bf16.msra.mxu0 0
        %436 = vmatprep.subr.bf16.mxu0 0
        %437 = vmatpush2.bf16.msra.mxu0 0
        %438 = vmatprep.subr.bf16.mxu0 0
        %439 = vmatpush2.bf16.msra.mxu0 0
        %440 = vmatprep.subr.bf16.mxu0 0
        %441 = vmatpush2.bf16.msra.mxu0 0
        %442 = vmatprep.subr.bf16.mxu0 0
        %443 = vmatpush2.bf16.msra.mxu0 0
        %444 = vmatprep.subr.bf16.mxu0 0
        %445 = vmatpush2.bf16.msra.mxu0 0
        %446 = vmatprep.mubr.bf16.mxu0 0
        %447 = vmatmul.mubr.bf16.gmra.mxu0 %v412
        %v448 = vpop.f32.mrf.mxu0
        %v449 = vadd.f32 %v391, %v448
        %v450 = vpop.f32.mrf.mxu0
        %v451 = vpop.f32.mrf.mxu0
        %v452 = vadd.f32 %v391, %v451
        %v453 = vpop.f32.mrf.mxu0
        %454 = vdwg.mxu0
        %s455 = smul.u32 %s27, 64
        %v456 = vlaneseq
        %v457 = vand.u32 %v456, 127
        %v458 = vstv %s455
        %v459 = vadd.s32 %v458, %v457
        %vm460 = vcmp.eq.s32.totalorder %v459, 0
        %v461 = vsel %vm460, -1000.0, %v449
        %v462 = vsel %vm460, -1000.0, %v452
        %vm463 = vcmask 523264
        %464 = vst.msk [vmem:[%s278] sm:$0xff] %vm463, %v461
        %465 = vst.msk [vmem:[%s278 + $0x8] sm:$0xff] %vm463, %v462
        %v466 = vld [vmem:[#allocation3] sm:$0xff]
        %v467 = vld [vmem:[#allocation3 + $0x8] sm:$0xff]
        %v468 = vsel %vm463, %v461, -inf
        %469 = vmax.xlane.f32.xlu0 %v468
        %v470 = vpop.xlane.xlu0 %469
        %v471 = vsel %vm463, %v462, -inf
        %472 = vmax.xlane.f32.xlu0 %v471
        %v473 = vpop.xlane.xlu0 %472
        %v474 = vmax.f32 %v466, %v470
        %v475 = vmax.f32 %v467, %v473
        %v476 = vld [vmem:[#allocation4] sm:$0xff]
        %v477 = vld [vmem:[#allocation4 + $0x8] sm:$0xff]
        %v478 = vsub.f32 %v466, %v474
        %v479 = vsub.f32 %v467, %v475
        %v480 = vmul.f32 %v478, 1.442695
        %v481 = vpow.pop %v480
        %v482 = vmul.f32 %v479, 1.442695
        %v483 = vpow.pop %v482
        %v484 = vmul.f32 %v476, %v481
        %v485 = vmul.f32 %v477, %v483
        %487 = vset.pattern.permute.xlu0 0
        %488 = vperm.xlu0 %487, %v474
        %v489 = vpop.permute.xlu0 %488
        %492 = vset.pattern.permute.xlu0 0
        %493 = vperm.xlu0 %492, %v475
        %v494 = vpop.permute.xlu0 %493
        %v496 = vsub.f32 %v461, %v489
        %v497 = vsub.f32 %v462, %v494
        %v498 = vmul.f32 %v496, 1.442695
        %v499 = vpow.pop %v498
        %v500 = vmul.f32 %v497, 1.442695
        %v501 = vpow.pop %v500
        %v502 = vsel %vm463, %v499, 0.0
        %503 = vadd.xlane.f32.xlu0 %v502
        %v504 = vpop.xlane.xlu0 %503
        %v505 = vsel %vm463, %v501, 0.0
        %506 = vadd.xlane.f32.xlu0 %v505
        %v507 = vpop.xlane.xlu0 %506
        %v508 = vadd.f32 %v484, %v504
        %v509 = vadd.f32 %v485, %v507
        %vm510 = vcmask 7168
        %511 = vst.msk [vmem:[#allocation4] sm:$0xff] %vm510, %v508
        %512 = vst.msk [vmem:[#allocation4 + $0x8] sm:$0xff] %vm510, %v509
        %513 = vst.msk [vmem:[#allocation3] sm:$0xff] %vm510, %v474
        %514 = vst.msk [vmem:[#allocation3 + $0x8] sm:$0xff] %vm510, %v475
        // Predicated region
        $region41: #{ar_forward.22} parent=35 // pred_check
          %p515 = pneg %p319
        $region42: #{ar_forward.22} parent=35 // pred_check_branch
          %517 = sbr.rel (%p515) target = $region44
        $region43: #{ar_forward.22} parent=35 // pred_region
          %v518 = vld [vmem:[#allocation3] sm:$0xff]
          %v519 = vld [vmem:[#allocation3 + $0x8] sm:$0xff]
          %v520 = vld [vmem:[#allocation4] sm:$0xff]
          %v521 = vld [vmem:[#allocation4 + $0x8] sm:$0xff]
          %v522 = vlog2.pop %v520
          %v523 = vmul.f32 %v522, 0.6931472
          %v524 = vlog2.pop %v521
          %v525 = vmul.f32 %v524, 0.6931472
          %v526 = vadd.f32 %v518, %v523
          %v527 = vadd.f32 %v519, %v525
          %528 = vst.msk [vmem:[%s316] sm:$0xff] %vm510, %v526
          %529 = vst.msk [vmem:[%s316 + $0x8] sm:$0xff] %vm510, %v527
        $region44: #{ar_forward.22} parent=35 // pred_fallthru
          _
        %s530 = sand.u32 %s152, 1
        %s531 = scalar_lea.sflag [#allocation6], %s530
        %s532 = sand.u32 %s152, 1
        %s533 = smul.addr %s532, 16
        %s534 = scalar_lea.vmem [#allocation5], %s533
        %s535 = smul.u32 2, %s26
        %p536 = scmp.lt.s32.totalorder %s25, 1
        %s537 = scalar_select %p536, %s25, 1
        %p538 = scmp.lt.s32.totalorder %s535, 1
        %s539 = scalar_select %p538, %s535, 1
        %s540 = smul.addr %s537, 2
        %s541 = sadd.s32 %s539, %s540
        %s542 = smul.addr %s541, 8
        %s543 = scalar_lea.vmem %s5, %s542
        // Predicated region
        $region45: #{ar_forward.22} parent=35 // pred_check
          %p544 = pneg %p162
        $region46: #{ar_forward.22} parent=35 // pred_check_branch
          %546 = sbr.rel (%p544) target = $region48
        $region47: #{ar_forward.22} parent=35 // pred_region
          %s547 = smul.u32 2, %s26
          %s549 = ssub.s32 256, 256
          %550 = vsyncadd %s531, %s549
          %s551 = sadd.s32 %s27, %s547
          %s552 = smul.addr %s25, 2
          %s553 = sadd.s32 %s551, %s552
          %s554 = smul.addr %s553, 128
          %s555 = scalar_lea.hbm %s4, %s554
          %s556 = sshll.u32 %s534, 4
          %s557 = int_to_ptr.vmem [resolvable:$true] %s556
          %562 = dma.vmem_to_hbm [thread:$0]  %s557, 256, %s555, %s531, 128, 128, 8
        $region48: #{ar_forward.22} parent=35 // pred_fallthru
          _
        // Predicated region
        $region49: #{ar_forward.22} parent=35 // pred_check
          %p563 = pneg %p190
        $region50: #{ar_forward.22} parent=35 // pred_check_branch
          %565 = sbr.rel (%p563) target = $region52
        $region51: #{ar_forward.22} parent=35 // pred_region
          %s566 = smul.u32 2, %s26
        $region52: #{ar_forward.22} parent=35 // pred_fallthru
          _
      $region36: #{ar_forward.22} parent=5 // pred_fallthru
        _
      %p567 = scmp.le.s32.totalorder 2, %s15
      // Predicated region
      $region53: #{ar_forward.22} parent=5 // pred_check
        %p568 = pneg %p567
      $region54: #{ar_forward.22} parent=5 // pred_check_branch
        %570 = sbr.rel (%p568) target = $region56
      $region55: #{ar_forward.22} parent=5 // pred_region
        %s571 = ssub.s32 %s15, 2
        // Predicated region
        $region57: #{ar_forward.22} parent=55 // pred_check
          %p572 = pneg %p168
        $region58: #{ar_forward.22} parent=55 // pred_check_branch
          %574 = sbr.rel (%p572) target = $region60
        $region59: #{ar_forward.22} parent=55 // pred_region
          %s575 = sand.u32 %s153, 1
          %s576 = scalar_lea.sflag [#allocation6], %s575
          %s577 = sand.u32 %s153, 1
          %s578 = smul.addr %s577, 16
          %s579 = scalar_lea.vmem [#allocation5], %s578
          %580 = dma.done %s576, 256
        $region60: #{ar_forward.22} parent=55 // pred_fallthru
          _
        // Predicated region
        $region61: #{ar_forward.22} parent=55 // pred_check
          %p581 = pneg %p196
        $region62: #{ar_forward.22} parent=55 // pred_check_branch
          %583 = sbr.rel (%p581) target = $region64
        $region63: #{ar_forward.22} parent=55 // pred_region
          %s584 = smul.u32 2, %s29
          %p585 = scmp.lt.s32.totalorder %s28, 1
          %s586 = scalar_select %p585, %s28, 1
          %p587 = scmp.lt.s32.totalorder %s584, 1
          %s588 = scalar_select %p587, %s584, 1
          %s589 = smul.addr %s586, 2
          %s590 = sadd.s32 %s588, %s589
          %s591 = smul.addr %s590, 8
          %s592 = scalar_lea.vmem %s5, %s591
        $region64: #{ar_forward.22} parent=55 // pred_fallthru
          _
      $region56: #{ar_forward.22} parent=5 // pred_fallthru
        _
    $region6: #{ar_forward.22} parent=1 // loop_footer
      %s19 = sadd.s32 1, %s15
    $region7: #{ar_forward.22} parent=1 // loop_footer_branch
      %14 = sbr.rel target = $region3
    $region8: #{ar_forward.22} parent=1 // loop_exit
      _
    %593 = vsyncpa [#allocation6], 1
    %s594 = scalar_lea.sflag [#allocation6], 1
    %595 = vsyncpa %s594, 1

</llo_original>
